<compile_context>
chip_gen: v7x
topology: tpu7x:2x2x1
jax: 0.10.0
libtpu: 0.0.40
codegen_flags: <defaults>
</compile_context>

<pallas_src>
import jax
import jax.numpy as jnp
from jax.experimental import pallas as pl
from jax.experimental.pallas import tpu as pltpu


def _round_up(x, m):
    return ((x + m - 1) // m) * m


def _head_kernel(p_ref, w1_ref, scale_ref, shift_ref, w2_ref, b2_ref,
                 o_ref, acc_ref):
    """acc += patches @ W1 ; epilogue: relu(acc*scale+shift) @ W2 + b2."""
    k = pl.program_id(1)

    @pl.when(k == 0)
    def _():
        acc_ref[...] = jnp.zeros_like(acc_ref)

    # bf16 x bf16 -> fp32 accumulate (MXU-native input width)
    acc_ref[...] += jnp.dot(p_ref[...], w1_ref[...],
                            preferred_element_type=jnp.float32)

    @pl.when(k == pl.num_programs(1) - 1)
    def _():
        # BatchNorm (inference; conv bias folded into shift) + ReLU, in fp32
        h = acc_ref[...] * scale_ref[...] + shift_ref[...]
        h = jnp.maximum(h, 0.0)
        # 1x1 classifier conv == matmul over channels (lane-padded to 128)
        out = jnp.dot(h.astype(jnp.bfloat16), w2_ref[...],
                      preferred_element_type=jnp.float32)
        o_ref[...] = (out + b2_ref[...]).astype(o_ref.dtype)


def aquanet_head(feat_nchw, params, *, tm_max=256, tk=4608):
    """feat_nchw: (B, 2048, H, W) layer4 features. Returns (B, num_classes, H, W)."""
    B, C, H, W = feat_nchw.shape
    w1 = params["w1"]          # (3, 3, C, 256)   conv3x3 weight, HWIO
    b1 = params["b1"]          # (256,)
    gamma = params["gamma"]    # (256,)
    beta = params["beta"]      # (256,)
    mean = params["mean"]      # (256,)
    var = params["var"]        # (256,)
    w2 = params["w2"]          # (256, num_classes)  1x1 conv weight
    b2 = params["b2"]          # (num_classes,)
    eps = 1e-5
    nc = w2.shape[1]
    hidden = w1.shape[-1]

    # --- glue: im2col (NCHW -> NHWC -> padded -> bf16 patches) --------------
    x = jnp.transpose(feat_nchw, (0, 2, 3, 1)).astype(jnp.bfloat16)   # NHWC
    xp = jnp.pad(x, ((0, 0), (1, 1), (1, 1), (0, 0)))
    cols = [xp[:, dy:dy + H, dx:dx + W, :] for dy in range(3) for dx in range(3)]
    patches = jnp.concatenate(cols, axis=-1).reshape(B * H * W, 9 * C)

    # matching weight flattening: (kh, kw, cin, cout) -> (9*C, hidden), bf16
    w1_mat = w1.reshape(9 * C, hidden).astype(jnp.bfloat16)

    # fold conv bias + BN (inference) into per-channel scale/shift (kept fp32)
    inv_std = 1.0 / jnp.sqrt(var.astype(jnp.float32) + eps)
    scale = (gamma * inv_std).reshape(1, hidden).astype(jnp.float32)
    shift = (beta + (b1 - mean) * gamma * inv_std).reshape(1, hidden).astype(jnp.float32)

    # pad classifier to a full 128-lane output block (lane-dense stores)
    nc_pad = _round_up(max(nc, 128), 128)
    w2_p = jnp.zeros((hidden, nc_pad), jnp.bfloat16).at[:, :nc].set(
        w2.astype(jnp.bfloat16))
    b2_p = jnp.zeros((1, nc_pad), jnp.float32).at[:, :nc].set(
        b2.reshape(1, nc).astype(jnp.float32))

    M = B * H * W
    K = 9 * C
    assert K % tk == 0, "reduction dim must be divisible by tk"
    n_k = K // tk

    # tile M; pad rows with zeros if needed (discarded after the call)
    tm = min(tm_max, _round_up(M, 8))
    M_pad = _round_up(M, tm)
    if M_pad != M:
        patches = jnp.pad(patches, ((0, M_pad - M), (0, 0)))
    n_m = M_pad // tm

    cost = pl.CostEstimate(
        flops=2 * M_pad * K * hidden + 2 * M_pad * hidden * nc_pad,
        transcendentals=0,
        bytes_accessed=(M_pad * K * 2 + K * hidden * 2
                        + hidden * nc_pad * 2 + M_pad * nc_pad * 4),
    )

    out_flat = pl.pallas_call(
        _head_kernel,
        out_shape=jax.ShapeDtypeStruct((M_pad, nc_pad), jnp.float32),
        grid_spec=pltpu.PrefetchScalarGridSpec(
            num_scalar_prefetch=0,
            grid=(n_m, n_k),
            in_specs=[
                pl.BlockSpec((tm, tk), lambda i, k: (i, k)),        # patches
                pl.BlockSpec((tk, hidden), lambda i, k: (k, 0)),    # W1
                pl.BlockSpec((1, hidden), lambda i, k: (0, 0)),     # scale
                pl.BlockSpec((1, hidden), lambda i, k: (0, 0)),     # shift
                pl.BlockSpec((hidden, nc_pad), lambda i, k: (0, 0)),  # W2
                pl.BlockSpec((1, nc_pad), lambda i, k: (0, 0)),     # b2
            ],
            out_specs=pl.BlockSpec((tm, nc_pad), lambda i, k: (i, 0)),
            scratch_shapes=[pltpu.VMEM((tm, hidden), jnp.float32)],
        ),
        compiler_params=pltpu.CompilerParams(
            dimension_semantics=("parallel", "arbitrary"),
            vmem_limit_bytes=32 * 1024 * 1024,
        ),
        cost_estimate=cost,
    )(patches, w1_mat, scale, shift, w2_p, b2_p)

    out_flat = out_flat[:M, :nc]
    # back to NCHW
    return jnp.transpose(out_flat.reshape(B, H, W, nc), (0, 3, 1, 2))


def _reference(feat_nchw, params):
    """Plain-JAX fp32 reference of the same head (for sanity)."""
    B, C, H, W = feat_nchw.shape
    x = jnp.transpose(feat_nchw, (0, 2, 3, 1)).astype(jnp.float32)
    xp = jnp.pad(x, ((0, 0), (1, 1), (1, 1), (0, 0)))
    cols = [xp[:, dy:dy + H, dx:dx + W, :] for dy in range(3) for dx in range(3)]
    patches = jnp.concatenate(cols, axis=-1).reshape(B * H * W, 9 * C)
    h = patches @ params["w1"].reshape(9 * C, -1) + params["b1"]
    inv_std = 1.0 / jnp.sqrt(params["var"] + 1e-5)
    h = (h - params["mean"]) * inv_std * params["gamma"] + params["beta"]
    h = jnp.maximum(h, 0.0)
    out = h @ params["w2"] + params["b2"]
    nc = params["w2"].shape[1]
    return jnp.transpose(out.reshape(B, H, W, nc), (0, 3, 1, 2))


def init_params(key, c_in=2048, hidden=256, num_classes=2):
    ks = jax.random.split(key, 6)
    return {
        "w1": jax.random.normal(ks[0], (3, 3, c_in, hidden), jnp.float32) * 0.01,
        "b1": jax.random.normal(ks[1], (hidden,), jnp.float32) * 0.01,
        "gamma": jax.random.uniform(ks[2], (hidden,), jnp.float32, 0.8, 1.2),
        "beta": jax.random.normal(ks[3], (hidden,), jnp.float32) * 0.01,
        "mean": jax.random.normal(ks[4], (hidden,), jnp.float32) * 0.01,
        "var": jax.random.uniform(ks[5], (hidden,), jnp.float32, 0.5, 1.5),
        "w2": jax.random.normal(ks[0], (hidden, num_classes), jnp.float32) * 0.02,
        "b2": jax.random.normal(ks[1], (num_classes,), jnp.float32) * 0.02,
    }


if __name__ == "__main__":
    key = jax.random.PRNGKey(0)
    k_feat, k_par = jax.random.split(key)

    # Backbone layer4 output for a 128x128 input image: (B, 2048, 4, 4)
    B, C, H, W = 2, 2048, 4, 4
    feats = jax.random.normal(k_feat, (B, C, H, W), jnp.float32)
    params = init_params(k_par, c_in=C, hidden=256, num_classes=2)

    out = aquanet_head(feats, params)
    out = jax.block_until_ready(out)

    ref = _reference(feats, params)
    assert out.shape == (B, 2, H, W), out.shape
    # bf16 inputs / fp32 accumulation over K=18432 -> slightly loosened tol
    assert jnp.allclose(out, ref, atol=3e-2, rtol=3e-2), \
        float(jnp.max(jnp.abs(out - ref)))

    print("KERNEL_OK")
</pallas_src>

<mosaic_0001>
module attributes {stable_mosaic.version = 11 : i64} {
  func.func @_head_kernel(%arg0: i32, %arg1: i32, %arg2: memref<32x4608xbf16, #tpu.memory_space<vmem>>, %arg3: memref<4608x256xbf16, #tpu.memory_space<vmem>>, %arg4: memref<1x256xf32, #tpu.memory_space<vmem>>, %arg5: memref<1x256xf32, #tpu.memory_space<vmem>>, %arg6: memref<256x128xbf16, #tpu.memory_space<vmem>>, %arg7: memref<1x128xf32, #tpu.memory_space<vmem>>, %arg8: memref<32x128xf32, #tpu.memory_space<vmem>>, %arg9: memref<32x256xf32, #tpu.memory_space<vmem>>) attributes {dimension_semantics = [#tpu.dimension_semantics<parallel>, #tpu.dimension_semantics<arbitrary>], iteration_bounds = array<i64: 1, 4>, scalar_prefetch = 0 : i64, scratch_operands = 1 : i64, tpu.core_type = #tpu.core_type<tc>, window_params = [{transform_indices = @transform_0, window_bounds = array<i64: 32, 4608>}, {transform_indices = @transform_1, window_bounds = array<i64: 4608, 256>}, {pipeline_mode = #tpu.pipeline_mode<synchronous>, transform_indices = @transform_2, window_bounds = array<i64: 1, 256>}, {pipeline_mode = #tpu.pipeline_mode<synchronous>, transform_indices = @transform_3, window_bounds = array<i64: 1, 256>}, {pipeline_mode = #tpu.pipeline_mode<synchronous>, transform_indices = @transform_4, window_bounds = array<i64: 256, 128>}, {pipeline_mode = #tpu.pipeline_mode<synchronous>, transform_indices = @transform_5, window_bounds = array<i64: 1, 128>}, {transform_indices = @transform_6, window_bounds = array<i64: 32, 128>}]} {
    %c0_i32 = arith.constant 0 : i32
    %0 = arith.cmpi eq, %arg1, %c0_i32 : i32
    %1 = arith.extui %0 : i1 to i32
    %c0_i32_0 = arith.constant 0 : i32
    %2 = arith.cmpi ne, %1, %c0_i32_0 : i32
    scf.if %2 {
      %cst_9 = arith.constant 0.000000e+00 : f32
      %12 = vector.broadcast %cst_9 : f32 to vector<32x256xf32>
      %c0_10 = arith.constant 0 : index
      %c0_11 = arith.constant 0 : index
      %13 = vector.load %arg9[%c0_10, %c0_11] : memref<32x256xf32, #tpu.memory_space<vmem>>, vector<32x256xf32>
      tpu.vector_store %arg9[%c0_10, %c0_11], %12 {strides = array<i32>} : memref<32x256xf32, #tpu.memory_space<vmem>>, vector<32x256xf32>,
    } else {
    }
    %c0 = arith.constant 0 : index
    %c0_1 = arith.constant 0 : index
    %3 = vector.load %arg9[%c0, %c0_1] : memref<32x256xf32, #tpu.memory_space<vmem>>, vector<32x256xf32>
    %c0_2 = arith.constant 0 : index
    %c0_3 = arith.constant 0 : index
    %4 = vector.load %arg2[%c0_2, %c0_3] : memref<32x4608xbf16, #tpu.memory_space<vmem>>, vector<32x4608xbf16>
    %c0_4 = arith.constant 0 : index
    %c0_5 = arith.constant 0 : index
    %5 = vector.load %arg3[%c0_4, %c0_5] : memref<4608x256xbf16, #tpu.memory_space<vmem>>, vector<4608x256xbf16>
    %cst = arith.constant dense<0.000000e+00> : vector<32x256xf32>
    %6 = tpu.matmul %4, %5, %cst {dimension_numbers = #tpu.dot_dimension_numbers<[1], [0], [0], [1], [0, 0, 1, 1], [], []>} : vector<32x4608xbf16>, vector<4608x256xbf16>, vector<32x256xf32> -> vector<32x256xf32>
    %7 = arith.addf %3, %6 : vector<32x256xf32>
    %c0_6 = arith.constant 0 : index
    %c0_7 = arith.constant 0 : index
    %8 = vector.load %arg9[%c0_6, %c0_7] : memref<32x256xf32, #tpu.memory_space<vmem>>, vector<32x256xf32>
    tpu.vector_store %arg9[%c0_6, %c0_7], %7 {strides = array<i32>} : memref<32x256xf32, #tpu.memory_space<vmem>>, vector<32x256xf32>,
    %c3_i32 = arith.constant 3 : i32
    %9 = arith.cmpi eq, %arg1, %c3_i32 : i32
    %10 = arith.extui %9 : i1 to i32
    %c0_i32_8 = arith.constant 0 : i32
    %11 = arith.cmpi ne, %10, %c0_i32_8 : i32
    scf.if %11 {
      %c0_9 = arith.constant 0 : index
      %c0_10 = arith.constant 0 : index
      %12 = vector.load %arg9[%c0_9, %c0_10] : memref<32x256xf32, #tpu.memory_space<vmem>>, vector<32x256xf32>
      %c0_11 = arith.constant 0 : index
      %c0_12 = arith.constant 0 : index
      %13 = vector.load %arg4[%c0_11, %c0_12] : memref<1x256xf32, #tpu.memory_space<vmem>>, vector<1x256xf32>
      %14 = vector.broadcast %13 : vector<1x256xf32> to vector<32x256xf32>
      %15 = arith.mulf %12, %14 : vector<32x256xf32>
      %c0_13 = arith.constant 0 : index
      %c0_14 = arith.constant 0 : index
      %16 = vector.load %arg5[%c0_13, %c0_14] : memref<1x256xf32, #tpu.memory_space<vmem>>, vector<1x256xf32>
      %17 = vector.broadcast %16 : vector<1x256xf32> to vector<32x256xf32>
      %18 = arith.addf %15, %17 : vector<32x256xf32>
      %cst_15 = arith.constant 0.000000e+00 : f32
      %19 = vector.broadcast %cst_15 : f32 to vector<32x256xf32>
      %20 = arith.maximumf %18, %19 : vector<32x256xf32>
      %21 = arith.truncf %20 : vector<32x256xf32> to vector<32x256xbf16>
      %c0_16 = arith.constant 0 : index
      %c0_17 = arith.constant 0 : index
      %22 = vector.load %arg6[%c0_16, %c0_17] : memref<256x128xbf16, #tpu.memory_space<vmem>>, vector<256x128xbf16>
      %cst_18 = arith.constant dense<0.000000e+00> : vector<32x128xf32>
      %23 = tpu.matmul %21, %22, %cst_18 {dimension_numbers = #tpu.dot_dimension_numbers<[1], [0], [0], [1], [0, 0, 1, 1], [], []>} : vector<32x256xbf16>, vector<256x128xbf16>, vector<32x128xf32> -> vector<32x128xf32>
      %c0_19 = arith.constant 0 : index
      %c0_20 = arith.constant 0 : index
      %24 = vector.load %arg7[%c0_19, %c0_20] : memref<1x128xf32, #tpu.memory_space<vmem>>, vector<1x128xf32>
      %25 = vector.broadcast %24 : vector<1x128xf32> to vector<32x128xf32>
      %26 = arith.addf %23, %25 : vector<32x128xf32>
      %c0_21 = arith.constant 0 : index
      %c0_22 = arith.constant 0 : index
      %27 = vector.load %arg8[%c0_21, %c0_22] : memref<32x128xf32, #tpu.memory_space<vmem>>, vector<32x128xf32>
      tpu.vector_store %arg8[%c0_21, %c0_22], %26 {strides = array<i32>} : memref<32x128xf32, #tpu.memory_space<vmem>>, vector<32x128xf32>,
    } else {
    }
    return
  }
  func.func @transform_0(%arg0: i32, %arg1: i32) -> (i32, i32) {
    %c0_i32 = arith.constant 0 : i32
    return %arg0, %arg1 : i32, i32
  }
  func.func @transform_1(%arg0: i32, %arg1: i32) -> (i32, i32) {
    %c0_i32 = arith.constant 0 : i32
    %c0_i32_0 = arith.constant 0 : i32
    return %arg1, %c0_i32 : i32, i32
  }
  func.func @transform_2(%arg0: i32, %arg1: i32) -> (i32, i32) {
    %c0_i32 = arith.constant 0 : i32
    %c0_i32_0 = arith.constant 0 : i32
    %c0_i32_1 = arith.constant 0 : i32
    return %c0_i32, %c0_i32_0 : i32, i32
  }
  func.func @transform_3(%arg0: i32, %arg1: i32) -> (i32, i32) {
    %c0_i32 = arith.constant 0 : i32
    %c0_i32_0 = arith.constant 0 : i32
    %c0_i32_1 = arith.constant 0 : i32
    return %c0_i32, %c0_i32_0 : i32, i32
  }
  func.func @transform_4(%arg0: i32, %arg1: i32) -> (i32, i32) {
    %c0_i32 = arith.constant 0 : i32
    %c0_i32_0 = arith.constant 0 : i32
    %c0_i32_1 = arith.constant 0 : i32
    return %c0_i32, %c0_i32_0 : i32, i32
  }
  func.func @transform_5(%arg0: i32, %arg1: i32) -> (i32, i32) {
    %c0_i32 = arith.constant 0 : i32
    %c0_i32_0 = arith.constant 0 : i32
    %c0_i32_1 = arith.constant 0 : i32
    return %c0_i32, %c0_i32_0 : i32, i32
  }
  func.func @transform_6(%arg0: i32, %arg1: i32) -> (i32, i32) {
    %c0_i32 = arith.constant 0 : i32
    %c0_i32_0 = arith.constant 0 : i32
    return %arg0, %c0_i32 : i32, i32
  }
}

</mosaic_0001>

<llo_original>
// kernel: tpu_custom_call.1
$region0: #{tpu_custom_call.1}
  #allocation0 [shape = 'u32[]', space=smem, size = 0x4, offset = 0x4, fixed_abs, tag = 'smem constant byte address 0x4 - core index']
  #allocation1 [shape = 'u32[144,128]{1,0:T(1,128)}', space=vmem, size = 0x12000, scoped, tag = 'internal scratch']
  #allocation2 [shape = 'f32[32,256]{1,0:T(8,128)}', space=vmem, size = 0x8000, scoped, tag = 'scratch operand']
  %s0 = inlined_call_operand.hbm [shape: bf16[32,18432], index: 0, kind: input, shape index: {}]
  %s1 = inlined_call_operand.hbm [shape: bf16[18432,256], index: 1, kind: input, shape index: {}]
  %s2 = inlined_call_operand.hbm [shape: f32[1,256], index: 2, kind: input, shape index: {}]
  %s3 = inlined_call_operand.hbm [shape: f32[1,256], index: 3, kind: input, shape index: {}]
  %s4 = inlined_call_operand.hbm [shape: bf16[256,128], index: 4, kind: input, shape index: {}]
  %s5 = inlined_call_operand.hbm [shape: f32[1,128], index: 5, kind: input, shape index: {}]
  %s6 = inlined_call_operand.hbm [shape: f32[32,128], index: 6, kind: output, shape index: {}]
  %s7 = sld [smem:[#allocation0]]
  $region89: #{tpu_custom_call.1} parent=0
    _
  %s9 = ssub.s32 1, %s7
  %s10 = scalar_select 0, %s9, %s7
  $region1: #{tpu_custom_call.1} parent=0
    #allocation3 [shape = 'u8[589824]{0}', space=vmem, size = 0x90000, scoped, tag = 'input window, operand 0']
    #allocation4 [shape = 's32[2]{0}', space=sflag, size = 0x8, scoped, tag = 'scoped memory for tpu_custom_call.1']
    #allocation5 [shape = 's32[2]{0}', space=sflag, size = 0x8, scoped, tag = 'scoped memory for tpu_custom_call.1']
    #allocation6 [shape = 'u8[4718592]{0}', space=vmem, size = 0x480000, scoped, tag = 'input window, operand 1']
    #allocation7 [shape = 's32[2]{0}', space=sflag, size = 0x8, scoped, tag = 'scoped memory for tpu_custom_call.1']
    #allocation8 [shape = 'u8[1024]{0}', space=vmem, size = 0x400, scoped, tag = 'input window, operand 2, single buffered']
    #allocation9 [shape = 'u8[1024]{0}', space=vmem, size = 0x400, scoped, tag = 'input window, operand 3, single buffered']
    #allocation10 [shape = 's32[1]{0}', space=sflag, size = 0x4, scoped, tag = 'scoped memory for tpu_custom_call.1']
    #allocation11 [shape = 'u8[65536]{0}', space=vmem, size = 0x10000, scoped, tag = 'input window, operand 4, single buffered']
    #allocation12 [shape = 'u8[512]{0}', space=vmem, size = 0x400, scoped, tag = 'input window, operand 5, single buffered']
    #allocation13 [shape = 's32[1]{0}', space=sflag, size = 0x4, scoped, tag = 'scoped memory for tpu_custom_call.1']
    #allocation14 [shape = 'u8[16384]{0}', space=vmem, size = 0x4000, scoped, tag = 'output window, operand 0, single buffered']
    %11 = vsyncpa [#allocation4], 0
    %s12 = scalar_lea.sflag [#allocation4], 1
    %13 = vsyncpa %s12, 0
    %14 = vsyncpa [#allocation7], 0
    %s15 = scalar_lea.sflag [#allocation7], 1
    %16 = vsyncpa %s15, 0
    %17 = vsyncpa [#allocation10], 0
    %18 = vsyncpa [#allocation13], 0
    %19 = vsyncpa [#allocation5], 0
    loop: start=0, step=1, limit=6
    $region2: #{tpu_custom_call.1} parent=1 // loop_pre_header
      _
    $region3: #{tpu_custom_call.1} parent=1 // loop_header
      %s21 = sphi 0, %s25
      %p22 = scmp.ge.s32.totalorder %s21, 6
      %s28 = sphi 0, %s40
      %s29 = sphi 0, %s36
      %s30 = sphi 0, %s28
      %s31 = sphi 0, %s29
      %s32 = sphi 0, %s30
      %s33 = sphi 0, %s31
      %s45 = sphi 0, %s47
      %s48 = sphi 0, %s45
      %s49 = sphi 0, %s48
      %s65 = sphi 0, %s49
      %s71 = sphi 0, %s73
      %s74 = sphi 0, %s71
      %s75 = sphi 0, %s74
      %s91 = sphi 0, %s75
      %s95 = sphi 0, %s95
      %s97 = sphi 0, %s95
      %s98 = sphi 0, %s97
      %s112 = sphi 0, %s98
      %s116 = sphi 0, %s116
      %s118 = sphi 0, %s116
      %s119 = sphi 0, %s118
      %s133 = sphi 0, %s119
      %s137 = sphi 0, %s137
      %s139 = sphi 0, %s137
      %s140 = sphi 0, %s139
      %s154 = sphi 0, %s140
      %s158 = sphi 0, %s158
      %s160 = sphi 0, %s158
      %s161 = sphi 0, %s160
      %s175 = sphi 0, %s161
      %s181 = sphi 0, %s183
      %s184 = sphi 0, %s181
      %s185 = sphi 0, %s184
      %s201 = sphi 0, %s185
    $region4: #{tpu_custom_call.1} parent=1 // loop_header_branch
      %24 = sbr.rel (%p22) target = $region8
    $region5: #{tpu_custom_call.1} parent=1 // loop_body
      %s26 = ssub.s32 %s21, 1
      %s27 = ssub.s32 %s21, 2
      %s34 = sadd.s32 1, %s29
      %p35 = scmp.ge.s32.totalorder %s34, 4
      %s36 = scalar_select %p35, 0, %s34
      %s37 = sadd.s32 1, %s28
      %s38 = scalar_select %p35, %s37, %s28
      %p39 = scmp.ge.s32.totalorder %s38, 1
      %s40 = scalar_select %p39, 0, %s38
      %s41 = ssub.s32 %s28, %s40
      %s42 = ssub.s32 %s29, %s36
      %s43 = sor.u32 %s41, %s42
      %p44 = scmp.eq.s32.totalorder %s43, 0
      %s46 = sadd.s32 %s45, 1
      %s47 = scalar_select %p44, %s45, %s46
      %p50 = pneg %p44
      %p51 = scmp.eq.s32.totalorder %s21, 3
      %p52 = por %p50, %p51
      %p53 = scmp.ne.s32.totalorder %s45, %s48
      %p54 = scmp.eq.s32.totalorder %s21, 0
      %p55 = por %p53, %p54
      %p56 = scmp.ne.s32.totalorder %s45, %s48
      %p57 = scmp.eq.s32.totalorder %s26, 3
      %p58 = por %p56, %p57
      %p59 = scmp.ne.s32.totalorder %s48, %s49
      %p60 = scmp.eq.s32.totalorder %s26, 0
      %p61 = por %p59, %p60
      %p62 = scmp.ne.s32.totalorder %s48, %s49
      %p63 = scmp.eq.s32.totalorder %s27, 3
      %p64 = por %p62, %p63
      %p66 = scmp.ne.s32.totalorder %s49, %s65
      %p67 = scmp.eq.s32.totalorder %s27, 0
      %p68 = por %p66, %p67
      %s69 = ssub.s32 %s29, %s36
      %p70 = scmp.eq.s32.totalorder %s69, 0
      %s72 = sadd.s32 %s71, 1
      %s73 = scalar_select %p70, %s71, %s72
      %p76 = pneg %p70
      %p77 = scmp.eq.s32.totalorder %s21, 3
      %p78 = por %p76, %p77
      %p79 = scmp.ne.s32.totalorder %s71, %s74
      %p80 = scmp.eq.s32.totalorder %s21, 0
      %p81 = por %p79, %p80
      %p82 = scmp.ne.s32.totalorder %s71, %s74
      %p83 = scmp.eq.s32.totalorder %s26, 3
      %p84 = por %p82, %p83
      %p85 = scmp.ne.s32.totalorder %s74, %s75
      %p86 = scmp.eq.s32.totalorder %s26, 0
      %p87 = por %p85, %p86
      %p88 = scmp.ne.s32.totalorder %s74, %s75
      %p89 = scmp.eq.s32.totalorder %s27, 3
      %p90 = por %p88, %p89
      %p92 = scmp.ne.s32.totalorder %s75, %s91
      %p93 = scmp.eq.s32.totalorder %s27, 0
      %p94 = por %p92, %p93
      %s96 = sadd.s32 %s95, 1
      %p99 = scmp.eq.s32.totalorder %s21, 3
      %p100 = scmp.ne.s32.totalorder %s95, %s97
      %p101 = scmp.eq.s32.totalorder %s21, 0
      %p102 = por %p100, %p101
      %p103 = scmp.ne.s32.totalorder %s95, %s97
      %p104 = scmp.eq.s32.totalorder %s26, 3
      %p105 = por %p103, %p104
      %p106 = scmp.ne.s32.totalorder %s97, %s98
      %p107 = scmp.eq.s32.totalorder %s26, 0
      %p108 = por %p106, %p107
      %p109 = scmp.ne.s32.totalorder %s97, %s98
      %p110 = scmp.eq.s32.totalorder %s27, 3
      %p111 = por %p109, %p110
      %p113 = scmp.ne.s32.totalorder %s98, %s112
      %p114 = scmp.eq.s32.totalorder %s27, 0
      %p115 = por %p113, %p114
      %s117 = sadd.s32 %s116, 1
      %p120 = scmp.eq.s32.totalorder %s21, 3
      %p121 = scmp.ne.s32.totalorder %s116, %s118
      %p122 = scmp.eq.s32.totalorder %s21, 0
      %p123 = por %p121, %p122
      %p124 = scmp.ne.s32.totalorder %s116, %s118
      %p125 = scmp.eq.s32.totalorder %s26, 3
      %p126 = por %p124, %p125
      %p127 = scmp.ne.s32.totalorder %s118, %s119
      %p128 = scmp.eq.s32.totalorder %s26, 0
      %p129 = por %p127, %p128
      %p130 = scmp.ne.s32.totalorder %s118, %s119
      %p131 = scmp.eq.s32.totalorder %s27, 3
      %p132 = por %p130, %p131
      %p134 = scmp.ne.s32.totalorder %s119, %s133
      %p135 = scmp.eq.s32.totalorder %s27, 0
      %p136 = por %p134, %p135
      %s138 = sadd.s32 %s137, 1
      %p141 = scmp.eq.s32.totalorder %s21, 3
      %p142 = scmp.ne.s32.totalorder %s137, %s139
      %p143 = scmp.eq.s32.totalorder %s21, 0
      %p144 = por %p142, %p143
      %p145 = scmp.ne.s32.totalorder %s137, %s139
      %p146 = scmp.eq.s32.totalorder %s26, 3
      %p147 = por %p145, %p146
      %p148 = scmp.ne.s32.totalorder %s139, %s140
      %p149 = scmp.eq.s32.totalorder %s26, 0
      %p150 = por %p148, %p149
      %p151 = scmp.ne.s32.totalorder %s139, %s140
      %p152 = scmp.eq.s32.totalorder %s27, 3
      %p153 = por %p151, %p152
      %p155 = scmp.ne.s32.totalorder %s140, %s154
      %p156 = scmp.eq.s32.totalorder %s27, 0
      %p157 = por %p155, %p156
      %s159 = sadd.s32 %s158, 1
      %p162 = scmp.eq.s32.totalorder %s21, 3
      %p163 = scmp.ne.s32.totalorder %s158, %s160
      %p164 = scmp.eq.s32.totalorder %s21, 0
      %p165 = por %p163, %p164
      %p166 = scmp.ne.s32.totalorder %s158, %s160
      %p167 = scmp.eq.s32.totalorder %s26, 3
      %p168 = por %p166, %p167
      %p169 = scmp.ne.s32.totalorder %s160, %s161
      %p170 = scmp.eq.s32.totalorder %s26, 0
      %p171 = por %p169, %p170
      %p172 = scmp.ne.s32.totalorder %s160, %s161
      %p173 = scmp.eq.s32.totalorder %s27, 3
      %p174 = por %p172, %p173
      %p176 = scmp.ne.s32.totalorder %s161, %s175
      %p177 = scmp.eq.s32.totalorder %s27, 0
      %p178 = por %p176, %p177
      %s179 = ssub.s32 %s28, %s40
      %p180 = scmp.eq.s32.totalorder %s179, 0
      %s182 = sadd.s32 %s181, 1
      %s183 = scalar_select %p180, %s181, %s182
      %p186 = pneg %p180
      %p187 = scmp.eq.s32.totalorder %s21, 3
      %p188 = por %p186, %p187
      %p189 = scmp.ne.s32.totalorder %s181, %s184
      %p190 = scmp.eq.s32.totalorder %s21, 0
      %p191 = por %p189, %p190
      %p192 = scmp.ne.s32.totalorder %s181, %s184
      %p193 = scmp.eq.s32.totalorder %s26, 3
      %p194 = por %p192, %p193
      %p195 = scmp.ne.s32.totalorder %s184, %s185
      %p196 = scmp.eq.s32.totalorder %s26, 0
      %p197 = por %p195, %p196
      %p198 = scmp.ne.s32.totalorder %s184, %s185
      %p199 = scmp.eq.s32.totalorder %s27, 3
      %p200 = por %p198, %p199
      %p202 = scmp.ne.s32.totalorder %s185, %s201
      %p203 = scmp.eq.s32.totalorder %s27, 0
      %p204 = por %p202, %p203
      %p205 = scmp.le.s32.totalorder 1, %s21
      %p206 = scmp.lt.s32.totalorder %s21, 5
      %p207 = pnand %p205, %p206
      %p208 = pneg %p207
      // Predicated region
      $region9: #{tpu_custom_call.1} parent=5 // pred_check
        _
      $region10: #{tpu_custom_call.1} parent=5 // pred_check_branch
        %210 = sbr.rel (%p207) target = $region12
      $region11: #{tpu_custom_call.1} parent=5 // pred_region
        %s211 = ssub.s32 %s21, 1
        // Predicated region
        $region13: #{tpu_custom_call.1} parent=11 // pred_check
          %p212 = pneg %p108
        $region14: #{tpu_custom_call.1} parent=11 // pred_check_branch
          %214 = sbr.rel (%p212) target = $region16
        $region15: #{tpu_custom_call.1} parent=11 // pred_region
          %s216 = ssub.s32 32, 32
          %217 = vsyncadd [#allocation7], %s216
          %s219 = sshll.u32 [#allocation8], 4
          %s220 = int_to_ptr.vmem [resolvable:$true] %s219
          %222 = dma.hbm_to_vmem [thread:$0]  %s2, 32, %s220, [#allocation7]
        $region16: #{tpu_custom_call.1} parent=11 // pred_fallthru
          _
        // Predicated region
        $region17: #{tpu_custom_call.1} parent=11 // pred_check
          %p223 = pneg %p129
        $region18: #{tpu_custom_call.1} parent=11 // pred_check_branch
          %225 = sbr.rel (%p223) target = $region20
        $region19: #{tpu_custom_call.1} parent=11 // pred_region
          %s227 = ssub.s32 32, 32
          %228 = vsyncadd [#allocation10], %s227
          %s230 = sshll.u32 [#allocation9], 4
          %s231 = int_to_ptr.vmem [resolvable:$true] %s230
          %233 = dma.hbm_to_vmem [thread:$0]  %s3, 32, %s231, [#allocation10]
        $region20: #{tpu_custom_call.1} parent=11 // pred_fallthru
          _
        // Predicated region
        $region21: #{tpu_custom_call.1} parent=11 // pred_check
          %p234 = pneg %p150
        $region22: #{tpu_custom_call.1} parent=11 // pred_check_branch
          %236 = sbr.rel (%p234) target = $region24
        $region23: #{tpu_custom_call.1} parent=11 // pred_region
          %s238 = ssub.s32 2048, 2048
          %239 = vsyncadd [#allocation10], %s238
          %s240 = sshll.u32 [#allocation11], 4
          %s241 = int_to_ptr.vmem [resolvable:$true] %s240
          %246 = dma.hbm_to_vmem [thread:$0]  %s4, 2048, %s241, [#allocation10], 64, 64, 4
        $region24: #{tpu_custom_call.1} parent=11 // pred_fallthru
          _
        // Predicated region
        $region25: #{tpu_custom_call.1} parent=11 // pred_check
          %p247 = pneg %p171
        $region26: #{tpu_custom_call.1} parent=11 // pred_check_branch
          %249 = sbr.rel (%p247) target = $region28
        $region27: #{tpu_custom_call.1} parent=11 // pred_region
          %s251 = ssub.s32 16, 16
          %252 = vsyncadd [#allocation13], %s251
          %s254 = sshll.u32 [#allocation12], 4
          %s255 = int_to_ptr.vmem [resolvable:$true] %s254
          %257 = dma.hbm_to_vmem [thread:$0]  %s5, 16, %s255, [#allocation13]
        $region28: #{tpu_custom_call.1} parent=11 // pred_fallthru
          _
      $region12: #{tpu_custom_call.1} parent=5 // pred_fallthru
        _
      %p258 = scmp.lt.s32.totalorder %s21, 4
      // Predicated region
      $region29: #{tpu_custom_call.1} parent=5 // pred_check
        %p259 = pneg %p258
      $region30: #{tpu_custom_call.1} parent=5 // pred_check_branch
        %261 = sbr.rel (%p259) target = $region32
      $region31: #{tpu_custom_call.1} parent=5 // pred_region
        // Predicated region
        $region33: #{tpu_custom_call.1} parent=31 // pred_check
          %p262 = pneg %p55
        $region34: #{tpu_custom_call.1} parent=31 // pred_check_branch
          %264 = sbr.rel (%p262) target = $region36
        $region35: #{tpu_custom_call.1} parent=31 // pred_region
          %s265 = sand.u32 %s45, 1
          %s266 = scalar_lea.sflag [#allocation4], %s265
          %s267 = sand.u32 %s45, 1
          %s268 = smul.addr %s267, 576
          %s269 = scalar_lea.vmem [#allocation3], %s268
          %s270 = smul.u32 4, %s28
          %s271 = smul.u32 36, %s29
          %s273 = ssub.s32 9216, 9216
          %274 = vsyncadd %s266, %s273
          %s275 = smul.addr %s270, 144
          %s276 = sadd.s32 %s271, %s275
          %s277 = smul.addr %s276, 64
          %s278 = scalar_lea.hbm %s0, %s277
          %s279 = sshll.u32 %s269, 4
          %s280 = int_to_ptr.vmem [resolvable:$true] %s279
          %285 = dma.hbm_to_vmem [thread:$0]  %s278, 9216, %s280, %s266, 9216, 2304, 144
        $region36: #{tpu_custom_call.1} parent=31 // pred_fallthru
          _
        // Predicated region
        $region37: #{tpu_custom_call.1} parent=31 // pred_check
          %p286 = pneg %p81
        $region38: #{tpu_custom_call.1} parent=31 // pred_check_branch
          %288 = sbr.rel (%p286) target = $region40
        $region39: #{tpu_custom_call.1} parent=31 // pred_region
          %s289 = sand.u32 %s21, 1
          %s290 = scalar_lea.sflag [#allocation7], %s289
          %s291 = sand.u32 %s71, 1
          %s292 = smul.addr %s291, 4608
          %s293 = scalar_lea.vmem [#allocation6], %s292
          %s294 = smul.u32 576, %s29
          %s296 = ssub.s32 73728, 73728
          %297 = vsyncadd %s290, %s296
          %s298 = smul.addr %s294, 2
          %s299 = smul.addr %s298, 64
          %s300 = scalar_lea.hbm %s1, %s299
          %s301 = sshll.u32 %s293, 4
          %s302 = int_to_ptr.vmem [resolvable:$true] %s301
          %307 = dma.hbm_to_vmem [thread:$0]  %s300, 73728, %s302, %s290, 128, 128, 8
        $region40: #{tpu_custom_call.1} parent=31 // pred_fallthru
          _
      $region32: #{tpu_custom_call.1} parent=5 // pred_fallthru
        _
      %p308 = scmp.le.s32.totalorder 1, %s21
      %p309 = scmp.lt.s32.totalorder %s21, 5
      %p310 = pnand %p308, %p309
      %p311 = pneg %p310
      // Predicated region
      $region41: #{tpu_custom_call.1} parent=5 // pred_check
        _
      $region42: #{tpu_custom_call.1} parent=5 // pred_check_branch
        %313 = sbr.rel (%p310) target = $region44
      $region43: #{tpu_custom_call.1} parent=5 // pred_region
        %s314 = ssub.s32 %s21, 1
        %s315 = sand.u32 %s48, 1
        %s316 = scalar_lea.sflag [#allocation4], %s315
        %s317 = sand.u32 %s48, 1
        %s318 = smul.addr %s317, 576
        %s319 = scalar_lea.vmem [#allocation3], %s318
        // Predicated region
        $region45: #{tpu_custom_call.1} parent=43 // pred_check
          %p320 = pneg %p61
        $region46: #{tpu_custom_call.1} parent=43 // pred_check_branch
          %322 = sbr.rel (%p320) target = $region48
        $region47: #{tpu_custom_call.1} parent=43 // pred_region
          %323 = dma.done %s316, 9216
        $region48: #{tpu_custom_call.1} parent=43 // pred_fallthru
          _
        %s324 = sand.u32 %s26, 1
        %s325 = scalar_lea.sflag [#allocation7], %s324
        %s326 = sand.u32 %s74, 1
        %s327 = smul.addr %s326, 4608
        %s328 = scalar_lea.vmem [#allocation6], %s327
        // Predicated region
        $region49: #{tpu_custom_call.1} parent=43 // pred_check
          %p329 = pneg %p87
        $region50: #{tpu_custom_call.1} parent=43 // pred_check_branch
          %331 = sbr.rel (%p329) target = $region52
        $region51: #{tpu_custom_call.1} parent=43 // pred_region
          %332 = dma.done %s325, 73728
        $region52: #{tpu_custom_call.1} parent=43 // pred_fallthru
          _
        // Predicated region
        $region53: #{tpu_custom_call.1} parent=43 // pred_check
          %p333 = pneg %p108
        $region54: #{tpu_custom_call.1} parent=43 // pred_check_branch
          %335 = sbr.rel (%p333) target = $region56
        $region55: #{tpu_custom_call.1} parent=43 // pred_region
          %336 = dma.done [#allocation7], 32
        $region56: #{tpu_custom_call.1} parent=43 // pred_fallthru
          _
        // Predicated region
        $region57: #{tpu_custom_call.1} parent=43 // pred_check
          %p337 = pneg %p129
        $region58: #{tpu_custom_call.1} parent=43 // pred_check_branch
          %339 = sbr.rel (%p337) target = $region60
        $region59: #{tpu_custom_call.1} parent=43 // pred_region
          %340 = dma.done [#allocation10], 32
        $region60: #{tpu_custom_call.1} parent=43 // pred_fallthru
          _
        // Predicated region
        $region61: #{tpu_custom_call.1} parent=43 // pred_check
          %p341 = pneg %p150
        $region62: #{tpu_custom_call.1} parent=43 // pred_check_branch
          %343 = sbr.rel (%p341) target = $region64
        $region63: #{tpu_custom_call.1} parent=43 // pred_region
          %344 = dma.done [#allocation10], 2048
        $region64: #{tpu_custom_call.1} parent=43 // pred_fallthru
          _
        // Predicated region
        $region65: #{tpu_custom_call.1} parent=43 // pred_check
          %p345 = pneg %p171
        $region66: #{tpu_custom_call.1} parent=43 // pred_check_branch
          %347 = sbr.rel (%p345) target = $region68
        $region67: #{tpu_custom_call.1} parent=43 // pred_region
          %348 = dma.done [#allocation13], 16
        $region68: #{tpu_custom_call.1} parent=43 // pred_fallthru
          _
        %s349 = sand.u32 %s48, 1
        %s350 = scalar_lea.sflag [#allocation4], %s349
        %s351 = sand.u32 %s48, 1
        %s352 = smul.addr %s351, 576
        %s353 = scalar_lea.vmem [#allocation3], %s352
        %p354 = pneg %p61
        %p355 = pneg %p58
        %s356 = sand.u32 %s26, 1
        %s357 = scalar_lea.sflag [#allocation7], %s356
        %s358 = sand.u32 %s74, 1
        %s359 = smul.addr %s358, 4608
        %s360 = scalar_lea.vmem [#allocation6], %s359
        %p361 = pneg %p87
        %p362 = pneg %p84
        %p363 = pneg %p108
        %p364 = pneg %p105
        %p365 = pneg %p129
        %p366 = pneg %p126
        %p367 = pneg %p150
        %p368 = pneg %p147
        %p369 = pneg %p171
        %p370 = pneg %p168
        %p371 = pneg %p197
        %p372 = pneg %p194
        %s373 = smul.u32 4, %s30
        %s374 = smul.u32 36, %s31
        %s375 = smul.u32 576, %s31
        %s376 = smul.u32 4, %s30
        %p378 = scmp.eq.s32.totalorder %s31, 0
        // Predicated region
        $region69: #{tpu_custom_call.1} parent=43 // pred_check
          %p379 = pneg %p378
        $region70: #{tpu_custom_call.1} parent=43 // pred_check_branch
          %381 = sbr.rel (%p379) target = $region72
        $region71: #{tpu_custom_call.1} parent=43 // pred_region
          %382 = vst [vmem:[#allocation2] sm:$0xff] 0.0
          %383 = vst [vmem:[#allocation2 + $0x8] sm:$0xff] 0.0
          %384 = vst [vmem:[#allocation2 + $0x10] sm:$0xff] 0.0
          %385 = vst [vmem:[#allocation2 + $0x18] sm:$0xff] 0.0
          %386 = vst [vmem:[#allocation2 + $0x20] sm:$0xff] 0.0
          %387 = vst [vmem:[#allocation2 + $0x28] sm:$0xff] 0.0
          %388 = vst [vmem:[#allocation2 + $0x30] sm:$0xff] 0.0
          %389 = vst [vmem:[#allocation2 + $0x38] sm:$0xff] 0.0
        $region72: #{tpu_custom_call.1} parent=43 // pred_fallthru
          _
        %v390 = vld [vmem:[#allocation2] sm:$0xff]
        %v391 = vld [vmem:[#allocation2 + $0x8] sm:$0xff]
        %v392 = vld [vmem:[#allocation2 + $0x10] sm:$0xff]
        %v393 = vld [vmem:[#allocation2 + $0x18] sm:$0xff]
        %v394 = vld [vmem:[#allocation2 + $0x20] sm:$0xff]
        %v395 = vld [vmem:[#allocation2 + $0x28] sm:$0xff]
        %v396 = vld [vmem:[#allocation2 + $0x30] sm:$0xff]
        %v397 = vld [vmem:[#allocation2 + $0x38] sm:$0xff]
        %v398 = vld [vmem:[%s319] sm:$0xff]
        %v399 = vld [vmem:[%s319 + $0x8] sm:$0xff]
        %v400 = vld [vmem:[%s319 + $0x10] sm:$0xff]
        %v401 = vld [vmem:[%s319 + $0x18] sm:$0xff]
        %v402 = vld [vmem:[%s319 + $0x20] sm:$0xff]
        %v403 = vld [vmem:[%s319 + $0x28] sm:$0xff]
        %v404 = vld [vmem:[%s319 + $0x30] sm:$0xff]
        %v405 = vld [vmem:[%s319 + $0x38] sm:$0xff]
        %v406 = vld [vmem:[%s319 + $0x40] sm:$0xff]
        %v407 = vld [vmem:[%s319 + $0x48] sm:$0xff]
        %v408 = vld [vmem:[%s319 + $0x50] sm:$0xff]
        %v409 = vld [vmem:[%s319 + $0x58] sm:$0xff]
        %v410 = vld [vmem:[%s319 + $0x60] sm:$0xff]
        %v411 = vld [vmem:[%s319 + $0x68] sm:$0xff]
        %v412 = vld [vmem:[%s319 + $0x70] sm:$0xff]
        %v413 = vld [vmem:[%s319 + $0x78] sm:$0xff]
        %v414 = vld [vmem:[%s319 + $0x80] sm:$0xff]
        %v415 = vld [vmem:[%s319 + $0x88] sm:$0xff]
        %v416 = vld [vmem:[%s319 + $0x90] sm:$0xff]
        %v417 = vld [vmem:[%s319 + $0x98] sm:$0xff]
        %v418 = vld [vmem:[%s319 + $0xa0] sm:$0xff]
        %v419 = vld [vmem:[%s319 + $0xa8] sm:$0xff]
        %v420 = vld [vmem:[%s319 + $0xb0] sm:$0xff]
        %v421 = vld [vmem:[%s319 + $0xb8] sm:$0xff]
        %v422 = vld [vmem:[%s319 + $0xc0] sm:$0xff]
        %v423 = vld [vmem:[%s319 + $0xc8] sm:$0xff]
        %v424 = vld [vmem:[%s319 + $0xd0] sm:$0xff]
        %v425 = vld [vmem:[%s319 + $0xd8] sm:$0xff]
        %v426 = vld [vmem:[%s319 + $0xe0] sm:$0xff]
        %v427 = vld [vmem:[%s319 + $0xe8] sm:$0xff]
        %v428 = vld [vmem:[%s319 + $0xf0] sm:$0xff]
        %v429 = vld [vmem:[%s319 + $0xf8] sm:$0xff]
        %v430 = vld [vmem:[%s319 + $0x100] sm:$0xff]
        %v431 = vld [vmem:[%s319 + $0x108] sm:$0xff]
        %v432 = vld [vmem:[%s319 + $0x110] sm:$0xff]
        %v433 = vld [vmem:[%s319 + $0x118] sm:$0xff]
        %v434 = vld [vmem:[%s319 + $0x120] sm:$0xff]
        %v435 = vld [vmem:[%s319 + $0x128] sm:$0xff]
        %v436 = vld [vmem:[%s319 + $0x130] sm:$0xff]
        %v437 = vld [vmem:[%s319 + $0x138] sm:$0xff]
        %v438 = vld [vmem:[%s319 + $0x140] sm:$0xff]
        %v439 = vld [vmem:[%s319 + $0x148] sm:$0xff]
        %v440 = vld [vmem:[%s319 + $0x150] sm:$0xff]
        %v441 = vld [vmem:[%s319 + $0x158] sm:$0xff]
        %v442 = vld [vmem:[%s319 + $0x160] sm:$0xff]
        %v443 = vld [vmem:[%s319 + $0x168] sm:$0xff]
        %v444 = vld [vmem:[%s319 + $0x170] sm:$0xff]
        %v445 = vld [vmem:[%s319 + $0x178] sm:$0xff]
        %v446 = vld [vmem:[%s319 + $0x180] sm:$0xff]
        %v447 = vld [vmem:[%s319 + $0x188] sm:$0xff]
        %v448 = vld [vmem:[%s319 + $0x190] sm:$0xff]
        %v449 = vld [vmem:[%s319 + $0x198] sm:$0xff]
        %v450 = vld [vmem:[%s319 + $0x1a0] sm:$0xff]
        %v451 = vld [vmem:[%s319 + $0x1a8] sm:$0xff]
        %v452 = vld [vmem:[%s319 + $0x1b0] sm:$0xff]
        %v453 = vld [vmem:[%s319 + $0x1b8] sm:$0xff]
        %v454 = vld [vmem:[%s319 + $0x1c0] sm:$0xff]
        %v455 = vld [vmem:[%s319 + $0x1c8] sm:$0xff]
        %v456 = vld [vmem:[%s319 + $0x1d0] sm:$0xff]
        %v457 = vld [vmem:[%s319 + $0x1d8] sm:$0xff]
        %v458 = vld [vmem:[%s319 + $0x1e0] sm:$0xff]
        %v459 = vld [vmem:[%s319 + $0x1e8] sm:$0xff]
        %v460 = vld [vmem:[%s319 + $0x1f0] sm:$0xff]
        %v461 = vld [vmem:[%s319 + $0x1f8] sm:$0xff]
        %v462 = vld [vmem:[%s319 + $0x200] sm:$0xff]
        %v463 = vld [vmem:[%s319 + $0x208] sm:$0xff]
        %v464 = vld [vmem:[%s319 + $0x210] sm:$0xff]
        %v465 = vld [vmem:[%s319 + $0x218] sm:$0xff]
        %v466 = vld [vmem:[%s319 + $0x220] sm:$0xff]
        %v467 = vld [vmem:[%s319 + $0x228] sm:$0xff]
        %v468 = vld [vmem:[%s319 + $0x230] sm:$0xff]
        %v469 = vld [vmem:[%s319 + $0x238] sm:$0xff]
        %v470 = vld [vmem:[%s328] sm:$0xff]
        %v471 = vld [vmem:[%s328 + $0x8] sm:$0xff]
        %v472 = vld [vmem:[%s328 + $0x10] sm:$0xff]
        %v473 = vld [vmem:[%s328 + $0x18] sm:$0xff]
        %v474 = vld [vmem:[%s328 + $0x20] sm:$0xff]
        %v475 = vld [vmem:[%s328 + $0x28] sm:$0xff]
        %v476 = vld [vmem:[%s328 + $0x30] sm:$0xff]
        %v477 = vld [vmem:[%s328 + $0x38] sm:$0xff]
        %v478 = vld [vmem:[%s328 + $0x40] sm:$0xff]
        %v479 = vld [vmem:[%s328 + $0x48] sm:$0xff]
        %v480 = vld [vmem:[%s328 + $0x50] sm:$0xff]
        %v481 = vld [vmem:[%s328 + $0x58] sm:$0xff]
        %v482 = vld [vmem:[%s328 + $0x60] sm:$0xff]
        %v483 = vld [vmem:[%s328 + $0x68] sm:$0xff]
        %v484 = vld [vmem:[%s328 + $0x70] sm:$0xff]
        %v485 = vld [vmem:[%s328 + $0x78] sm:$0xff]
        %v486 = vld [vmem:[%s328 + $0x80] sm:$0xff]
        %v487 = vld [vmem:[%s328 + $0x88] sm:$0xff]
        %v488 = vld [vmem:[%s328 + $0x90] sm:$0xff]
        %v489 = vld [vmem:[%s328 + $0x98] sm:$0xff]
        %v490 = vld [vmem:[%s328 + $0xa0] sm:$0xff]
        %v491 = vld [vmem:[%s328 + $0xa8] sm:$0xff]
        %v492 = vld [vmem:[%s328 + $0xb0] sm:$0xff]
        %v493 = vld [vmem:[%s328 + $0xb8] sm:$0xff]
        %v494 = vld [vmem:[%s328 + $0xc0] sm:$0xff]
        %v495 = vld [vmem:[%s328 + $0xc8] sm:$0xff]
        %v496 = vld [vmem:[%s328 + $0xd0] sm:$0xff]
        %v497 = vld [vmem:[%s328 + $0xd8] sm:$0xff]
        %v498 = vld [vmem:[%s328 + $0xe0] sm:$0xff]
        %v499 = vld [vmem:[%s328 + $0xe8] sm:$0xff]
        %v500 = vld [vmem:[%s328 + $0xf0] sm:$0xff]
        %v501 = vld [vmem:[%s328 + $0xf8] sm:$0xff]
        %v502 = vld [vmem:[%s328 + $0x100] sm:$0xff]
        %v503 = vld [vmem:[%s328 + $0x108] sm:$0xff]
        %v504 = vld [vmem:[%s328 + $0x110] sm:$0xff]
        %v505 = vld [vmem:[%s328 + $0x118] sm:$0xff]
        %v506 = vld [vmem:[%s328 + $0x120] sm:$0xff]
        %v507 = vld [vmem:[%s328 + $0x128] sm:$0xff]
        %v508 = vld [vmem:[%s328 + $0x130] sm:$0xff]
        %v509 = vld [vmem:[%s328 + $0x138] sm:$0xff]
        %v510 = vld [vmem:[%s328 + $0x140] sm:$0xff]
        %v511 = vld [vmem:[%s328 + $0x148] sm:$0xff]
        %v512 = vld [vmem:[%s328 + $0x150] sm:$0xff]
        %v513 = vld [vmem:[%s328 + $0x158] sm:$0xff]
        %v514 = vld [vmem:[%s328 + $0x160] sm:$0xff]
        %v515 = vld [vmem:[%s328 + $0x168] sm:$0xff]
        %v516 = vld [vmem:[%s328 + $0x170] sm:$0xff]
        %v517 = vld [vmem:[%s328 + $0x178] sm:$0xff]
        %v518 = vld [vmem:[%s328 + $0x180] sm:$0xff]
        %v519 = vld [vmem:[%s328 + $0x188] sm:$0xff]
        %v520 = vld [vmem:[%s328 + $0x190] sm:$0xff]
        %v521 = vld [vmem:[%s328 + $0x198] sm:$0xff]
        %v522 = vld [vmem:[%s328 + $0x1a0] sm:$0xff]
        %v523 = vld [vmem:[%s328 + $0x1a8] sm:$0xff]
        %v524 = vld [vmem:[%s328 + $0x1b0] sm:$0xff]
        %v525 = vld [vmem:[%s328 + $0x1b8] sm:$0xff]
        %v526 = vld [vmem:[%s328 + $0x1c0] sm:$0xff]
        %v527 = vld [vmem:[%s328 + $0x1c8] sm:$0xff]
        %v528 = vld [vmem:[%s328 + $0x1d0] sm:$0xff]
        %v529 = vld [vmem:[%s328 + $0x1d8] sm:$0xff]
        %v530 = vld [vmem:[%s328 + $0x1e0] sm:$0xff]
        %v531 = vld [vmem:[%s328 + $0x1e8] sm:$0xff]
        %v532 = vld [vmem:[%s328 + $0x1f0] sm:$0xff]
        %v533 = vld [vmem:[%s328 + $0x1f8] sm:$0xff]
        %v534 = vld [vmem:[%s328 + $0x200] sm:$0xff]
        %v535 = vld [vmem:[%s328 + $0x208] sm:$0xff]
        %v536 = vld [vmem:[%s328 + $0x210] sm:$0xff]
        %v537 = vld [vmem:[%s328 + $0x218] sm:$0xff]
        %v538 = vld [vmem:[%s328 + $0x220] sm:$0xff]
        %v539 = vld [vmem:[%s328 + $0x228] sm:$0xff]
        %v540 = vld [vmem:[%s328 + $0x230] sm:$0xff]
        %v541 = vld [vmem:[%s328 + $0x238] sm:$0xff]
        %v542 = vld [vmem:[%s328 + $0x240] sm:$0xff]
        %v543 = vld [vmem:[%s328 + $0x248] sm:$0xff]
        %v544 = vld [vmem:[%s328 + $0x250] sm:$0xff]
        %v545 = vld [vmem:[%s328 + $0x258] sm:$0xff]
        %v546 = vld [vmem:[%s328 + $0x260] sm:$0xff]
        %v547 = vld [vmem:[%s328 + $0x268] sm:$0xff]
        %v548 = vld [vmem:[%s328 + $0x270] sm:$0xff]
        %v549 = vld [vmem:[%s328 + $0x278] sm:$0xff]
        %v550 = vld [vmem:[%s328 + $0x280] sm:$0xff]
        %v551 = vld [vmem:[%s328 + $0x288] sm:$0xff]
        %v552 = vld [vmem:[%s328 + $0x290] sm:$0xff]
        %v553 = vld [vmem:[%s328 + $0x298] sm:$0xff]
        %v554 = vld [vmem:[%s328 + $0x2a0] sm:$0xff]
        %v555 = vld [vmem:[%s328 + $0x2a8] sm:$0xff]
        %v556 = vld [vmem:[%s328 + $0x2b0] sm:$0xff]
        %v557 = vld [vmem:[%s328 + $0x2b8] sm:$0xff]
        %v558 = vld [vmem:[%s328 + $0x2c0] sm:$0xff]
        %v559 = vld [vmem:[%s328 + $0x2c8] sm:$0xff]
        %v560 = vld [vmem:[%s328 + $0x2d0] sm:$0xff]
        %v561 = vld [vmem:[%s328 + $0x2d8] sm:$0xff]
        %v562 = vld [vmem:[%s328 + $0x2e0] sm:$0xff]
        %v563 = vld [vmem:[%s328 + $0x2e8] sm:$0xff]
        %v564 = vld [vmem:[%s328 + $0x2f0] sm:$0xff]
        %v565 = vld [vmem:[%s328 + $0x2f8] sm:$0xff]
        %v566 = vld [vmem:[%s328 + $0x300] sm:$0xff]
        %v567 = vld [vmem:[%s328 + $0x308] sm:$0xff]
        %v568 = vld [vmem:[%s328 + $0x310] sm:$0xff]
        %v569 = vld [vmem:[%s328 + $0x318] sm:$0xff]
        %v570 = vld [vmem:[%s328 + $0x320] sm:$0xff]
        %v571 = vld [vmem:[%s328 + $0x328] sm:$0xff]
        %v572 = vld [vmem:[%s328 + $0x330] sm:$0xff]
        %v573 = vld [vmem:[%s328 + $0x338] sm:$0xff]
        %v574 = vld [vmem:[%s328 + $0x340] sm:$0xff]
        %v575 = vld [vmem:[%s328 + $0x348] sm:$0xff]
        %v576 = vld [vmem:[%s328 + $0x350] sm:$0xff]
        %v577 = vld [vmem:[%s328 + $0x358] sm:$0xff]
        %v578 = vld [vmem:[%s328 + $0x360] sm:$0xff]
        %v579 = vld [vmem:[%s328 + $0x368] sm:$0xff]
        %v580 = vld [vmem:[%s328 + $0x370] sm:$0xff]
        %v581 = vld [vmem:[%s328 + $0x378] sm:$0xff]
        %v582 = vld [vmem:[%s328 + $0x380] sm:$0xff]
        %v583 = vld [vmem:[%s328 + $0x388] sm:$0xff]
        %v584 = vld [vmem:[%s328 + $0x390] sm:$0xff]
        %v585 = vld [vmem:[%s328 + $0x398] sm:$0xff]
        %v586 = vld [vmem:[%s328 + $0x3a0] sm:$0xff]
        %v587 = vld [vmem:[%s328 + $0x3a8] sm:$0xff]
        %v588 = vld [vmem:[%s328 + $0x3b0] sm:$0xff]
        %v589 = vld [vmem:[%s328 + $0x3b8] sm:$0xff]
        %v590 = vld [vmem:[%s328 + $0x3c0] sm:$0xff]
        %v591 = vld [vmem:[%s328 + $0x3c8] sm:$0xff]
        %v592 = vld [vmem:[%s328 + $0x3d0] sm:$0xff]
        %v593 = vld [vmem:[%s328 + $0x3d8] sm:$0xff]
        %v594 = vld [vmem:[%s328 + $0x3e0] sm:$0xff]
        %v595 = vld [vmem:[%s328 + $0x3e8] sm:$0xff]
        %v596 = vld [vmem:[%s328 + $0x3f0] sm:$0xff]
        %v597 = vld [vmem:[%s328 + $0x3f8] sm:$0xff]
        %v598 = vld [vmem:[%s328 + $0x400] sm:$0xff]
        %v599 = vld [vmem:[%s328 + $0x408] sm:$0xff]
        %v600 = vld [vmem:[%s328 + $0x410] sm:$0xff]
        %v601 = vld [vmem:[%s328 + $0x418] sm:$0xff]
        %v602 = vld [vmem:[%s328 + $0x420] sm:$0xff]
        %v603 = vld [vmem:[%s328 + $0x428] sm:$0xff]
        %v604 = vld [vmem:[%s328 + $0x430] sm:$0xff]
        %v605 = vld [vmem:[%s328 + $0x438] sm:$0xff]
        %v606 = vld [vmem:[%s328 + $0x440] sm:$0xff]
        %v607 = vld [vmem:[%s328 + $0x448] sm:$0xff]
        %v608 = vld [vmem:[%s328 + $0x450] sm:$0xff]
        %v609 = vld [vmem:[%s328 + $0x458] sm:$0xff]
        %v610 = vld [vmem:[%s328 + $0x460] sm:$0xff]
        %v611 = vld [vmem:[%s328 + $0x468] sm:$0xff]
        %v612 = vld [vmem:[%s328 + $0x470] sm:$0xff]
        %v613 = vld [vmem:[%s328 + $0x478] sm:$0xff]
        %v614 = vld [vmem:[%s328 + $0x480] sm:$0xff]
        %v615 = vld [vmem:[%s328 + $0x488] sm:$0xff]
        %v616 = vld [vmem:[%s328 + $0x490] sm:$0xff]
        %v617 = vld [vmem:[%s328 + $0x498] sm:$0xff]
        %v618 = vld [vmem:[%s328 + $0x4a0] sm:$0xff]
        %v619 = vld [vmem:[%s328 + $0x4a8] sm:$0xff]
        %v620 = vld [vmem:[%s328 + $0x4b0] sm:$0xff]
        %v621 = vld [vmem:[%s328 + $0x4b8] sm:$0xff]
        %v622 = vld [vmem:[%s328 + $0x4c0] sm:$0xff]
        %v623 = vld [vmem:[%s328 + $0x4c8] sm:$0xff]
        %v624 = vld [vmem:[%s328 + $0x4d0] sm:$0xff]
        %v625 = vld [vmem:[%s328 + $0x4d8] sm:$0xff]
        %v626 = vld [vmem:[%s328 + $0x4e0] sm:$0xff]
        %v627 = vld [vmem:[%s328 + $0x4e8] sm:$0xff]
        %v628 = vld [vmem:[%s328 + $0x4f0] sm:$0xff]
        %v629 = vld [vmem:[%s328 + $0x4f8] sm:$0xff]
        %v630 = vld [vmem:[%s328 + $0x500] sm:$0xff]
        %v631 = vld [vmem:[%s328 + $0x508] sm:$0xff]
        %v632 = vld [vmem:[%s328 + $0x510] sm:$0xff]
        %v633 = vld [vmem:[%s328 + $0x518] sm:$0xff]
        %v634 = vld [vmem:[%s328 + $0x520] sm:$0xff]
        %v635 = vld [vmem:[%s328 + $0x528] sm:$0xff]
        %v636 = vld [vmem:[%s328 + $0x530] sm:$0xff]
        %v637 = vld [vmem:[%s328 + $0x538] sm:$0xff]
        %v638 = vld [vmem:[%s328 + $0x540] sm:$0xff]
        %v639 = vld [vmem:[%s328 + $0x548] sm:$0xff]
        %v640 = vld [vmem:[%s328 + $0x550] sm:$0xff]
        %v641 = vld [vmem:[%s328 + $0x558] sm:$0xff]
        %v642 = vld [vmem:[%s328 + $0x560] sm:$0xff]
        %v643 = vld [vmem:[%s328 + $0x568] sm:$0xff]
        %v644 = vld [vmem:[%s328 + $0x570] sm:$0xff]
        %v645 = vld [vmem:[%s328 + $0x578] sm:$0xff]
        %v646 = vld [vmem:[%s328 + $0x580] sm:$0xff]
        %v647 = vld [vmem:[%s328 + $0x588] sm:$0xff]
        %v648 = vld [vmem:[%s328 + $0x590] sm:$0xff]
        %v649 = vld [vmem:[%s328 + $0x598] sm:$0xff]
        %v650 = vld [vmem:[%s328 + $0x5a0] sm:$0xff]
        %v651 = vld [vmem:[%s328 + $0x5a8] sm:$0xff]
        %v652 = vld [vmem:[%s328 + $0x5b0] sm:$0xff]
        %v653 = vld [vmem:[%s328 + $0x5b8] sm:$0xff]
        %v654 = vld [vmem:[%s328 + $0x5c0] sm:$0xff]
        %v655 = vld [vmem:[%s328 + $0x5c8] sm:$0xff]
        %v656 = vld [vmem:[%s328 + $0x5d0] sm:$0xff]
        %v657 = vld [vmem:[%s328 + $0x5d8] sm:$0xff]
        %v658 = vld [vmem:[%s328 + $0x5e0] sm:$0xff]
        %v659 = vld [vmem:[%s328 + $0x5e8] sm:$0xff]
        %v660 = vld [vmem:[%s328 + $0x5f0] sm:$0xff]
        %v661 = vld [vmem:[%s328 + $0x5f8] sm:$0xff]
        %v662 = vld [vmem:[%s328 + $0x600] sm:$0xff]
        %v663 = vld [vmem:[%s328 + $0x608] sm:$0xff]
        %v664 = vld [vmem:[%s328 + $0x610] sm:$0xff]
        %v665 = vld [vmem:[%s328 + $0x618] sm:$0xff]
        %v666 = vld [vmem:[%s328 + $0x620] sm:$0xff]
        %v667 = vld [vmem:[%s328 + $0x628] sm:$0xff]
        %v668 = vld [vmem:[%s328 + $0x630] sm:$0xff]
        %v669 = vld [vmem:[%s328 + $0x638] sm:$0xff]
        %v670 = vld [vmem:[%s328 + $0x640] sm:$0xff]
        %v671 = vld [vmem:[%s328 + $0x648] sm:$0xff]
        %v672 = vld [vmem:[%s328 + $0x650] sm:$0xff]
        %v673 = vld [vmem:[%s328 + $0x658] sm:$0xff]
        %v674 = vld [vmem:[%s328 + $0x660] sm:$0xff]
        %v675 = vld [vmem:[%s328 + $0x668] sm:$0xff]
        %v676 = vld [vmem:[%s328 + $0x670] sm:$0xff]
        %v677 = vld [vmem:[%s328 + $0x678] sm:$0xff]
        %v678 = vld [vmem:[%s328 + $0x680] sm:$0xff]
        %v679 = vld [vmem:[%s328 + $0x688] sm:$0xff]
        %v680 = vld [vmem:[%s328 + $0x690] sm:$0xff]
        %v681 = vld [vmem:[%s328 + $0x698] sm:$0xff]
        %v682 = vld [vmem:[%s328 + $0x6a0] sm:$0xff]
        %v683 = vld [vmem:[%s328 + $0x6a8] sm:$0xff]
        %v684 = vld [vmem:[%s328 + $0x6b0] sm:$0xff]
        %v685 = vld [vmem:[%s328 + $0x6b8] sm:$0xff]
        %v686 = vld [vmem:[%s328 + $0x6c0] sm:$0xff]
        %v687 = vld [vmem:[%s328 + $0x6c8] sm:$0xff]
        %v688 = vld [vmem:[%s328 + $0x6d0] sm:$0xff]
        %v689 = vld [vmem:[%s328 + $0x6d8] sm:$0xff]
        %v690 = vld [vmem:[%s328 + $0x6e0] sm:$0xff]
        %v691 = vld [vmem:[%s328 + $0x6e8] sm:$0xff]
        %v692 = vld [vmem:[%s328 + $0x6f0] sm:$0xff]
        %v693 = vld [vmem:[%s328 + $0x6f8] sm:$0xff]
        %v694 = vld [vmem:[%s328 + $0x700] sm:$0xff]
        %v695 = vld [vmem:[%s328 + $0x708] sm:$0xff]
        %v696 = vld [vmem:[%s328 + $0x710] sm:$0xff]
        %v697 = vld [vmem:[%s328 + $0x718] sm:$0xff]
        %v698 = vld [vmem:[%s328 + $0x720] sm:$0xff]
        %v699 = vld [vmem:[%s328 + $0x728] sm:$0xff]
        %v700 = vld [vmem:[%s328 + $0x730] sm:$0xff]
        %v701 = vld [vmem:[%s328 + $0x738] sm:$0xff]
        %v702 = vld [vmem:[%s328 + $0x740] sm:$0xff]
        %v703 = vld [vmem:[%s328 + $0x748] sm:$0xff]
        %v704 = vld [vmem:[%s328 + $0x750] sm:$0xff]
        %v705 = vld [vmem:[%s328 + $0x758] sm:$0xff]
        %v706 = vld [vmem:[%s328 + $0x760] sm:$0xff]
        %v707 = vld [vmem:[%s328 + $0x768] sm:$0xff]
        %v708 = vld [vmem:[%s328 + $0x770] sm:$0xff]
        %v709 = vld [vmem:[%s328 + $0x778] sm:$0xff]
        %v710 = vld [vmem:[%s328 + $0x780] sm:$0xff]
        %v711 = vld [vmem:[%s328 + $0x788] sm:$0xff]
        %v712 = vld [vmem:[%s328 + $0x790] sm:$0xff]
        %v713 = vld [vmem:[%s328 + $0x798] sm:$0xff]
        %v714 = vld [vmem:[%s328 + $0x7a0] sm:$0xff]
        %v715 = vld [vmem:[%s328 + $0x7a8] sm:$0xff]
        %v716 = vld [vmem:[%s328 + $0x7b0] sm:$0xff]
        %v717 = vld [vmem:[%s328 + $0x7b8] sm:$0xff]
        %v718 = vld [vmem:[%s328 + $0x7c0] sm:$0xff]
        %v719 = vld [vmem:[%s328 + $0x7c8] sm:$0xff]
        %v720 = vld [vmem:[%s328 + $0x7d0] sm:$0xff]
        %v721 = vld [vmem:[%s328 + $0x7d8] sm:$0xff]
        %v722 = vld [vmem:[%s328 + $0x7e0] sm:$0xff]
        %v723 = vld [vmem:[%s328 + $0x7e8] sm:$0xff]
        %v724 = vld [vmem:[%s328 + $0x7f0] sm:$0xff]
        %v725 = vld [vmem:[%s328 + $0x7f8] sm:$0xff]
        %v726 = vld [vmem:[%s328 + $0x800] sm:$0xff]
        %v727 = vld [vmem:[%s328 + $0x808] sm:$0xff]
        %v728 = vld [vmem:[%s328 + $0x810] sm:$0xff]
        %v729 = vld [vmem:[%s328 + $0x818] sm:$0xff]
        %v730 = vld [vmem:[%s328 + $0x820] sm:$0xff]
        %v731 = vld [vmem:[%s328 + $0x828] sm:$0xff]
        %v732 = vld [vmem:[%s328 + $0x830] sm:$0xff]
        %v733 = vld [vmem:[%s328 + $0x838] sm:$0xff]
        %v734 = vld [vmem:[%s328 + $0x840] sm:$0xff]
        %v735 = vld [vmem:[%s328 + $0x848] sm:$0xff]
        %v736 = vld [vmem:[%s328 + $0x850] sm:$0xff]
        %v737 = vld [vmem:[%s328 + $0x858] sm:$0xff]
        %v738 = vld [vmem:[%s328 + $0x860] sm:$0xff]
        %v739 = vld [vmem:[%s328 + $0x868] sm:$0xff]
        %v740 = vld [vmem:[%s328 + $0x870] sm:$0xff]
        %v741 = vld [vmem:[%s328 + $0x878] sm:$0xff]
        %v742 = vld [vmem:[%s328 + $0x880] sm:$0xff]
        %v743 = vld [vmem:[%s328 + $0x888] sm:$0xff]
        %v744 = vld [vmem:[%s328 + $0x890] sm:$0xff]
        %v745 = vld [vmem:[%s328 + $0x898] sm:$0xff]
        %v746 = vld [vmem:[%s328 + $0x8a0] sm:$0xff]
        %v747 = vld [vmem:[%s328 + $0x8a8] sm:$0xff]
        %v748 = vld [vmem:[%s328 + $0x8b0] sm:$0xff]
        %v749 = vld [vmem:[%s328 + $0x8b8] sm:$0xff]
        %v750 = vld [vmem:[%s328 + $0x8c0] sm:$0xff]
        %v751 = vld [vmem:[%s328 + $0x8c8] sm:$0xff]
        %v752 = vld [vmem:[%s328 + $0x8d0] sm:$0xff]
        %v753 = vld [vmem:[%s328 + $0x8d8] sm:$0xff]
        %v754 = vld [vmem:[%s328 + $0x8e0] sm:$0xff]
        %v755 = vld [vmem:[%s328 + $0x8e8] sm:$0xff]
        %v756 = vld [vmem:[%s328 + $0x8f0] sm:$0xff]
        %v757 = vld [vmem:[%s328 + $0x8f8] sm:$0xff]
        %v758 = vld [vmem:[%s328 + $0x900] sm:$0xff]
        %v759 = vld [vmem:[%s328 + $0x908] sm:$0xff]
        %v760 = vld [vmem:[%s328 + $0x910] sm:$0xff]
        %v761 = vld [vmem:[%s328 + $0x918] sm:$0xff]
        %v762 = vld [vmem:[%s328 + $0x920] sm:$0xff]
        %v763 = vld [vmem:[%s328 + $0x928] sm:$0xff]
        %v764 = vld [vmem:[%s328 + $0x930] sm:$0xff]
        %v765 = vld [vmem:[%s328 + $0x938] sm:$0xff]
        %v766 = vld [vmem:[%s328 + $0x940] sm:$0xff]
        %v767 = vld [vmem:[%s328 + $0x948] sm:$0xff]
        %v768 = vld [vmem:[%s328 + $0x950] sm:$0xff]
        %v769 = vld [vmem:[%s328 + $0x958] sm:$0xff]
        %v770 = vld [vmem:[%s328 + $0x960] sm:$0xff]
        %v771 = vld [vmem:[%s328 + $0x968] sm:$0xff]
        %v772 = vld [vmem:[%s328 + $0x970] sm:$0xff]
        %v773 = vld [vmem:[%s328 + $0x978] sm:$0xff]
        %v774 = vld [vmem:[%s328 + $0x980] sm:$0xff]
        %v775 = vld [vmem:[%s328 + $0x988] sm:$0xff]
        %v776 = vld [vmem:[%s328 + $0x990] sm:$0xff]
        %v777 = vld [vmem:[%s328 + $0x998] sm:$0xff]
        %v778 = vld [vmem:[%s328 + $0x9a0] sm:$0xff]
        %v779 = vld [vmem:[%s328 + $0x9a8] sm:$0xff]
        %v780 = vld [vmem:[%s328 + $0x9b0] sm:$0xff]
        %v781 = vld [vmem:[%s328 + $0x9b8] sm:$0xff]
        %v782 = vld [vmem:[%s328 + $0x9c0] sm:$0xff]
        %v783 = vld [vmem:[%s328 + $0x9c8] sm:$0xff]
        %v784 = vld [vmem:[%s328 + $0x9d0] sm:$0xff]
        %v785 = vld [vmem:[%s328 + $0x9d8] sm:$0xff]
        %v786 = vld [vmem:[%s328 + $0x9e0] sm:$0xff]
        %v787 = vld [vmem:[%s328 + $0x9e8] sm:$0xff]
        %v788 = vld [vmem:[%s328 + $0x9f0] sm:$0xff]
        %v789 = vld [vmem:[%s328 + $0x9f8] sm:$0xff]
        %v790 = vld [vmem:[%s328 + $0xa00] sm:$0xff]
        %v791 = vld [vmem:[%s328 + $0xa08] sm:$0xff]
        %v792 = vld [vmem:[%s328 + $0xa10] sm:$0xff]
        %v793 = vld [vmem:[%s328 + $0xa18] sm:$0xff]
        %v794 = vld [vmem:[%s328 + $0xa20] sm:$0xff]
        %v795 = vld [vmem:[%s328 + $0xa28] sm:$0xff]
        %v796 = vld [vmem:[%s328 + $0xa30] sm:$0xff]
        %v797 = vld [vmem:[%s328 + $0xa38] sm:$0xff]
        %v798 = vld [vmem:[%s328 + $0xa40] sm:$0xff]
        %v799 = vld [vmem:[%s328 + $0xa48] sm:$0xff]
        %v800 = vld [vmem:[%s328 + $0xa50] sm:$0xff]
        %v801 = vld [vmem:[%s328 + $0xa58] sm:$0xff]
        %v802 = vld [vmem:[%s328 + $0xa60] sm:$0xff]
        %v803 = vld [vmem:[%s328 + $0xa68] sm:$0xff]
        %v804 = vld [vmem:[%s328 + $0xa70] sm:$0xff]
        %v805 = vld [vmem:[%s328 + $0xa78] sm:$0xff]
        %v806 = vld [vmem:[%s328 + $0xa80] sm:$0xff]
        %v807 = vld [vmem:[%s328 + $0xa88] sm:$0xff]
        %v808 = vld [vmem:[%s328 + $0xa90] sm:$0xff]
        %v809 = vld [vmem:[%s328 + $0xa98] sm:$0xff]
        %v810 = vld [vmem:[%s328 + $0xaa0] sm:$0xff]
        %v811 = vld [vmem:[%s328 + $0xaa8] sm:$0xff]
        %v812 = vld [vmem:[%s328 + $0xab0] sm:$0xff]
        %v813 = vld [vmem:[%s328 + $0xab8] sm:$0xff]
        %v814 = vld [vmem:[%s328 + $0xac0] sm:$0xff]
        %v815 = vld [vmem:[%s328 + $0xac8] sm:$0xff]
        %v816 = vld [vmem:[%s328 + $0xad0] sm:$0xff]
        %v817 = vld [vmem:[%s328 + $0xad8] sm:$0xff]
        %v818 = vld [vmem:[%s328 + $0xae0] sm:$0xff]
        %v819 = vld [vmem:[%s328 + $0xae8] sm:$0xff]
        %v820 = vld [vmem:[%s328 + $0xaf0] sm:$0xff]
        %v821 = vld [vmem:[%s328 + $0xaf8] sm:$0xff]
        %v822 = vld [vmem:[%s328 + $0xb00] sm:$0xff]
        %v823 = vld [vmem:[%s328 + $0xb08] sm:$0xff]
        %v824 = vld [vmem:[%s328 + $0xb10] sm:$0xff]
        %v825 = vld [vmem:[%s328 + $0xb18] sm:$0xff]
        %v826 = vld [vmem:[%s328 + $0xb20] sm:$0xff]
        %v827 = vld [vmem:[%s328 + $0xb28] sm:$0xff]
        %v828 = vld [vmem:[%s328 + $0xb30] sm:$0xff]
        %v829 = vld [vmem:[%s328 + $0xb38] sm:$0xff]
        %v830 = vld [vmem:[%s328 + $0xb40] sm:$0xff]
        %v831 = vld [vmem:[%s328 + $0xb48] sm:$0xff]
        %v832 = vld [vmem:[%s328 + $0xb50] sm:$0xff]
        %v833 = vld [vmem:[%s328 + $0xb58] sm:$0xff]
        %v834 = vld [vmem:[%s328 + $0xb60] sm:$0xff]
        %v835 = vld [vmem:[%s328 + $0xb68] sm:$0xff]
        %v836 = vld [vmem:[%s328 + $0xb70] sm:$0xff]
        %v837 = vld [vmem:[%s328 + $0xb78] sm:$0xff]
        %v838 = vld [vmem:[%s328 + $0xb80] sm:$0xff]
        %v839 = vld [vmem:[%s328 + $0xb88] sm:$0xff]
        %v840 = vld [vmem:[%s328 + $0xb90] sm:$0xff]
        %v841 = vld [vmem:[%s328 + $0xb98] sm:$0xff]
        %v842 = vld [vmem:[%s328 + $0xba0] sm:$0xff]
        %v843 = vld [vmem:[%s328 + $0xba8] sm:$0xff]
        %v844 = vld [vmem:[%s328 + $0xbb0] sm:$0xff]
        %v845 = vld [vmem:[%s328 + $0xbb8] sm:$0xff]
        %v846 = vld [vmem:[%s328 + $0xbc0] sm:$0xff]
        %v847 = vld [vmem:[%s328 + $0xbc8] sm:$0xff]
        %v848 = vld [vmem:[%s328 + $0xbd0] sm:$0xff]
        %v849 = vld [vmem:[%s328 + $0xbd8] sm:$0xff]
        %v850 = vld [vmem:[%s328 + $0xbe0] sm:$0xff]
        %v851 = vld [vmem:[%s328 + $0xbe8] sm:$0xff]
        %v852 = vld [vmem:[%s328 + $0xbf0] sm:$0xff]
        %v853 = vld [vmem:[%s328 + $0xbf8] sm:$0xff]
        %v854 = vld [vmem:[%s328 + $0xc00] sm:$0xff]
        %v855 = vld [vmem:[%s328 + $0xc08] sm:$0xff]
        %v856 = vld [vmem:[%s328 + $0xc10] sm:$0xff]
        %v857 = vld [vmem:[%s328 + $0xc18] sm:$0xff]
        %v858 = vld [vmem:[%s328 + $0xc20] sm:$0xff]
        %v859 = vld [vmem:[%s328 + $0xc28] sm:$0xff]
        %v860 = vld [vmem:[%s328 + $0xc30] sm:$0xff]
        %v861 = vld [vmem:[%s328 + $0xc38] sm:$0xff]
        %v862 = vld [vmem:[%s328 + $0xc40] sm:$0xff]
        %v863 = vld [vmem:[%s328 + $0xc48] sm:$0xff]
        %v864 = vld [vmem:[%s328 + $0xc50] sm:$0xff]
        %v865 = vld [vmem:[%s328 + $0xc58] sm:$0xff]
        %v866 = vld [vmem:[%s328 + $0xc60] sm:$0xff]
        %v867 = vld [vmem:[%s328 + $0xc68] sm:$0xff]
        %v868 = vld [vmem:[%s328 + $0xc70] sm:$0xff]
        %v869 = vld [vmem:[%s328 + $0xc78] sm:$0xff]
        %v870 = vld [vmem:[%s328 + $0xc80] sm:$0xff]
        %v871 = vld [vmem:[%s328 + $0xc88] sm:$0xff]
        %v872 = vld [vmem:[%s328 + $0xc90] sm:$0xff]
        %v873 = vld [vmem:[%s328 + $0xc98] sm:$0xff]
        %v874 = vld [vmem:[%s328 + $0xca0] sm:$0xff]
        %v875 = vld [vmem:[%s328 + $0xca8] sm:$0xff]
        %v876 = vld [vmem:[%s328 + $0xcb0] sm:$0xff]
        %v877 = vld [vmem:[%s328 + $0xcb8] sm:$0xff]
        %v878 = vld [vmem:[%s328 + $0xcc0] sm:$0xff]
        %v879 = vld [vmem:[%s328 + $0xcc8] sm:$0xff]
        %v880 = vld [vmem:[%s328 + $0xcd0] sm:$0xff]
        %v881 = vld [vmem:[%s328 + $0xcd8] sm:$0xff]
        %v882 = vld [vmem:[%s328 + $0xce0] sm:$0xff]
        %v883 = vld [vmem:[%s328 + $0xce8] sm:$0xff]
        %v884 = vld [vmem:[%s328 + $0xcf0] sm:$0xff]
        %v885 = vld [vmem:[%s328 + $0xcf8] sm:$0xff]
        %v886 = vld [vmem:[%s328 + $0xd00] sm:$0xff]
        %v887 = vld [vmem:[%s328 + $0xd08] sm:$0xff]
        %v888 = vld [vmem:[%s328 + $0xd10] sm:$0xff]
        %v889 = vld [vmem:[%s328 + $0xd18] sm:$0xff]
        %v890 = vld [vmem:[%s328 + $0xd20] sm:$0xff]
        %v891 = vld [vmem:[%s328 + $0xd28] sm:$0xff]
        %v892 = vld [vmem:[%s328 + $0xd30] sm:$0xff]
        %v893 = vld [vmem:[%s328 + $0xd38] sm:$0xff]
        %v894 = vld [vmem:[%s328 + $0xd40] sm:$0xff]
        %v895 = vld [vmem:[%s328 + $0xd48] sm:$0xff]
        %v896 = vld [vmem:[%s328 + $0xd50] sm:$0xff]
        %v897 = vld [vmem:[%s328 + $0xd58] sm:$0xff]
        %v898 = vld [vmem:[%s328 + $0xd60] sm:$0xff]
        %v899 = vld [vmem:[%s328 + $0xd68] sm:$0xff]
        %v900 = vld [vmem:[%s328 + $0xd70] sm:$0xff]
        %v901 = vld [vmem:[%s328 + $0xd78] sm:$0xff]
        %v902 = vld [vmem:[%s328 + $0xd80] sm:$0xff]
        %v903 = vld [vmem:[%s328 + $0xd88] sm:$0xff]
        %v904 = vld [vmem:[%s328 + $0xd90] sm:$0xff]
        %v905 = vld [vmem:[%s328 + $0xd98] sm:$0xff]
        %v906 = vld [vmem:[%s328 + $0xda0] sm:$0xff]
        %v907 = vld [vmem:[%s328 + $0xda8] sm:$0xff]
        %v908 = vld [vmem:[%s328 + $0xdb0] sm:$0xff]
        %v909 = vld [vmem:[%s328 + $0xdb8] sm:$0xff]
        %v910 = vld [vmem:[%s328 + $0xdc0] sm:$0xff]
        %v911 = vld [vmem:[%s328 + $0xdc8] sm:$0xff]
        %v912 = vld [vmem:[%s328 + $0xdd0] sm:$0xff]
        %v913 = vld [vmem:[%s328 + $0xdd8] sm:$0xff]
        %v914 = vld [vmem:[%s328 + $0xde0] sm:$0xff]
        %v915 = vld [vmem:[%s328 + $0xde8] sm:$0xff]
        %v916 = vld [vmem:[%s328 + $0xdf0] sm:$0xff]
        %v917 = vld [vmem:[%s328 + $0xdf8] sm:$0xff]
        %v918 = vld [vmem:[%s328 + $0xe00] sm:$0xff]
        %v919 = vld [vmem:[%s328 + $0xe08] sm:$0xff]
        %v920 = vld [vmem:[%s328 + $0xe10] sm:$0xff]
        %v921 = vld [vmem:[%s328 + $0xe18] sm:$0xff]
        %v922 = vld [vmem:[%s328 + $0xe20] sm:$0xff]
        %v923 = vld [vmem:[%s328 + $0xe28] sm:$0xff]
        %v924 = vld [vmem:[%s328 + $0xe30] sm:$0xff]
        %v925 = vld [vmem:[%s328 + $0xe38] sm:$0xff]
        %v926 = vld [vmem:[%s328 + $0xe40] sm:$0xff]
        %v927 = vld [vmem:[%s328 + $0xe48] sm:$0xff]
        %v928 = vld [vmem:[%s328 + $0xe50] sm:$0xff]
        %v929 = vld [vmem:[%s328 + $0xe58] sm:$0xff]
        %v930 = vld [vmem:[%s328 + $0xe60] sm:$0xff]
        %v931 = vld [vmem:[%s328 + $0xe68] sm:$0xff]
        %v932 = vld [vmem:[%s328 + $0xe70] sm:$0xff]
        %v933 = vld [vmem:[%s328 + $0xe78] sm:$0xff]
        %v934 = vld [vmem:[%s328 + $0xe80] sm:$0xff]
        %v935 = vld [vmem:[%s328 + $0xe88] sm:$0xff]
        %v936 = vld [vmem:[%s328 + $0xe90] sm:$0xff]
        %v937 = vld [vmem:[%s328 + $0xe98] sm:$0xff]
        %v938 = vld [vmem:[%s328 + $0xea0] sm:$0xff]
        %v939 = vld [vmem:[%s328 + $0xea8] sm:$0xff]
        %v940 = vld [vmem:[%s328 + $0xeb0] sm:$0xff]
        %v941 = vld [vmem:[%s328 + $0xeb8] sm:$0xff]
        %v942 = vld [vmem:[%s328 + $0xec0] sm:$0xff]
        %v943 = vld [vmem:[%s328 + $0xec8] sm:$0xff]
        %v944 = vld [vmem:[%s328 + $0xed0] sm:$0xff]
        %v945 = vld [vmem:[%s328 + $0xed8] sm:$0xff]
        %v946 = vld [vmem:[%s328 + $0xee0] sm:$0xff]
        %v947 = vld [vmem:[%s328 + $0xee8] sm:$0xff]
        %v948 = vld [vmem:[%s328 + $0xef0] sm:$0xff]
        %v949 = vld [vmem:[%s328 + $0xef8] sm:$0xff]
        %v950 = vld [vmem:[%s328 + $0xf00] sm:$0xff]
        %v951 = vld [vmem:[%s328 + $0xf08] sm:$0xff]
        %v952 = vld [vmem:[%s328 + $0xf10] sm:$0xff]
        %v953 = vld [vmem:[%s328 + $0xf18] sm:$0xff]
        %v954 = vld [vmem:[%s328 + $0xf20] sm:$0xff]
        %v955 = vld [vmem:[%s328 + $0xf28] sm:$0xff]
        %v956 = vld [vmem:[%s328 + $0xf30] sm:$0xff]
        %v957 = vld [vmem:[%s328 + $0xf38] sm:$0xff]
        %v958 = vld [vmem:[%s328 + $0xf40] sm:$0xff]
        %v959 = vld [vmem:[%s328 + $0xf48] sm:$0xff]
        %v960 = vld [vmem:[%s328 + $0xf50] sm:$0xff]
        %v961 = vld [vmem:[%s328 + $0xf58] sm:$0xff]
        %v962 = vld [vmem:[%s328 + $0xf60] sm:$0xff]
        %v963 = vld [vmem:[%s328 + $0xf68] sm:$0xff]
        %v964 = vld [vmem:[%s328 + $0xf70] sm:$0xff]
        %v965 = vld [vmem:[%s328 + $0xf78] sm:$0xff]
        %v966 = vld [vmem:[%s328 + $0xf80] sm:$0xff]
        %v967 = vld [vmem:[%s328 + $0xf88] sm:$0xff]
        %v968 = vld [vmem:[%s328 + $0xf90] sm:$0xff]
        %v969 = vld [vmem:[%s328 + $0xf98] sm:$0xff]
        %v970 = vld [vmem:[%s328 + $0xfa0] sm:$0xff]
        %v971 = vld [vmem:[%s328 + $0xfa8] sm:$0xff]
        %v972 = vld [vmem:[%s328 + $0xfb0] sm:$0xff]
        %v973 = vld [vmem:[%s328 + $0xfb8] sm:$0xff]
        %v974 = vld [vmem:[%s328 + $0xfc0] sm:$0xff]
        %v975 = vld [vmem:[%s328 + $0xfc8] sm:$0xff]
        %v976 = vld [vmem:[%s328 + $0xfd0] sm:$0xff]
        %v977 = vld [vmem:[%s328 + $0xfd8] sm:$0xff]
        %v978 = vld [vmem:[%s328 + $0xfe0] sm:$0xff]
        %v979 = vld [vmem:[%s328 + $0xfe8] sm:$0xff]
        %v980 = vld [vmem:[%s328 + $0xff0] sm:$0xff]
        %v981 = vld [vmem:[%s328 + $0xff8] sm:$0xff]
        %v982 = vld [vmem:[%s328 + $0x1000] sm:$0xff]
        %v983 = vld [vmem:[%s328 + $0x1008] sm:$0xff]
        %v984 = vld [vmem:[%s328 + $0x1010] sm:$0xff]
        %v985 = vld [vmem:[%s328 + $0x1018] sm:$0xff]
        %v986 = vld [vmem:[%s328 + $0x1020] sm:$0xff]
        %v987 = vld [vmem:[%s328 + $0x1028] sm:$0xff]
        %v988 = vld [vmem:[%s328 + $0x1030] sm:$0xff]
        %v989 = vld [vmem:[%s328 + $0x1038] sm:$0xff]
        %v990 = vld [vmem:[%s328 + $0x1040] sm:$0xff]
        %v991 = vld [vmem:[%s328 + $0x1048] sm:$0xff]
        %v992 = vld [vmem:[%s328 + $0x1050] sm:$0xff]
        %v993 = vld [vmem:[%s328 + $0x1058] sm:$0xff]
        %v994 = vld [vmem:[%s328 + $0x1060] sm:$0xff]
        %v995 = vld [vmem:[%s328 + $0x1068] sm:$0xff]
        %v996 = vld [vmem:[%s328 + $0x1070] sm:$0xff]
        %v997 = vld [vmem:[%s328 + $0x1078] sm:$0xff]
        %v998 = vld [vmem:[%s328 + $0x1080] sm:$0xff]
        %v999 = vld [vmem:[%s328 + $0x1088] sm:$0xff]
        %v1000 = vld [vmem:[%s328 + $0x1090] sm:$0xff]
        %v1001 = vld [vmem:[%s328 + $0x1098] sm:$0xff]
        %v1002 = vld [vmem:[%s328 + $0x10a0] sm:$0xff]
        %v1003 = vld [vmem:[%s328 + $0x10a8] sm:$0xff]
        %v1004 = vld [vmem:[%s328 + $0x10b0] sm:$0xff]
        %v1005 = vld [vmem:[%s328 + $0x10b8] sm:$0xff]
        %v1006 = vld [vmem:[%s328 + $0x10c0] sm:$0xff]
        %v1007 = vld [vmem:[%s328 + $0x10c8] sm:$0xff]
        %v1008 = vld [vmem:[%s328 + $0x10d0] sm:$0xff]
        %v1009 = vld [vmem:[%s328 + $0x10d8] sm:$0xff]
        %v1010 = vld [vmem:[%s328 + $0x10e0] sm:$0xff]
        %v1011 = vld [vmem:[%s328 + $0x10e8] sm:$0xff]
        %v1012 = vld [vmem:[%s328 + $0x10f0] sm:$0xff]
        %v1013 = vld [vmem:[%s328 + $0x10f8] sm:$0xff]
        %v1014 = vld [vmem:[%s328 + $0x1100] sm:$0xff]
        %v1015 = vld [vmem:[%s328 + $0x1108] sm:$0xff]
        %v1016 = vld [vmem:[%s328 + $0x1110] sm:$0xff]
        %v1017 = vld [vmem:[%s328 + $0x1118] sm:$0xff]
        %v1018 = vld [vmem:[%s328 + $0x1120] sm:$0xff]
        %v1019 = vld [vmem:[%s328 + $0x1128] sm:$0xff]
        %v1020 = vld [vmem:[%s328 + $0x1130] sm:$0xff]
        %v1021 = vld [vmem:[%s328 + $0x1138] sm:$0xff]
        %v1022 = vld [vmem:[%s328 + $0x1140] sm:$0xff]
        %v1023 = vld [vmem:[%s328 + $0x1148] sm:$0xff]
        %v1024 = vld [vmem:[%s328 + $0x1150] sm:$0xff]
        %v1025 = vld [vmem:[%s328 + $0x1158] sm:$0xff]
        %v1026 = vld [vmem:[%s328 + $0x1160] sm:$0xff]
        %v1027 = vld [vmem:[%s328 + $0x1168] sm:$0xff]
        %v1028 = vld [vmem:[%s328 + $0x1170] sm:$0xff]
        %v1029 = vld [vmem:[%s328 + $0x1178] sm:$0xff]
        %v1030 = vld [vmem:[%s328 + $0x1180] sm:$0xff]
        %v1031 = vld [vmem:[%s328 + $0x1188] sm:$0xff]
        %v1032 = vld [vmem:[%s328 + $0x1190] sm:$0xff]
        %v1033 = vld [vmem:[%s328 + $0x1198] sm:$0xff]
        %v1034 = vld [vmem:[%s328 + $0x11a0] sm:$0xff]
        %v1035 = vld [vmem:[%s328 + $0x11a8] sm:$0xff]
        %v1036 = vld [vmem:[%s328 + $0x11b0] sm:$0xff]
        %v1037 = vld [vmem:[%s328 + $0x11b8] sm:$0xff]
        %v1038 = vld [vmem:[%s328 + $0x11c0] sm:$0xff]
        %v1039 = vld [vmem:[%s328 + $0x11c8] sm:$0xff]
        %v1040 = vld [vmem:[%s328 + $0x11d0] sm:$0xff]
        %v1041 = vld [vmem:[%s328 + $0x11d8] sm:$0xff]
        %v1042 = vld [vmem:[%s328 + $0x11e0] sm:$0xff]
        %v1043 = vld [vmem:[%s328 + $0x11e8] sm:$0xff]
        %v1044 = vld [vmem:[%s328 + $0x11f0] sm:$0xff]
        %v1045 = vld [vmem:[%s328 + $0x11f8] sm:$0xff]
        %v1118 = vunpack.c.l.b16 %v398
        %v1119 = vunpack.c.h.b16 %v398
        %v1120 = vunpack.c.l.b16 %v399
        %v1121 = vunpack.c.h.b16 %v399
        %v1122 = vunpack.c.l.b16 %v400
        %v1123 = vunpack.c.h.b16 %v400
        %v1124 = vunpack.c.l.b16 %v401
        %v1125 = vunpack.c.h.b16 %v401
        %v1126 = vunpack.c.l.b16 %v402
        %v1127 = vunpack.c.h.b16 %v402
        %v1128 = vunpack.c.l.b16 %v403
        %v1129 = vunpack.c.h.b16 %v403
        %v1130 = vunpack.c.l.b16 %v404
        %v1131 = vunpack.c.h.b16 %v404
        %v1132 = vunpack.c.l.b16 %v405
        %v1133 = vunpack.c.h.b16 %v405
        %v1134 = vunpack.c.l.b16 %v406
        %v1135 = vunpack.c.h.b16 %v406
        %v1136 = vunpack.c.l.b16 %v407
        %v1137 = vunpack.c.h.b16 %v407
        %v1138 = vunpack.c.l.b16 %v408
        %v1139 = vunpack.c.h.b16 %v408
        %v1140 = vunpack.c.l.b16 %v409
        %v1141 = vunpack.c.h.b16 %v409
        %v1142 = vunpack.c.l.b16 %v410
        %v1143 = vunpack.c.h.b16 %v410
        %v1144 = vunpack.c.l.b16 %v411
        %v1145 = vunpack.c.h.b16 %v411
        %v1146 = vunpack.c.l.b16 %v412
        %v1147 = vunpack.c.h.b16 %v412
        %v1148 = vunpack.c.l.b16 %v413
        %v1149 = vunpack.c.h.b16 %v413
        %v1150 = vunpack.c.l.b16 %v414
        %v1151 = vunpack.c.h.b16 %v414
        %v1152 = vunpack.c.l.b16 %v415
        %v1153 = vunpack.c.h.b16 %v415
        %v1154 = vunpack.c.l.b16 %v416
        %v1155 = vunpack.c.h.b16 %v416
        %v1156 = vunpack.c.l.b16 %v417
        %v1157 = vunpack.c.h.b16 %v417
        %v1158 = vunpack.c.l.b16 %v418
        %v1159 = vunpack.c.h.b16 %v418
        %v1160 = vunpack.c.l.b16 %v419
        %v1161 = vunpack.c.h.b16 %v419
        %v1162 = vunpack.c.l.b16 %v420
        %v1163 = vunpack.c.h.b16 %v420
        %v1164 = vunpack.c.l.b16 %v421
        %v1165 = vunpack.c.h.b16 %v421
        %v1166 = vunpack.c.l.b16 %v422
        %v1167 = vunpack.c.h.b16 %v422
        %v1168 = vunpack.c.l.b16 %v423
        %v1169 = vunpack.c.h.b16 %v423
        %v1170 = vunpack.c.l.b16 %v424
        %v1171 = vunpack.c.h.b16 %v424
        %v1172 = vunpack.c.l.b16 %v425
        %v1173 = vunpack.c.h.b16 %v425
        %v1174 = vunpack.c.l.b16 %v426
        %v1175 = vunpack.c.h.b16 %v426
        %v1176 = vunpack.c.l.b16 %v427
        %v1177 = vunpack.c.h.b16 %v427
        %v1178 = vunpack.c.l.b16 %v428
        %v1179 = vunpack.c.h.b16 %v428
        %v1180 = vunpack.c.l.b16 %v429
        %v1181 = vunpack.c.h.b16 %v429
        %v1182 = vunpack.c.l.b16 %v430
        %v1183 = vunpack.c.h.b16 %v430
        %v1184 = vunpack.c.l.b16 %v431
        %v1185 = vunpack.c.h.b16 %v431
        %v1186 = vunpack.c.l.b16 %v432
        %v1187 = vunpack.c.h.b16 %v432
        %v1188 = vunpack.c.l.b16 %v433
        %v1189 = vunpack.c.h.b16 %v433
        %v1190 = vunpack.c.l.b16 %v434
        %v1191 = vunpack.c.h.b16 %v434
        %v1192 = vunpack.c.l.b16 %v435
        %v1193 = vunpack.c.h.b16 %v435
        %v1194 = vunpack.c.l.b16 %v436
        %v1195 = vunpack.c.h.b16 %v436
        %v1196 = vunpack.c.l.b16 %v437
        %v1197 = vunpack.c.h.b16 %v437
        %v1198 = vunpack.c.l.b16 %v438
        %v1199 = vunpack.c.h.b16 %v438
        %v1200 = vunpack.c.l.b16 %v439
        %v1201 = vunpack.c.h.b16 %v439
        %v1202 = vunpack.c.l.b16 %v440
        %v1203 = vunpack.c.h.b16 %v440
        %v1204 = vunpack.c.l.b16 %v441
        %v1205 = vunpack.c.h.b16 %v441
        %v1206 = vunpack.c.l.b16 %v442
        %v1207 = vunpack.c.h.b16 %v442
        %v1208 = vunpack.c.l.b16 %v443
        %v1209 = vunpack.c.h.b16 %v443
        %v1210 = vunpack.c.l.b16 %v444
        %v1211 = vunpack.c.h.b16 %v444
        %v1212 = vunpack.c.l.b16 %v445
        %v1213 = vunpack.c.h.b16 %v445
        %v1214 = vunpack.c.l.b16 %v446
        %v1215 = vunpack.c.h.b16 %v446
        %v1216 = vunpack.c.l.b16 %v447
        %v1217 = vunpack.c.h.b16 %v447
        %v1218 = vunpack.c.l.b16 %v448
        %v1219 = vunpack.c.h.b16 %v448
        %v1220 = vunpack.c.l.b16 %v449
        %v1221 = vunpack.c.h.b16 %v449
        %v1222 = vunpack.c.l.b16 %v450
        %v1223 = vunpack.c.h.b16 %v450
        %v1224 = vunpack.c.l.b16 %v451
        %v1225 = vunpack.c.h.b16 %v451
        %v1226 = vunpack.c.l.b16 %v452
        %v1227 = vunpack.c.h.b16 %v452
        %v1228 = vunpack.c.l.b16 %v453
        %v1229 = vunpack.c.h.b16 %v453
        %v1230 = vunpack.c.l.b16 %v454
        %v1231 = vunpack.c.h.b16 %v454
        %v1232 = vunpack.c.l.b16 %v455
        %v1233 = vunpack.c.h.b16 %v455
        %v1234 = vunpack.c.l.b16 %v456
        %v1235 = vunpack.c.h.b16 %v456
        %v1236 = vunpack.c.l.b16 %v457
        %v1237 = vunpack.c.h.b16 %v457
        %v1238 = vunpack.c.l.b16 %v458
        %v1239 = vunpack.c.h.b16 %v458
        %v1240 = vunpack.c.l.b16 %v459
        %v1241 = vunpack.c.h.b16 %v459
        %v1242 = vunpack.c.l.b16 %v460
        %v1243 = vunpack.c.h.b16 %v460
        %v1244 = vunpack.c.l.b16 %v461
        %v1245 = vunpack.c.h.b16 %v461
        %v1246 = vunpack.c.l.b16 %v462
        %v1247 = vunpack.c.h.b16 %v462
        %v1248 = vunpack.c.l.b16 %v463
        %v1249 = vunpack.c.h.b16 %v463
        %v1250 = vunpack.c.l.b16 %v464
        %v1251 = vunpack.c.h.b16 %v464
        %v1252 = vunpack.c.l.b16 %v465
        %v1253 = vunpack.c.h.b16 %v465
        %v1254 = vunpack.c.l.b16 %v466
        %v1255 = vunpack.c.h.b16 %v466
        %v1256 = vunpack.c.l.b16 %v467
        %v1257 = vunpack.c.h.b16 %v467
        %v1258 = vunpack.c.l.b16 %v468
        %v1259 = vunpack.c.h.b16 %v468
        %v1260 = vunpack.c.l.b16 %v469
        %v1261 = vunpack.c.h.b16 %v469
        %v1262 = vpack.c.b16 %v1154, %v1118
        %v1263 = vpack.c.b16 %v1155, %v1119
        %v1264 = vpack.c.b16 %v1156, %v1120
        %v1265 = vpack.c.b16 %v1157, %v1121
        %v1266 = vpack.c.b16 %v1158, %v1122
        %v1267 = vpack.c.b16 %v1159, %v1123
        %v1268 = vpack.c.b16 %v1160, %v1124
        %v1269 = vpack.c.b16 %v1161, %v1125
        %v1270 = vpack.c.b16 %v1162, %v1126
        %v1271 = vpack.c.b16 %v1163, %v1127
        %v1272 = vpack.c.b16 %v1164, %v1128
        %v1273 = vpack.c.b16 %v1165, %v1129
        %v1274 = vpack.c.b16 %v1166, %v1130
        %v1275 = vpack.c.b16 %v1167, %v1131
        %v1276 = vpack.c.b16 %v1168, %v1132
        %v1277 = vpack.c.b16 %v1169, %v1133
        %v1278 = vpack.c.b16 %v1170, %v1134
        %v1279 = vpack.c.b16 %v1171, %v1135
        %v1280 = vpack.c.b16 %v1172, %v1136
        %v1281 = vpack.c.b16 %v1173, %v1137
        %v1282 = vpack.c.b16 %v1174, %v1138
        %v1283 = vpack.c.b16 %v1175, %v1139
        %v1284 = vpack.c.b16 %v1176, %v1140
        %v1285 = vpack.c.b16 %v1177, %v1141
        %v1286 = vpack.c.b16 %v1178, %v1142
        %v1287 = vpack.c.b16 %v1179, %v1143
        %v1288 = vpack.c.b16 %v1180, %v1144
        %v1289 = vpack.c.b16 %v1181, %v1145
        %v1290 = vpack.c.b16 %v1182, %v1146
        %v1291 = vpack.c.b16 %v1183, %v1147
        %v1292 = vpack.c.b16 %v1184, %v1148
        %v1293 = vpack.c.b16 %v1185, %v1149
        %v1294 = vpack.c.b16 %v1186, %v1150
        %v1295 = vpack.c.b16 %v1187, %v1151
        %v1296 = vpack.c.b16 %v1188, %v1152
        %v1297 = vpack.c.b16 %v1189, %v1153
        %v1298 = vpack.c.b16 %v1226, %v1190
        %v1299 = vpack.c.b16 %v1227, %v1191
        %v1300 = vpack.c.b16 %v1228, %v1192
        %v1301 = vpack.c.b16 %v1229, %v1193
        %v1302 = vpack.c.b16 %v1230, %v1194
        %v1303 = vpack.c.b16 %v1231, %v1195
        %v1304 = vpack.c.b16 %v1232, %v1196
        %v1305 = vpack.c.b16 %v1233, %v1197
        %v1306 = vpack.c.b16 %v1234, %v1198
        %v1307 = vpack.c.b16 %v1235, %v1199
        %v1308 = vpack.c.b16 %v1236, %v1200
        %v1309 = vpack.c.b16 %v1237, %v1201
        %v1310 = vpack.c.b16 %v1238, %v1202
        %v1311 = vpack.c.b16 %v1239, %v1203
        %v1312 = vpack.c.b16 %v1240, %v1204
        %v1313 = vpack.c.b16 %v1241, %v1205
        %v1314 = vpack.c.b16 %v1242, %v1206
        %v1315 = vpack.c.b16 %v1243, %v1207
        %v1316 = vpack.c.b16 %v1244, %v1208
        %v1317 = vpack.c.b16 %v1245, %v1209
        %v1318 = vpack.c.b16 %v1246, %v1210
        %v1319 = vpack.c.b16 %v1247, %v1211
        %v1320 = vpack.c.b16 %v1248, %v1212
        %v1321 = vpack.c.b16 %v1249, %v1213
        %v1322 = vpack.c.b16 %v1250, %v1214
        %v1323 = vpack.c.b16 %v1251, %v1215
        %v1324 = vpack.c.b16 %v1252, %v1216
        %v1325 = vpack.c.b16 %v1253, %v1217
        %v1326 = vpack.c.b16 %v1254, %v1218
        %v1327 = vpack.c.b16 %v1255, %v1219
        %v1328 = vpack.c.b16 %v1256, %v1220
        %v1329 = vpack.c.b16 %v1257, %v1221
        %v1330 = vpack.c.b16 %v1258, %v1222
        %v1331 = vpack.c.b16 %v1259, %v1223
        %v1332 = vpack.c.b16 %v1260, %v1224
        %v1333 = vpack.c.b16 %v1261, %v1225
        %v1982 = vunpack.c.l.b16 %v470
        %v1983 = vunpack.c.h.b16 %v470
        %v1984 = vunpack.c.l.b16 %v471
        %v1985 = vunpack.c.h.b16 %v471
        %v1986 = vunpack.c.l.b16 %v472
        %v1987 = vunpack.c.h.b16 %v472
        %v1988 = vunpack.c.l.b16 %v473
        %v1989 = vunpack.c.h.b16 %v473
        %v1990 = vunpack.c.l.b16 %v474
        %v1991 = vunpack.c.h.b16 %v474
        %v1992 = vunpack.c.l.b16 %v475
        %v1993 = vunpack.c.h.b16 %v475
        %v1994 = vunpack.c.l.b16 %v476
        %v1995 = vunpack.c.h.b16 %v476
        %v1996 = vunpack.c.l.b16 %v477
        %v1997 = vunpack.c.h.b16 %v477
        %v1998 = vunpack.c.l.b16 %v478
        %v1999 = vunpack.c.h.b16 %v478
        %v2000 = vunpack.c.l.b16 %v479
        %v2001 = vunpack.c.h.b16 %v479
        %v2002 = vunpack.c.l.b16 %v480
        %v2003 = vunpack.c.h.b16 %v480
        %v2004 = vunpack.c.l.b16 %v481
        %v2005 = vunpack.c.h.b16 %v481
        %v2006 = vunpack.c.l.b16 %v482
        %v2007 = vunpack.c.h.b16 %v482
        %v2008 = vunpack.c.l.b16 %v483
        %v2009 = vunpack.c.h.b16 %v483
        %v2010 = vunpack.c.l.b16 %v484
        %v2011 = vunpack.c.h.b16 %v484
        %v2012 = vunpack.c.l.b16 %v485
        %v2013 = vunpack.c.h.b16 %v485
        %v2014 = vunpack.c.l.b16 %v486
        %v2015 = vunpack.c.h.b16 %v486
        %v2016 = vunpack.c.l.b16 %v487
        %v2017 = vunpack.c.h.b16 %v487
        %v2018 = vunpack.c.l.b16 %v488
        %v2019 = vunpack.c.h.b16 %v488
        %v2020 = vunpack.c.l.b16 %v489
        %v2021 = vunpack.c.h.b16 %v489
        %v2022 = vunpack.c.l.b16 %v490
        %v2023 = vunpack.c.h.b16 %v490
        %v2024 = vunpack.c.l.b16 %v491
        %v2025 = vunpack.c.h.b16 %v491
        %v2026 = vunpack.c.l.b16 %v492
        %v2027 = vunpack.c.h.b16 %v492
        %v2028 = vunpack.c.l.b16 %v493
        %v2029 = vunpack.c.h.b16 %v493
        %v2030 = vunpack.c.l.b16 %v494
        %v2031 = vunpack.c.h.b16 %v494
        %v2032 = vunpack.c.l.b16 %v495
        %v2033 = vunpack.c.h.b16 %v495
        %v2034 = vunpack.c.l.b16 %v496
        %v2035 = vunpack.c.h.b16 %v496
        %v2036 = vunpack.c.l.b16 %v497
        %v2037 = vunpack.c.h.b16 %v497
        %v2038 = vunpack.c.l.b16 %v498
        %v2039 = vunpack.c.h.b16 %v498
        %v2040 = vunpack.c.l.b16 %v499
        %v2041 = vunpack.c.h.b16 %v499
        %v2042 = vunpack.c.l.b16 %v500
        %v2043 = vunpack.c.h.b16 %v500
        %v2044 = vunpack.c.l.b16 %v501
        %v2045 = vunpack.c.h.b16 %v501
        %v2046 = vunpack.c.l.b16 %v502
        %v2047 = vunpack.c.h.b16 %v502
        %v2048 = vunpack.c.l.b16 %v503
        %v2049 = vunpack.c.h.b16 %v503
        %v2050 = vunpack.c.l.b16 %v504
        %v2051 = vunpack.c.h.b16 %v504
        %v2052 = vunpack.c.l.b16 %v505
        %v2053 = vunpack.c.h.b16 %v505
        %v2054 = vunpack.c.l.b16 %v506
        %v2055 = vunpack.c.h.b16 %v506
        %v2056 = vunpack.c.l.b16 %v507
        %v2057 = vunpack.c.h.b16 %v507
        %v2058 = vunpack.c.l.b16 %v508
        %v2059 = vunpack.c.h.b16 %v508
        %v2060 = vunpack.c.l.b16 %v509
        %v2061 = vunpack.c.h.b16 %v509
        %v2062 = vunpack.c.l.b16 %v510
        %v2063 = vunpack.c.h.b16 %v510
        %v2064 = vunpack.c.l.b16 %v511
        %v2065 = vunpack.c.h.b16 %v511
        %v2066 = vunpack.c.l.b16 %v512
        %v2067 = vunpack.c.h.b16 %v512
        %v2068 = vunpack.c.l.b16 %v513
        %v2069 = vunpack.c.h.b16 %v513
        %v2070 = vunpack.c.l.b16 %v514
        %v2071 = vunpack.c.h.b16 %v514
        %v2072 = vunpack.c.l.b16 %v515
        %v2073 = vunpack.c.h.b16 %v515
        %v2074 = vunpack.c.l.b16 %v516
        %v2075 = vunpack.c.h.b16 %v516
        %v2076 = vunpack.c.l.b16 %v517
        %v2077 = vunpack.c.h.b16 %v517
        %v2078 = vunpack.c.l.b16 %v518
        %v2079 = vunpack.c.h.b16 %v518
        %v2080 = vunpack.c.l.b16 %v519
        %v2081 = vunpack.c.h.b16 %v519
        %v2082 = vunpack.c.l.b16 %v520
        %v2083 = vunpack.c.h.b16 %v520
        %v2084 = vunpack.c.l.b16 %v521
        %v2085 = vunpack.c.h.b16 %v521
        %v2086 = vunpack.c.l.b16 %v522
        %v2087 = vunpack.c.h.b16 %v522
        %v2088 = vunpack.c.l.b16 %v523
        %v2089 = vunpack.c.h.b16 %v523
        %v2090 = vunpack.c.l.b16 %v524
        %v2091 = vunpack.c.h.b16 %v524
        %v2092 = vunpack.c.l.b16 %v525
        %v2093 = vunpack.c.h.b16 %v525
        %v2094 = vunpack.c.l.b16 %v526
        %v2095 = vunpack.c.h.b16 %v526
        %v2096 = vunpack.c.l.b16 %v527
        %v2097 = vunpack.c.h.b16 %v527
        %v2098 = vunpack.c.l.b16 %v528
        %v2099 = vunpack.c.h.b16 %v528
        %v2100 = vunpack.c.l.b16 %v529
        %v2101 = vunpack.c.h.b16 %v529
        %v2102 = vunpack.c.l.b16 %v530
        %v2103 = vunpack.c.h.b16 %v530
        %v2104 = vunpack.c.l.b16 %v531
        %v2105 = vunpack.c.h.b16 %v531
        %v2106 = vunpack.c.l.b16 %v532
        %v2107 = vunpack.c.h.b16 %v532
        %v2108 = vunpack.c.l.b16 %v533
        %v2109 = vunpack.c.h.b16 %v533
        %v2110 = vunpack.c.l.b16 %v534
        %v2111 = vunpack.c.h.b16 %v534
        %v2112 = vunpack.c.l.b16 %v535
        %v2113 = vunpack.c.h.b16 %v535
        %v2114 = vunpack.c.l.b16 %v536
        %v2115 = vunpack.c.h.b16 %v536
        %v2116 = vunpack.c.l.b16 %v537
        %v2117 = vunpack.c.h.b16 %v537
        %v2118 = vunpack.c.l.b16 %v538
        %v2119 = vunpack.c.h.b16 %v538
        %v2120 = vunpack.c.l.b16 %v539
        %v2121 = vunpack.c.h.b16 %v539
        %v2122 = vunpack.c.l.b16 %v540
        %v2123 = vunpack.c.h.b16 %v540
        %v2124 = vunpack.c.l.b16 %v541
        %v2125 = vunpack.c.h.b16 %v541
        %v2126 = vunpack.c.l.b16 %v542
        %v2127 = vunpack.c.h.b16 %v542
        %v2128 = vunpack.c.l.b16 %v543
        %v2129 = vunpack.c.h.b16 %v543
        %v2130 = vunpack.c.l.b16 %v544
        %v2131 = vunpack.c.h.b16 %v544
        %v2132 = vunpack.c.l.b16 %v545
        %v2133 = vunpack.c.h.b16 %v545
        %v2134 = vunpack.c.l.b16 %v546
        %v2135 = vunpack.c.h.b16 %v546
        %v2136 = vunpack.c.l.b16 %v547
        %v2137 = vunpack.c.h.b16 %v547
        %v2138 = vunpack.c.l.b16 %v548
        %v2139 = vunpack.c.h.b16 %v548
        %v2140 = vunpack.c.l.b16 %v549
        %v2141 = vunpack.c.h.b16 %v549
        %v2142 = vunpack.c.l.b16 %v550
        %v2143 = vunpack.c.h.b16 %v550
        %v2144 = vunpack.c.l.b16 %v551
        %v2145 = vunpack.c.h.b16 %v551
        %v2146 = vunpack.c.l.b16 %v552
        %v2147 = vunpack.c.h.b16 %v552
        %v2148 = vunpack.c.l.b16 %v553
        %v2149 = vunpack.c.h.b16 %v553
        %v2150 = vunpack.c.l.b16 %v554
        %v2151 = vunpack.c.h.b16 %v554
        %v2152 = vunpack.c.l.b16 %v555
        %v2153 = vunpack.c.h.b16 %v555
        %v2154 = vunpack.c.l.b16 %v556
        %v2155 = vunpack.c.h.b16 %v556
        %v2156 = vunpack.c.l.b16 %v557
        %v2157 = vunpack.c.h.b16 %v557
        %v2158 = vunpack.c.l.b16 %v558
        %v2159 = vunpack.c.h.b16 %v558
        %v2160 = vunpack.c.l.b16 %v559
        %v2161 = vunpack.c.h.b16 %v559
        %v2162 = vunpack.c.l.b16 %v560
        %v2163 = vunpack.c.h.b16 %v560
        %v2164 = vunpack.c.l.b16 %v561
        %v2165 = vunpack.c.h.b16 %v561
        %v2166 = vunpack.c.l.b16 %v562
        %v2167 = vunpack.c.h.b16 %v562
        %v2168 = vunpack.c.l.b16 %v563
        %v2169 = vunpack.c.h.b16 %v563
        %v2170 = vunpack.c.l.b16 %v564
        %v2171 = vunpack.c.h.b16 %v564
        %v2172 = vunpack.c.l.b16 %v565
        %v2173 = vunpack.c.h.b16 %v565
        %v2174 = vunpack.c.l.b16 %v566
        %v2175 = vunpack.c.h.b16 %v566
        %v2176 = vunpack.c.l.b16 %v567
        %v2177 = vunpack.c.h.b16 %v567
        %v2178 = vunpack.c.l.b16 %v568
        %v2179 = vunpack.c.h.b16 %v568
        %v2180 = vunpack.c.l.b16 %v569
        %v2181 = vunpack.c.h.b16 %v569
        %v2182 = vunpack.c.l.b16 %v570
        %v2183 = vunpack.c.h.b16 %v570
        %v2184 = vunpack.c.l.b16 %v571
        %v2185 = vunpack.c.h.b16 %v571
        %v2186 = vunpack.c.l.b16 %v572
        %v2187 = vunpack.c.h.b16 %v572
        %v2188 = vunpack.c.l.b16 %v573
        %v2189 = vunpack.c.h.b16 %v573
        %v2190 = vunpack.c.l.b16 %v574
        %v2191 = vunpack.c.h.b16 %v574
        %v2192 = vunpack.c.l.b16 %v575
        %v2193 = vunpack.c.h.b16 %v575
        %v2194 = vunpack.c.l.b16 %v576
        %v2195 = vunpack.c.h.b16 %v576
        %v2196 = vunpack.c.l.b16 %v577
        %v2197 = vunpack.c.h.b16 %v577
        %v2198 = vunpack.c.l.b16 %v578
        %v2199 = vunpack.c.h.b16 %v578
        %v2200 = vunpack.c.l.b16 %v579
        %v2201 = vunpack.c.h.b16 %v579
        %v2202 = vunpack.c.l.b16 %v580
        %v2203 = vunpack.c.h.b16 %v580
        %v2204 = vunpack.c.l.b16 %v581
        %v2205 = vunpack.c.h.b16 %v581
        %v2206 = vunpack.c.l.b16 %v582
        %v2207 = vunpack.c.h.b16 %v582
        %v2208 = vunpack.c.l.b16 %v583
        %v2209 = vunpack.c.h.b16 %v583
        %v2210 = vunpack.c.l.b16 %v584
        %v2211 = vunpack.c.h.b16 %v584
        %v2212 = vunpack.c.l.b16 %v585
        %v2213 = vunpack.c.h.b16 %v585
        %v2214 = vunpack.c.l.b16 %v586
        %v2215 = vunpack.c.h.b16 %v586
        %v2216 = vunpack.c.l.b16 %v587
        %v2217 = vunpack.c.h.b16 %v587
        %v2218 = vunpack.c.l.b16 %v588
        %v2219 = vunpack.c.h.b16 %v588
        %v2220 = vunpack.c.l.b16 %v589
        %v2221 = vunpack.c.h.b16 %v589
        %v2222 = vunpack.c.l.b16 %v590
        %v2223 = vunpack.c.h.b16 %v590
        %v2224 = vunpack.c.l.b16 %v591
        %v2225 = vunpack.c.h.b16 %v591
        %v2226 = vunpack.c.l.b16 %v592
        %v2227 = vunpack.c.h.b16 %v592
        %v2228 = vunpack.c.l.b16 %v593
        %v2229 = vunpack.c.h.b16 %v593
        %v2230 = vunpack.c.l.b16 %v594
        %v2231 = vunpack.c.h.b16 %v594
        %v2232 = vunpack.c.l.b16 %v595
        %v2233 = vunpack.c.h.b16 %v595
        %v2234 = vunpack.c.l.b16 %v596
        %v2235 = vunpack.c.h.b16 %v596
        %v2236 = vunpack.c.l.b16 %v597
        %v2237 = vunpack.c.h.b16 %v597
        %v2238 = vunpack.c.l.b16 %v598
        %v2239 = vunpack.c.h.b16 %v598
        %v2240 = vunpack.c.l.b16 %v599
        %v2241 = vunpack.c.h.b16 %v599
        %v2242 = vunpack.c.l.b16 %v600
        %v2243 = vunpack.c.h.b16 %v600
        %v2244 = vunpack.c.l.b16 %v601
        %v2245 = vunpack.c.h.b16 %v601
        %v2246 = vunpack.c.l.b16 %v602
        %v2247 = vunpack.c.h.b16 %v602
        %v2248 = vunpack.c.l.b16 %v603
        %v2249 = vunpack.c.h.b16 %v603
        %v2250 = vunpack.c.l.b16 %v604
        %v2251 = vunpack.c.h.b16 %v604
        %v2252 = vunpack.c.l.b16 %v605
        %v2253 = vunpack.c.h.b16 %v605
        %v2254 = vunpack.c.l.b16 %v606
        %v2255 = vunpack.c.h.b16 %v606
        %v2256 = vunpack.c.l.b16 %v607
        %v2257 = vunpack.c.h.b16 %v607
        %v2258 = vunpack.c.l.b16 %v608
        %v2259 = vunpack.c.h.b16 %v608
        %v2260 = vunpack.c.l.b16 %v609
        %v2261 = vunpack.c.h.b16 %v609
        %v2262 = vunpack.c.l.b16 %v610
        %v2263 = vunpack.c.h.b16 %v610
        %v2264 = vunpack.c.l.b16 %v611
        %v2265 = vunpack.c.h.b16 %v611
        %v2266 = vunpack.c.l.b16 %v612
        %v2267 = vunpack.c.h.b16 %v612
        %v2268 = vunpack.c.l.b16 %v613
        %v2269 = vunpack.c.h.b16 %v613
        %v2270 = vunpack.c.l.b16 %v614
        %v2271 = vunpack.c.h.b16 %v614
        %v2272 = vunpack.c.l.b16 %v615
        %v2273 = vunpack.c.h.b16 %v615
        %v2274 = vunpack.c.l.b16 %v616
        %v2275 = vunpack.c.h.b16 %v616
        %v2276 = vunpack.c.l.b16 %v617
        %v2277 = vunpack.c.h.b16 %v617
        %v2278 = vunpack.c.l.b16 %v618
        %v2279 = vunpack.c.h.b16 %v618
        %v2280 = vunpack.c.l.b16 %v619
        %v2281 = vunpack.c.h.b16 %v619
        %v2282 = vunpack.c.l.b16 %v620
        %v2283 = vunpack.c.h.b16 %v620
        %v2284 = vunpack.c.l.b16 %v621
        %v2285 = vunpack.c.h.b16 %v621
        %v2286 = vunpack.c.l.b16 %v622
        %v2287 = vunpack.c.h.b16 %v622
        %v2288 = vunpack.c.l.b16 %v623
        %v2289 = vunpack.c.h.b16 %v623
        %v2290 = vunpack.c.l.b16 %v624
        %v2291 = vunpack.c.h.b16 %v624
        %v2292 = vunpack.c.l.b16 %v625
        %v2293 = vunpack.c.h.b16 %v625
        %v2294 = vunpack.c.l.b16 %v626
        %v2295 = vunpack.c.h.b16 %v626
        %v2296 = vunpack.c.l.b16 %v627
        %v2297 = vunpack.c.h.b16 %v627
        %v2298 = vunpack.c.l.b16 %v628
        %v2299 = vunpack.c.h.b16 %v628
        %v2300 = vunpack.c.l.b16 %v629
        %v2301 = vunpack.c.h.b16 %v629
        %v2302 = vunpack.c.l.b16 %v630
        %v2303 = vunpack.c.h.b16 %v630
        %v2304 = vunpack.c.l.b16 %v631
        %v2305 = vunpack.c.h.b16 %v631
        %v2306 = vunpack.c.l.b16 %v632
        %v2307 = vunpack.c.h.b16 %v632
        %v2308 = vunpack.c.l.b16 %v633
        %v2309 = vunpack.c.h.b16 %v633
        %v2310 = vunpack.c.l.b16 %v634
        %v2311 = vunpack.c.h.b16 %v634
        %v2312 = vunpack.c.l.b16 %v635
        %v2313 = vunpack.c.h.b16 %v635
        %v2314 = vunpack.c.l.b16 %v636
        %v2315 = vunpack.c.h.b16 %v636
        %v2316 = vunpack.c.l.b16 %v637
        %v2317 = vunpack.c.h.b16 %v637
        %v2318 = vunpack.c.l.b16 %v638
        %v2319 = vunpack.c.h.b16 %v638
        %v2320 = vunpack.c.l.b16 %v639
        %v2321 = vunpack.c.h.b16 %v639
        %v2322 = vunpack.c.l.b16 %v640
        %v2323 = vunpack.c.h.b16 %v640
        %v2324 = vunpack.c.l.b16 %v641
        %v2325 = vunpack.c.h.b16 %v641
        %v2326 = vunpack.c.l.b16 %v642
        %v2327 = vunpack.c.h.b16 %v642
        %v2328 = vunpack.c.l.b16 %v643
        %v2329 = vunpack.c.h.b16 %v643
        %v2330 = vunpack.c.l.b16 %v644
        %v2331 = vunpack.c.h.b16 %v644
        %v2332 = vunpack.c.l.b16 %v645
        %v2333 = vunpack.c.h.b16 %v645
        %v2334 = vunpack.c.l.b16 %v646
        %v2335 = vunpack.c.h.b16 %v646
        %v2336 = vunpack.c.l.b16 %v647
        %v2337 = vunpack.c.h.b16 %v647
        %v2338 = vunpack.c.l.b16 %v648
        %v2339 = vunpack.c.h.b16 %v648
        %v2340 = vunpack.c.l.b16 %v649
        %v2341 = vunpack.c.h.b16 %v649
        %v2342 = vunpack.c.l.b16 %v650
        %v2343 = vunpack.c.h.b16 %v650
        %v2344 = vunpack.c.l.b16 %v651
        %v2345 = vunpack.c.h.b16 %v651
        %v2346 = vunpack.c.l.b16 %v652
        %v2347 = vunpack.c.h.b16 %v652
        %v2348 = vunpack.c.l.b16 %v653
        %v2349 = vunpack.c.h.b16 %v653
        %v2350 = vunpack.c.l.b16 %v654
        %v2351 = vunpack.c.h.b16 %v654
        %v2352 = vunpack.c.l.b16 %v655
        %v2353 = vunpack.c.h.b16 %v655
        %v2354 = vunpack.c.l.b16 %v656
        %v2355 = vunpack.c.h.b16 %v656
        %v2356 = vunpack.c.l.b16 %v657
        %v2357 = vunpack.c.h.b16 %v657
        %v2358 = vunpack.c.l.b16 %v658
        %v2359 = vunpack.c.h.b16 %v658
        %v2360 = vunpack.c.l.b16 %v659
        %v2361 = vunpack.c.h.b16 %v659
        %v2362 = vunpack.c.l.b16 %v660
        %v2363 = vunpack.c.h.b16 %v660
        %v2364 = vunpack.c.l.b16 %v661
        %v2365 = vunpack.c.h.b16 %v661
        %v2366 = vunpack.c.l.b16 %v662
        %v2367 = vunpack.c.h.b16 %v662
        %v2368 = vunpack.c.l.b16 %v663
        %v2369 = vunpack.c.h.b16 %v663
        %v2370 = vunpack.c.l.b16 %v664
        %v2371 = vunpack.c.h.b16 %v664
        %v2372 = vunpack.c.l.b16 %v665
        %v2373 = vunpack.c.h.b16 %v665
        %v2374 = vunpack.c.l.b16 %v666
        %v2375 = vunpack.c.h.b16 %v666
        %v2376 = vunpack.c.l.b16 %v667
        %v2377 = vunpack.c.h.b16 %v667
        %v2378 = vunpack.c.l.b16 %v668
        %v2379 = vunpack.c.h.b16 %v668
        %v2380 = vunpack.c.l.b16 %v669
        %v2381 = vunpack.c.h.b16 %v669
        %v2382 = vunpack.c.l.b16 %v670
        %v2383 = vunpack.c.h.b16 %v670
        %v2384 = vunpack.c.l.b16 %v671
        %v2385 = vunpack.c.h.b16 %v671
        %v2386 = vunpack.c.l.b16 %v672
        %v2387 = vunpack.c.h.b16 %v672
        %v2388 = vunpack.c.l.b16 %v673
        %v2389 = vunpack.c.h.b16 %v673
        %v2390 = vunpack.c.l.b16 %v674
        %v2391 = vunpack.c.h.b16 %v674
        %v2392 = vunpack.c.l.b16 %v675
        %v2393 = vunpack.c.h.b16 %v675
        %v2394 = vunpack.c.l.b16 %v676
        %v2395 = vunpack.c.h.b16 %v676
        %v2396 = vunpack.c.l.b16 %v677
        %v2397 = vunpack.c.h.b16 %v677
        %v2398 = vunpack.c.l.b16 %v678
        %v2399 = vunpack.c.h.b16 %v678
        %v2400 = vunpack.c.l.b16 %v679
        %v2401 = vunpack.c.h.b16 %v679
        %v2402 = vunpack.c.l.b16 %v680
        %v2403 = vunpack.c.h.b16 %v680
        %v2404 = vunpack.c.l.b16 %v681
        %v2405 = vunpack.c.h.b16 %v681
        %v2406 = vunpack.c.l.b16 %v682
        %v2407 = vunpack.c.h.b16 %v682
        %v2408 = vunpack.c.l.b16 %v683
        %v2409 = vunpack.c.h.b16 %v683
        %v2410 = vunpack.c.l.b16 %v684
        %v2411 = vunpack.c.h.b16 %v684
        %v2412 = vunpack.c.l.b16 %v685
        %v2413 = vunpack.c.h.b16 %v685
        %v2414 = vunpack.c.l.b16 %v686
        %v2415 = vunpack.c.h.b16 %v686
        %v2416 = vunpack.c.l.b16 %v687
        %v2417 = vunpack.c.h.b16 %v687
        %v2418 = vunpack.c.l.b16 %v688
        %v2419 = vunpack.c.h.b16 %v688
        %v2420 = vunpack.c.l.b16 %v689
        %v2421 = vunpack.c.h.b16 %v689
        %v2422 = vunpack.c.l.b16 %v690
        %v2423 = vunpack.c.h.b16 %v690
        %v2424 = vunpack.c.l.b16 %v691
        %v2425 = vunpack.c.h.b16 %v691
        %v2426 = vunpack.c.l.b16 %v692
        %v2427 = vunpack.c.h.b16 %v692
        %v2428 = vunpack.c.l.b16 %v693
        %v2429 = vunpack.c.h.b16 %v693
        %v2430 = vunpack.c.l.b16 %v694
        %v2431 = vunpack.c.h.b16 %v694
        %v2432 = vunpack.c.l.b16 %v695
        %v2433 = vunpack.c.h.b16 %v695
        %v2434 = vunpack.c.l.b16 %v696
        %v2435 = vunpack.c.h.b16 %v696
        %v2436 = vunpack.c.l.b16 %v697
        %v2437 = vunpack.c.h.b16 %v697
        %v2438 = vunpack.c.l.b16 %v698
        %v2439 = vunpack.c.h.b16 %v698
        %v2440 = vunpack.c.l.b16 %v699
        %v2441 = vunpack.c.h.b16 %v699
        %v2442 = vunpack.c.l.b16 %v700
        %v2443 = vunpack.c.h.b16 %v700
        %v2444 = vunpack.c.l.b16 %v701
        %v2445 = vunpack.c.h.b16 %v701
        %v2446 = vunpack.c.l.b16 %v702
        %v2447 = vunpack.c.h.b16 %v702
        %v2448 = vunpack.c.l.b16 %v703
        %v2449 = vunpack.c.h.b16 %v703
        %v2450 = vunpack.c.l.b16 %v704
        %v2451 = vunpack.c.h.b16 %v704
        %v2452 = vunpack.c.l.b16 %v705
        %v2453 = vunpack.c.h.b16 %v705
        %v2454 = vunpack.c.l.b16 %v706
        %v2455 = vunpack.c.h.b16 %v706
        %v2456 = vunpack.c.l.b16 %v707
        %v2457 = vunpack.c.h.b16 %v707
        %v2458 = vunpack.c.l.b16 %v708
        %v2459 = vunpack.c.h.b16 %v708
        %v2460 = vunpack.c.l.b16 %v709
        %v2461 = vunpack.c.h.b16 %v709
        %v2462 = vunpack.c.l.b16 %v710
        %v2463 = vunpack.c.h.b16 %v710
        %v2464 = vunpack.c.l.b16 %v711
        %v2465 = vunpack.c.h.b16 %v711
        %v2466 = vunpack.c.l.b16 %v712
        %v2467 = vunpack.c.h.b16 %v712
        %v2468 = vunpack.c.l.b16 %v713
        %v2469 = vunpack.c.h.b16 %v713
        %v2470 = vunpack.c.l.b16 %v714
        %v2471 = vunpack.c.h.b16 %v714
        %v2472 = vunpack.c.l.b16 %v715
        %v2473 = vunpack.c.h.b16 %v715
        %v2474 = vunpack.c.l.b16 %v716
        %v2475 = vunpack.c.h.b16 %v716
        %v2476 = vunpack.c.l.b16 %v717
        %v2477 = vunpack.c.h.b16 %v717
        %v2478 = vunpack.c.l.b16 %v718
        %v2479 = vunpack.c.h.b16 %v718
        %v2480 = vunpack.c.l.b16 %v719
        %v2481 = vunpack.c.h.b16 %v719
        %v2482 = vunpack.c.l.b16 %v720
        %v2483 = vunpack.c.h.b16 %v720
        %v2484 = vunpack.c.l.b16 %v721
        %v2485 = vunpack.c.h.b16 %v721
        %v2486 = vunpack.c.l.b16 %v722
        %v2487 = vunpack.c.h.b16 %v722
        %v2488 = vunpack.c.l.b16 %v723
        %v2489 = vunpack.c.h.b16 %v723
        %v2490 = vunpack.c.l.b16 %v724
        %v2491 = vunpack.c.h.b16 %v724
        %v2492 = vunpack.c.l.b16 %v725
        %v2493 = vunpack.c.h.b16 %v725
        %v2494 = vunpack.c.l.b16 %v726
        %v2495 = vunpack.c.h.b16 %v726
        %v2496 = vunpack.c.l.b16 %v727
        %v2497 = vunpack.c.h.b16 %v727
        %v2498 = vunpack.c.l.b16 %v728
        %v2499 = vunpack.c.h.b16 %v728
        %v2500 = vunpack.c.l.b16 %v729
        %v2501 = vunpack.c.h.b16 %v729
        %v2502 = vunpack.c.l.b16 %v730
        %v2503 = vunpack.c.h.b16 %v730
        %v2504 = vunpack.c.l.b16 %v731
        %v2505 = vunpack.c.h.b16 %v731
        %v2506 = vunpack.c.l.b16 %v732
        %v2507 = vunpack.c.h.b16 %v732
        %v2508 = vunpack.c.l.b16 %v733
        %v2509 = vunpack.c.h.b16 %v733
        %v2510 = vunpack.c.l.b16 %v734
        %v2511 = vunpack.c.h.b16 %v734
        %v2512 = vunpack.c.l.b16 %v735
        %v2513 = vunpack.c.h.b16 %v735
        %v2514 = vunpack.c.l.b16 %v736
        %v2515 = vunpack.c.h.b16 %v736
        %v2516 = vunpack.c.l.b16 %v737
        %v2517 = vunpack.c.h.b16 %v737
        %v2518 = vunpack.c.l.b16 %v738
        %v2519 = vunpack.c.h.b16 %v738
        %v2520 = vunpack.c.l.b16 %v739
        %v2521 = vunpack.c.h.b16 %v739
        %v2522 = vunpack.c.l.b16 %v740
        %v2523 = vunpack.c.h.b16 %v740
        %v2524 = vunpack.c.l.b16 %v741
        %v2525 = vunpack.c.h.b16 %v741
        %v2526 = vunpack.c.l.b16 %v742
        %v2527 = vunpack.c.h.b16 %v742
        %v2528 = vunpack.c.l.b16 %v743
        %v2529 = vunpack.c.h.b16 %v743
        %v2530 = vunpack.c.l.b16 %v744
        %v2531 = vunpack.c.h.b16 %v744
        %v2532 = vunpack.c.l.b16 %v745
        %v2533 = vunpack.c.h.b16 %v745
        %v2534 = vunpack.c.l.b16 %v746
        %v2535 = vunpack.c.h.b16 %v746
        %v2536 = vunpack.c.l.b16 %v747
        %v2537 = vunpack.c.h.b16 %v747
        %v2538 = vunpack.c.l.b16 %v748
        %v2539 = vunpack.c.h.b16 %v748
        %v2540 = vunpack.c.l.b16 %v749
        %v2541 = vunpack.c.h.b16 %v749
        %v2542 = vunpack.c.l.b16 %v750
        %v2543 = vunpack.c.h.b16 %v750
        %v2544 = vunpack.c.l.b16 %v751
        %v2545 = vunpack.c.h.b16 %v751
        %v2546 = vunpack.c.l.b16 %v752
        %v2547 = vunpack.c.h.b16 %v752
        %v2548 = vunpack.c.l.b16 %v753
        %v2549 = vunpack.c.h.b16 %v753
        %v2550 = vunpack.c.l.b16 %v754
        %v2551 = vunpack.c.h.b16 %v754
        %v2552 = vunpack.c.l.b16 %v755
        %v2553 = vunpack.c.h.b16 %v755
        %v2554 = vunpack.c.l.b16 %v756
        %v2555 = vunpack.c.h.b16 %v756
        %v2556 = vunpack.c.l.b16 %v757
        %v2557 = vunpack.c.h.b16 %v757
        %v2558 = vunpack.c.l.b16 %v758
        %v2559 = vunpack.c.h.b16 %v758
        %v2560 = vunpack.c.l.b16 %v759
        %v2561 = vunpack.c.h.b16 %v759
        %v2562 = vunpack.c.l.b16 %v760
        %v2563 = vunpack.c.h.b16 %v760
        %v2564 = vunpack.c.l.b16 %v761
        %v2565 = vunpack.c.h.b16 %v761
        %v2566 = vunpack.c.l.b16 %v762
        %v2567 = vunpack.c.h.b16 %v762
        %v2568 = vunpack.c.l.b16 %v763
        %v2569 = vunpack.c.h.b16 %v763
        %v2570 = vunpack.c.l.b16 %v764
        %v2571 = vunpack.c.h.b16 %v764
        %v2572 = vunpack.c.l.b16 %v765
        %v2573 = vunpack.c.h.b16 %v765
        %v2574 = vunpack.c.l.b16 %v766
        %v2575 = vunpack.c.h.b16 %v766
        %v2576 = vunpack.c.l.b16 %v767
        %v2577 = vunpack.c.h.b16 %v767
        %v2578 = vunpack.c.l.b16 %v768
        %v2579 = vunpack.c.h.b16 %v768
        %v2580 = vunpack.c.l.b16 %v769
        %v2581 = vunpack.c.h.b16 %v769
        %v2582 = vunpack.c.l.b16 %v770
        %v2583 = vunpack.c.h.b16 %v770
        %v2584 = vunpack.c.l.b16 %v771
        %v2585 = vunpack.c.h.b16 %v771
        %v2586 = vunpack.c.l.b16 %v772
        %v2587 = vunpack.c.h.b16 %v772
        %v2588 = vunpack.c.l.b16 %v773
        %v2589 = vunpack.c.h.b16 %v773
        %v2590 = vunpack.c.l.b16 %v774
        %v2591 = vunpack.c.h.b16 %v774
        %v2592 = vunpack.c.l.b16 %v775
        %v2593 = vunpack.c.h.b16 %v775
        %v2594 = vunpack.c.l.b16 %v776
        %v2595 = vunpack.c.h.b16 %v776
        %v2596 = vunpack.c.l.b16 %v777
        %v2597 = vunpack.c.h.b16 %v777
        %v2598 = vunpack.c.l.b16 %v778
        %v2599 = vunpack.c.h.b16 %v778
        %v2600 = vunpack.c.l.b16 %v779
        %v2601 = vunpack.c.h.b16 %v779
        %v2602 = vunpack.c.l.b16 %v780
        %v2603 = vunpack.c.h.b16 %v780
        %v2604 = vunpack.c.l.b16 %v781
        %v2605 = vunpack.c.h.b16 %v781
        %v2606 = vunpack.c.l.b16 %v782
        %v2607 = vunpack.c.h.b16 %v782
        %v2608 = vunpack.c.l.b16 %v783
        %v2609 = vunpack.c.h.b16 %v783
        %v2610 = vunpack.c.l.b16 %v784
        %v2611 = vunpack.c.h.b16 %v784
        %v2612 = vunpack.c.l.b16 %v785
        %v2613 = vunpack.c.h.b16 %v785
        %v2614 = vunpack.c.l.b16 %v786
        %v2615 = vunpack.c.h.b16 %v786
        %v2616 = vunpack.c.l.b16 %v787
        %v2617 = vunpack.c.h.b16 %v787
        %v2618 = vunpack.c.l.b16 %v788
        %v2619 = vunpack.c.h.b16 %v788
        %v2620 = vunpack.c.l.b16 %v789
        %v2621 = vunpack.c.h.b16 %v789
        %v2622 = vunpack.c.l.b16 %v790
        %v2623 = vunpack.c.h.b16 %v790
        %v2624 = vunpack.c.l.b16 %v791
        %v2625 = vunpack.c.h.b16 %v791
        %v2626 = vunpack.c.l.b16 %v792
        %v2627 = vunpack.c.h.b16 %v792
        %v2628 = vunpack.c.l.b16 %v793
        %v2629 = vunpack.c.h.b16 %v793
        %v2630 = vunpack.c.l.b16 %v794
        %v2631 = vunpack.c.h.b16 %v794
        %v2632 = vunpack.c.l.b16 %v795
        %v2633 = vunpack.c.h.b16 %v795
        %v2634 = vunpack.c.l.b16 %v796
        %v2635 = vunpack.c.h.b16 %v796
        %v2636 = vunpack.c.l.b16 %v797
        %v2637 = vunpack.c.h.b16 %v797
        %v2638 = vunpack.c.l.b16 %v798
        %v2639 = vunpack.c.h.b16 %v798
        %v2640 = vunpack.c.l.b16 %v799
        %v2641 = vunpack.c.h.b16 %v799
        %v2642 = vunpack.c.l.b16 %v800
        %v2643 = vunpack.c.h.b16 %v800
        %v2644 = vunpack.c.l.b16 %v801
        %v2645 = vunpack.c.h.b16 %v801
        %v2646 = vunpack.c.l.b16 %v802
        %v2647 = vunpack.c.h.b16 %v802
        %v2648 = vunpack.c.l.b16 %v803
        %v2649 = vunpack.c.h.b16 %v803
        %v2650 = vunpack.c.l.b16 %v804
        %v2651 = vunpack.c.h.b16 %v804
        %v2652 = vunpack.c.l.b16 %v805
        %v2653 = vunpack.c.h.b16 %v805
        %v2654 = vunpack.c.l.b16 %v806
        %v2655 = vunpack.c.h.b16 %v806
        %v2656 = vunpack.c.l.b16 %v807
        %v2657 = vunpack.c.h.b16 %v807
        %v2658 = vunpack.c.l.b16 %v808
        %v2659 = vunpack.c.h.b16 %v808
        %v2660 = vunpack.c.l.b16 %v809
        %v2661 = vunpack.c.h.b16 %v809
        %v2662 = vunpack.c.l.b16 %v810
        %v2663 = vunpack.c.h.b16 %v810
        %v2664 = vunpack.c.l.b16 %v811
        %v2665 = vunpack.c.h.b16 %v811
        %v2666 = vunpack.c.l.b16 %v812
        %v2667 = vunpack.c.h.b16 %v812
        %v2668 = vunpack.c.l.b16 %v813
        %v2669 = vunpack.c.h.b16 %v813
        %v2670 = vunpack.c.l.b16 %v814
        %v2671 = vunpack.c.h.b16 %v814
        %v2672 = vunpack.c.l.b16 %v815
        %v2673 = vunpack.c.h.b16 %v815
        %v2674 = vunpack.c.l.b16 %v816
        %v2675 = vunpack.c.h.b16 %v816
        %v2676 = vunpack.c.l.b16 %v817
        %v2677 = vunpack.c.h.b16 %v817
        %v2678 = vunpack.c.l.b16 %v818
        %v2679 = vunpack.c.h.b16 %v818
        %v2680 = vunpack.c.l.b16 %v819
        %v2681 = vunpack.c.h.b16 %v819
        %v2682 = vunpack.c.l.b16 %v820
        %v2683 = vunpack.c.h.b16 %v820
        %v2684 = vunpack.c.l.b16 %v821
        %v2685 = vunpack.c.h.b16 %v821
        %v2686 = vunpack.c.l.b16 %v822
        %v2687 = vunpack.c.h.b16 %v822
        %v2688 = vunpack.c.l.b16 %v823
        %v2689 = vunpack.c.h.b16 %v823
        %v2690 = vunpack.c.l.b16 %v824
        %v2691 = vunpack.c.h.b16 %v824
        %v2692 = vunpack.c.l.b16 %v825
        %v2693 = vunpack.c.h.b16 %v825
        %v2694 = vunpack.c.l.b16 %v826
        %v2695 = vunpack.c.h.b16 %v826
        %v2696 = vunpack.c.l.b16 %v827
        %v2697 = vunpack.c.h.b16 %v827
        %v2698 = vunpack.c.l.b16 %v828
        %v2699 = vunpack.c.h.b16 %v828
        %v2700 = vunpack.c.l.b16 %v829
        %v2701 = vunpack.c.h.b16 %v829
        %v2702 = vunpack.c.l.b16 %v830
        %v2703 = vunpack.c.h.b16 %v830
        %v2704 = vunpack.c.l.b16 %v831
        %v2705 = vunpack.c.h.b16 %v831
        %v2706 = vunpack.c.l.b16 %v832
        %v2707 = vunpack.c.h.b16 %v832
        %v2708 = vunpack.c.l.b16 %v833
        %v2709 = vunpack.c.h.b16 %v833
        %v2710 = vunpack.c.l.b16 %v834
        %v2711 = vunpack.c.h.b16 %v834
        %v2712 = vunpack.c.l.b16 %v835
        %v2713 = vunpack.c.h.b16 %v835
        %v2714 = vunpack.c.l.b16 %v836
        %v2715 = vunpack.c.h.b16 %v836
        %v2716 = vunpack.c.l.b16 %v837
        %v2717 = vunpack.c.h.b16 %v837
        %v2718 = vunpack.c.l.b16 %v838
        %v2719 = vunpack.c.h.b16 %v838
        %v2720 = vunpack.c.l.b16 %v839
        %v2721 = vunpack.c.h.b16 %v839
        %v2722 = vunpack.c.l.b16 %v840
        %v2723 = vunpack.c.h.b16 %v840
        %v2724 = vunpack.c.l.b16 %v841
        %v2725 = vunpack.c.h.b16 %v841
        %v2726 = vunpack.c.l.b16 %v842
        %v2727 = vunpack.c.h.b16 %v842
        %v2728 = vunpack.c.l.b16 %v843
        %v2729 = vunpack.c.h.b16 %v843
        %v2730 = vunpack.c.l.b16 %v844
        %v2731 = vunpack.c.h.b16 %v844
        %v2732 = vunpack.c.l.b16 %v845
        %v2733 = vunpack.c.h.b16 %v845
        %v2734 = vunpack.c.l.b16 %v846
        %v2735 = vunpack.c.h.b16 %v846
        %v2736 = vunpack.c.l.b16 %v847
        %v2737 = vunpack.c.h.b16 %v847
        %v2738 = vunpack.c.l.b16 %v848
        %v2739 = vunpack.c.h.b16 %v848
        %v2740 = vunpack.c.l.b16 %v849
        %v2741 = vunpack.c.h.b16 %v849
        %v2742 = vunpack.c.l.b16 %v850
        %v2743 = vunpack.c.h.b16 %v850
        %v2744 = vunpack.c.l.b16 %v851
        %v2745 = vunpack.c.h.b16 %v851
        %v2746 = vunpack.c.l.b16 %v852
        %v2747 = vunpack.c.h.b16 %v852
        %v2748 = vunpack.c.l.b16 %v853
        %v2749 = vunpack.c.h.b16 %v853
        %v2750 = vunpack.c.l.b16 %v854
        %v2751 = vunpack.c.h.b16 %v854
        %v2752 = vunpack.c.l.b16 %v855
        %v2753 = vunpack.c.h.b16 %v855
        %v2754 = vunpack.c.l.b16 %v856
        %v2755 = vunpack.c.h.b16 %v856
        %v2756 = vunpack.c.l.b16 %v857
        %v2757 = vunpack.c.h.b16 %v857
        %v2758 = vunpack.c.l.b16 %v858
        %v2759 = vunpack.c.h.b16 %v858
        %v2760 = vunpack.c.l.b16 %v859
        %v2761 = vunpack.c.h.b16 %v859
        %v2762 = vunpack.c.l.b16 %v860
        %v2763 = vunpack.c.h.b16 %v860
        %v2764 = vunpack.c.l.b16 %v861
        %v2765 = vunpack.c.h.b16 %v861
        %v2766 = vunpack.c.l.b16 %v862
        %v2767 = vunpack.c.h.b16 %v862
        %v2768 = vunpack.c.l.b16 %v863
        %v2769 = vunpack.c.h.b16 %v863
        %v2770 = vunpack.c.l.b16 %v864
        %v2771 = vunpack.c.h.b16 %v864
        %v2772 = vunpack.c.l.b16 %v865
        %v2773 = vunpack.c.h.b16 %v865
        %v2774 = vunpack.c.l.b16 %v866
        %v2775 = vunpack.c.h.b16 %v866
        %v2776 = vunpack.c.l.b16 %v867
        %v2777 = vunpack.c.h.b16 %v867
        %v2778 = vunpack.c.l.b16 %v868
        %v2779 = vunpack.c.h.b16 %v868
        %v2780 = vunpack.c.l.b16 %v869
        %v2781 = vunpack.c.h.b16 %v869
        %v2782 = vunpack.c.l.b16 %v870
        %v2783 = vunpack.c.h.b16 %v870
        %v2784 = vunpack.c.l.b16 %v871
        %v2785 = vunpack.c.h.b16 %v871
        %v2786 = vunpack.c.l.b16 %v872
        %v2787 = vunpack.c.h.b16 %v872
        %v2788 = vunpack.c.l.b16 %v873
        %v2789 = vunpack.c.h.b16 %v873
        %v2790 = vunpack.c.l.b16 %v874
        %v2791 = vunpack.c.h.b16 %v874
        %v2792 = vunpack.c.l.b16 %v875
        %v2793 = vunpack.c.h.b16 %v875
        %v2794 = vunpack.c.l.b16 %v876
        %v2795 = vunpack.c.h.b16 %v876
        %v2796 = vunpack.c.l.b16 %v877
        %v2797 = vunpack.c.h.b16 %v877
        %v2798 = vunpack.c.l.b16 %v878
        %v2799 = vunpack.c.h.b16 %v878
        %v2800 = vunpack.c.l.b16 %v879
        %v2801 = vunpack.c.h.b16 %v879
        %v2802 = vunpack.c.l.b16 %v880
        %v2803 = vunpack.c.h.b16 %v880
        %v2804 = vunpack.c.l.b16 %v881
        %v2805 = vunpack.c.h.b16 %v881
        %v2806 = vunpack.c.l.b16 %v882
        %v2807 = vunpack.c.h.b16 %v882
        %v2808 = vunpack.c.l.b16 %v883
        %v2809 = vunpack.c.h.b16 %v883
        %v2810 = vunpack.c.l.b16 %v884
        %v2811 = vunpack.c.h.b16 %v884
        %v2812 = vunpack.c.l.b16 %v885
        %v2813 = vunpack.c.h.b16 %v885
        %v2814 = vunpack.c.l.b16 %v886
        %v2815 = vunpack.c.h.b16 %v886
        %v2816 = vunpack.c.l.b16 %v887
        %v2817 = vunpack.c.h.b16 %v887
        %v2818 = vunpack.c.l.b16 %v888
        %v2819 = vunpack.c.h.b16 %v888
        %v2820 = vunpack.c.l.b16 %v889
        %v2821 = vunpack.c.h.b16 %v889
        %v2822 = vunpack.c.l.b16 %v890
        %v2823 = vunpack.c.h.b16 %v890
        %v2824 = vunpack.c.l.b16 %v891
        %v2825 = vunpack.c.h.b16 %v891
        %v2826 = vunpack.c.l.b16 %v892
        %v2827 = vunpack.c.h.b16 %v892
        %v2828 = vunpack.c.l.b16 %v893
        %v2829 = vunpack.c.h.b16 %v893
        %v2830 = vunpack.c.l.b16 %v894
        %v2831 = vunpack.c.h.b16 %v894
        %v2832 = vunpack.c.l.b16 %v895
        %v2833 = vunpack.c.h.b16 %v895
        %v2834 = vunpack.c.l.b16 %v896
        %v2835 = vunpack.c.h.b16 %v896
        %v2836 = vunpack.c.l.b16 %v897
        %v2837 = vunpack.c.h.b16 %v897
        %v2838 = vunpack.c.l.b16 %v898
        %v2839 = vunpack.c.h.b16 %v898
        %v2840 = vunpack.c.l.b16 %v899
        %v2841 = vunpack.c.h.b16 %v899
        %v2842 = vunpack.c.l.b16 %v900
        %v2843 = vunpack.c.h.b16 %v900
        %v2844 = vunpack.c.l.b16 %v901
        %v2845 = vunpack.c.h.b16 %v901
        %v2846 = vunpack.c.l.b16 %v902
        %v2847 = vunpack.c.h.b16 %v902
        %v2848 = vunpack.c.l.b16 %v903
        %v2849 = vunpack.c.h.b16 %v903
        %v2850 = vunpack.c.l.b16 %v904
        %v2851 = vunpack.c.h.b16 %v904
        %v2852 = vunpack.c.l.b16 %v905
        %v2853 = vunpack.c.h.b16 %v905
        %v2854 = vunpack.c.l.b16 %v906
        %v2855 = vunpack.c.h.b16 %v906
        %v2856 = vunpack.c.l.b16 %v907
        %v2857 = vunpack.c.h.b16 %v907
        %v2858 = vunpack.c.l.b16 %v908
        %v2859 = vunpack.c.h.b16 %v908
        %v2860 = vunpack.c.l.b16 %v909
        %v2861 = vunpack.c.h.b16 %v909
        %v2862 = vunpack.c.l.b16 %v910
        %v2863 = vunpack.c.h.b16 %v910
        %v2864 = vunpack.c.l.b16 %v911
        %v2865 = vunpack.c.h.b16 %v911
        %v2866 = vunpack.c.l.b16 %v912
        %v2867 = vunpack.c.h.b16 %v912
        %v2868 = vunpack.c.l.b16 %v913
        %v2869 = vunpack.c.h.b16 %v913
        %v2870 = vunpack.c.l.b16 %v914
        %v2871 = vunpack.c.h.b16 %v914
        %v2872 = vunpack.c.l.b16 %v915
        %v2873 = vunpack.c.h.b16 %v915
        %v2874 = vunpack.c.l.b16 %v916
        %v2875 = vunpack.c.h.b16 %v916
        %v2876 = vunpack.c.l.b16 %v917
        %v2877 = vunpack.c.h.b16 %v917
        %v2878 = vunpack.c.l.b16 %v918
        %v2879 = vunpack.c.h.b16 %v918
        %v2880 = vunpack.c.l.b16 %v919
        %v2881 = vunpack.c.h.b16 %v919
        %v2882 = vunpack.c.l.b16 %v920
        %v2883 = vunpack.c.h.b16 %v920
        %v2884 = vunpack.c.l.b16 %v921
        %v2885 = vunpack.c.h.b16 %v921
        %v2886 = vunpack.c.l.b16 %v922
        %v2887 = vunpack.c.h.b16 %v922
        %v2888 = vunpack.c.l.b16 %v923
        %v2889 = vunpack.c.h.b16 %v923
        %v2890 = vunpack.c.l.b16 %v924
        %v2891 = vunpack.c.h.b16 %v924
        %v2892 = vunpack.c.l.b16 %v925
        %v2893 = vunpack.c.h.b16 %v925
        %v2894 = vunpack.c.l.b16 %v926
        %v2895 = vunpack.c.h.b16 %v926
        %v2896 = vunpack.c.l.b16 %v927
        %v2897 = vunpack.c.h.b16 %v927
        %v2898 = vunpack.c.l.b16 %v928
        %v2899 = vunpack.c.h.b16 %v928
        %v2900 = vunpack.c.l.b16 %v929
        %v2901 = vunpack.c.h.b16 %v929
        %v2902 = vunpack.c.l.b16 %v930
        %v2903 = vunpack.c.h.b16 %v930
        %v2904 = vunpack.c.l.b16 %v931
        %v2905 = vunpack.c.h.b16 %v931
        %v2906 = vunpack.c.l.b16 %v932
        %v2907 = vunpack.c.h.b16 %v932
        %v2908 = vunpack.c.l.b16 %v933
        %v2909 = vunpack.c.h.b16 %v933
        %v2910 = vunpack.c.l.b16 %v934
        %v2911 = vunpack.c.h.b16 %v934
        %v2912 = vunpack.c.l.b16 %v935
        %v2913 = vunpack.c.h.b16 %v935
        %v2914 = vunpack.c.l.b16 %v936
        %v2915 = vunpack.c.h.b16 %v936
        %v2916 = vunpack.c.l.b16 %v937
        %v2917 = vunpack.c.h.b16 %v937
        %v2918 = vunpack.c.l.b16 %v938
        %v2919 = vunpack.c.h.b16 %v938
        %v2920 = vunpack.c.l.b16 %v939
        %v2921 = vunpack.c.h.b16 %v939
        %v2922 = vunpack.c.l.b16 %v940
        %v2923 = vunpack.c.h.b16 %v940
        %v2924 = vunpack.c.l.b16 %v941
        %v2925 = vunpack.c.h.b16 %v941
        %v2926 = vunpack.c.l.b16 %v942
        %v2927 = vunpack.c.h.b16 %v942
        %v2928 = vunpack.c.l.b16 %v943
        %v2929 = vunpack.c.h.b16 %v943
        %v2930 = vunpack.c.l.b16 %v944
        %v2931 = vunpack.c.h.b16 %v944
        %v2932 = vunpack.c.l.b16 %v945
        %v2933 = vunpack.c.h.b16 %v945
        %v2934 = vunpack.c.l.b16 %v946
        %v2935 = vunpack.c.h.b16 %v946
        %v2936 = vunpack.c.l.b16 %v947
        %v2937 = vunpack.c.h.b16 %v947
        %v2938 = vunpack.c.l.b16 %v948
        %v2939 = vunpack.c.h.b16 %v948
        %v2940 = vunpack.c.l.b16 %v949
        %v2941 = vunpack.c.h.b16 %v949
        %v2942 = vunpack.c.l.b16 %v950
        %v2943 = vunpack.c.h.b16 %v950
        %v2944 = vunpack.c.l.b16 %v951
        %v2945 = vunpack.c.h.b16 %v951
        %v2946 = vunpack.c.l.b16 %v952
        %v2947 = vunpack.c.h.b16 %v952
        %v2948 = vunpack.c.l.b16 %v953
        %v2949 = vunpack.c.h.b16 %v953
        %v2950 = vunpack.c.l.b16 %v954
        %v2951 = vunpack.c.h.b16 %v954
        %v2952 = vunpack.c.l.b16 %v955
        %v2953 = vunpack.c.h.b16 %v955
        %v2954 = vunpack.c.l.b16 %v956
        %v2955 = vunpack.c.h.b16 %v956
        %v2956 = vunpack.c.l.b16 %v957
        %v2957 = vunpack.c.h.b16 %v957
        %v2958 = vunpack.c.l.b16 %v958
        %v2959 = vunpack.c.h.b16 %v958
        %v2960 = vunpack.c.l.b16 %v959
        %v2961 = vunpack.c.h.b16 %v959
        %v2962 = vunpack.c.l.b16 %v960
        %v2963 = vunpack.c.h.b16 %v960
        %v2964 = vunpack.c.l.b16 %v961
        %v2965 = vunpack.c.h.b16 %v961
        %v2966 = vunpack.c.l.b16 %v962
        %v2967 = vunpack.c.h.b16 %v962
        %v2968 = vunpack.c.l.b16 %v963
        %v2969 = vunpack.c.h.b16 %v963
        %v2970 = vunpack.c.l.b16 %v964
        %v2971 = vunpack.c.h.b16 %v964
        %v2972 = vunpack.c.l.b16 %v965
        %v2973 = vunpack.c.h.b16 %v965
        %v2974 = vunpack.c.l.b16 %v966
        %v2975 = vunpack.c.h.b16 %v966
        %v2976 = vunpack.c.l.b16 %v967
        %v2977 = vunpack.c.h.b16 %v967
        %v2978 = vunpack.c.l.b16 %v968
        %v2979 = vunpack.c.h.b16 %v968
        %v2980 = vunpack.c.l.b16 %v969
        %v2981 = vunpack.c.h.b16 %v969
        %v2982 = vunpack.c.l.b16 %v970
        %v2983 = vunpack.c.h.b16 %v970
        %v2984 = vunpack.c.l.b16 %v971
        %v2985 = vunpack.c.h.b16 %v971
        %v2986 = vunpack.c.l.b16 %v972
        %v2987 = vunpack.c.h.b16 %v972
        %v2988 = vunpack.c.l.b16 %v973
        %v2989 = vunpack.c.h.b16 %v973
        %v2990 = vunpack.c.l.b16 %v974
        %v2991 = vunpack.c.h.b16 %v974
        %v2992 = vunpack.c.l.b16 %v975
        %v2993 = vunpack.c.h.b16 %v975
        %v2994 = vunpack.c.l.b16 %v976
        %v2995 = vunpack.c.h.b16 %v976
        %v2996 = vunpack.c.l.b16 %v977
        %v2997 = vunpack.c.h.b16 %v977
        %v2998 = vunpack.c.l.b16 %v978
        %v2999 = vunpack.c.h.b16 %v978
        %v3000 = vunpack.c.l.b16 %v979
        %v3001 = vunpack.c.h.b16 %v979
        %v3002 = vunpack.c.l.b16 %v980
        %v3003 = vunpack.c.h.b16 %v980
        %v3004 = vunpack.c.l.b16 %v981
        %v3005 = vunpack.c.h.b16 %v981
        %v3006 = vunpack.c.l.b16 %v982
        %v3007 = vunpack.c.h.b16 %v982
        %v3008 = vunpack.c.l.b16 %v983
        %v3009 = vunpack.c.h.b16 %v983
        %v3010 = vunpack.c.l.b16 %v984
        %v3011 = vunpack.c.h.b16 %v984
        %v3012 = vunpack.c.l.b16 %v985
        %v3013 = vunpack.c.h.b16 %v985
        %v3014 = vunpack.c.l.b16 %v986
        %v3015 = vunpack.c.h.b16 %v986
        %v3016 = vunpack.c.l.b16 %v987
        %v3017 = vunpack.c.h.b16 %v987
        %v3018 = vunpack.c.l.b16 %v988
        %v3019 = vunpack.c.h.b16 %v988
        %v3020 = vunpack.c.l.b16 %v989
        %v3021 = vunpack.c.h.b16 %v989
        %v3022 = vunpack.c.l.b16 %v990
        %v3023 = vunpack.c.h.b16 %v990
        %v3024 = vunpack.c.l.b16 %v991
        %v3025 = vunpack.c.h.b16 %v991
        %v3026 = vunpack.c.l.b16 %v992
        %v3027 = vunpack.c.h.b16 %v992
        %v3028 = vunpack.c.l.b16 %v993
        %v3029 = vunpack.c.h.b16 %v993
        %v3030 = vunpack.c.l.b16 %v994
        %v3031 = vunpack.c.h.b16 %v994
        %v3032 = vunpack.c.l.b16 %v995
        %v3033 = vunpack.c.h.b16 %v995
        %v3034 = vunpack.c.l.b16 %v996
        %v3035 = vunpack.c.h.b16 %v996
        %v3036 = vunpack.c.l.b16 %v997
        %v3037 = vunpack.c.h.b16 %v997
        %v3038 = vunpack.c.l.b16 %v998
        %v3039 = vunpack.c.h.b16 %v998
        %v3040 = vunpack.c.l.b16 %v999
        %v3041 = vunpack.c.h.b16 %v999
        %v3042 = vunpack.c.l.b16 %v1000
        %v3043 = vunpack.c.h.b16 %v1000
        %v3044 = vunpack.c.l.b16 %v1001
        %v3045 = vunpack.c.h.b16 %v1001
        %v3046 = vunpack.c.l.b16 %v1002
        %v3047 = vunpack.c.h.b16 %v1002
        %v3048 = vunpack.c.l.b16 %v1003
        %v3049 = vunpack.c.h.b16 %v1003
        %v3050 = vunpack.c.l.b16 %v1004
        %v3051 = vunpack.c.h.b16 %v1004
        %v3052 = vunpack.c.l.b16 %v1005
        %v3053 = vunpack.c.h.b16 %v1005
        %v3054 = vunpack.c.l.b16 %v1006
        %v3055 = vunpack.c.h.b16 %v1006
        %v3056 = vunpack.c.l.b16 %v1007
        %v3057 = vunpack.c.h.b16 %v1007
        %v3058 = vunpack.c.l.b16 %v1008
        %v3059 = vunpack.c.h.b16 %v1008
        %v3060 = vunpack.c.l.b16 %v1009
        %v3061 = vunpack.c.h.b16 %v1009
        %v3062 = vunpack.c.l.b16 %v1010
        %v3063 = vunpack.c.h.b16 %v1010
        %v3064 = vunpack.c.l.b16 %v1011
        %v3065 = vunpack.c.h.b16 %v1011
        %v3066 = vunpack.c.l.b16 %v1012
        %v3067 = vunpack.c.h.b16 %v1012
        %v3068 = vunpack.c.l.b16 %v1013
        %v3069 = vunpack.c.h.b16 %v1013
        %v3070 = vunpack.c.l.b16 %v1014
        %v3071 = vunpack.c.h.b16 %v1014
        %v3072 = vunpack.c.l.b16 %v1015
        %v3073 = vunpack.c.h.b16 %v1015
        %v3074 = vunpack.c.l.b16 %v1016
        %v3075 = vunpack.c.h.b16 %v1016
        %v3076 = vunpack.c.l.b16 %v1017
        %v3077 = vunpack.c.h.b16 %v1017
        %v3078 = vunpack.c.l.b16 %v1018
        %v3079 = vunpack.c.h.b16 %v1018
        %v3080 = vunpack.c.l.b16 %v1019
        %v3081 = vunpack.c.h.b16 %v1019
        %v3082 = vunpack.c.l.b16 %v1020
        %v3083 = vunpack.c.h.b16 %v1020
        %v3084 = vunpack.c.l.b16 %v1021
        %v3085 = vunpack.c.h.b16 %v1021
        %v3086 = vunpack.c.l.b16 %v1022
        %v3087 = vunpack.c.h.b16 %v1022
        %v3088 = vunpack.c.l.b16 %v1023
        %v3089 = vunpack.c.h.b16 %v1023
        %v3090 = vunpack.c.l.b16 %v1024
        %v3091 = vunpack.c.h.b16 %v1024
        %v3092 = vunpack.c.l.b16 %v1025
        %v3093 = vunpack.c.h.b16 %v1025
        %v3094 = vunpack.c.l.b16 %v1026
        %v3095 = vunpack.c.h.b16 %v1026
        %v3096 = vunpack.c.l.b16 %v1027
        %v3097 = vunpack.c.h.b16 %v1027
        %v3098 = vunpack.c.l.b16 %v1028
        %v3099 = vunpack.c.h.b16 %v1028
        %v3100 = vunpack.c.l.b16 %v1029
        %v3101 = vunpack.c.h.b16 %v1029
        %v3102 = vunpack.c.l.b16 %v1030
        %v3103 = vunpack.c.h.b16 %v1030
        %v3104 = vunpack.c.l.b16 %v1031
        %v3105 = vunpack.c.h.b16 %v1031
        %v3106 = vunpack.c.l.b16 %v1032
        %v3107 = vunpack.c.h.b16 %v1032
        %v3108 = vunpack.c.l.b16 %v1033
        %v3109 = vunpack.c.h.b16 %v1033
        %v3110 = vunpack.c.l.b16 %v1034
        %v3111 = vunpack.c.h.b16 %v1034
        %v3112 = vunpack.c.l.b16 %v1035
        %v3113 = vunpack.c.h.b16 %v1035
        %v3114 = vunpack.c.l.b16 %v1036
        %v3115 = vunpack.c.h.b16 %v1036
        %v3116 = vunpack.c.l.b16 %v1037
        %v3117 = vunpack.c.h.b16 %v1037
        %v3118 = vunpack.c.l.b16 %v1038
        %v3119 = vunpack.c.h.b16 %v1038
        %v3120 = vunpack.c.l.b16 %v1039
        %v3121 = vunpack.c.h.b16 %v1039
        %v3122 = vunpack.c.l.b16 %v1040
        %v3123 = vunpack.c.h.b16 %v1040
        %v3124 = vunpack.c.l.b16 %v1041
        %v3125 = vunpack.c.h.b16 %v1041
        %v3126 = vunpack.c.l.b16 %v1042
        %v3127 = vunpack.c.h.b16 %v1042
        %v3128 = vunpack.c.l.b16 %v1043
        %v3129 = vunpack.c.h.b16 %v1043
        %v3130 = vunpack.c.l.b16 %v1044
        %v3131 = vunpack.c.h.b16 %v1044
        %v3132 = vunpack.c.l.b16 %v1045
        %v3133 = vunpack.c.h.b16 %v1045
        %v3134 = vpack.c.b16 %v1984, %v1982
        %v3135 = vpack.c.b16 %v1985, %v1983
        %v3136 = vpack.c.b16 %v1988, %v1986
        %v3137 = vpack.c.b16 %v1989, %v1987
        %v3138 = vpack.c.b16 %v1992, %v1990
        %v3139 = vpack.c.b16 %v1993, %v1991
        %v3140 = vpack.c.b16 %v1996, %v1994
        %v3141 = vpack.c.b16 %v1997, %v1995
        %v3142 = vpack.c.b16 %v2000, %v1998
        %v3143 = vpack.c.b16 %v2001, %v1999
        %v3144 = vpack.c.b16 %v2004, %v2002
        %v3145 = vpack.c.b16 %v2005, %v2003
        %v3146 = vpack.c.b16 %v2008, %v2006
        %v3147 = vpack.c.b16 %v2009, %v2007
        %v3148 = vpack.c.b16 %v2012, %v2010
        %v3149 = vpack.c.b16 %v2013, %v2011
        %v3150 = vpack.c.b16 %v2016, %v2014
        %v3151 = vpack.c.b16 %v2017, %v2015
        %v3152 = vpack.c.b16 %v2020, %v2018
        %v3153 = vpack.c.b16 %v2021, %v2019
        %v3154 = vpack.c.b16 %v2024, %v2022
        %v3155 = vpack.c.b16 %v2025, %v2023
        %v3156 = vpack.c.b16 %v2028, %v2026
        %v3157 = vpack.c.b16 %v2029, %v2027
        %v3158 = vpack.c.b16 %v2032, %v2030
        %v3159 = vpack.c.b16 %v2033, %v2031
        %v3160 = vpack.c.b16 %v2036, %v2034
        %v3161 = vpack.c.b16 %v2037, %v2035
        %v3162 = vpack.c.b16 %v2040, %v2038
        %v3163 = vpack.c.b16 %v2041, %v2039
        %v3164 = vpack.c.b16 %v2044, %v2042
        %v3165 = vpack.c.b16 %v2045, %v2043
        %v3166 = vpack.c.b16 %v2048, %v2046
        %v3167 = vpack.c.b16 %v2049, %v2047
        %v3168 = vpack.c.b16 %v2052, %v2050
        %v3169 = vpack.c.b16 %v2053, %v2051
        %v3170 = vpack.c.b16 %v2056, %v2054
        %v3171 = vpack.c.b16 %v2057, %v2055
        %v3172 = vpack.c.b16 %v2060, %v2058
        %v3173 = vpack.c.b16 %v2061, %v2059
        %v3174 = vpack.c.b16 %v2064, %v2062
        %v3175 = vpack.c.b16 %v2065, %v2063
        %v3176 = vpack.c.b16 %v2068, %v2066
        %v3177 = vpack.c.b16 %v2069, %v2067
        %v3178 = vpack.c.b16 %v2072, %v2070
        %v3179 = vpack.c.b16 %v2073, %v2071
        %v3180 = vpack.c.b16 %v2076, %v2074
        %v3181 = vpack.c.b16 %v2077, %v2075
        %v3182 = vpack.c.b16 %v2080, %v2078
        %v3183 = vpack.c.b16 %v2081, %v2079
        %v3184 = vpack.c.b16 %v2084, %v2082
        %v3185 = vpack.c.b16 %v2085, %v2083
        %v3186 = vpack.c.b16 %v2088, %v2086
        %v3187 = vpack.c.b16 %v2089, %v2087
        %v3188 = vpack.c.b16 %v2092, %v2090
        %v3189 = vpack.c.b16 %v2093, %v2091
        %v3190 = vpack.c.b16 %v2096, %v2094
        %v3191 = vpack.c.b16 %v2097, %v2095
        %v3192 = vpack.c.b16 %v2100, %v2098
        %v3193 = vpack.c.b16 %v2101, %v2099
        %v3194 = vpack.c.b16 %v2104, %v2102
        %v3195 = vpack.c.b16 %v2105, %v2103
        %v3196 = vpack.c.b16 %v2108, %v2106
        %v3197 = vpack.c.b16 %v2109, %v2107
        %v3198 = vpack.c.b16 %v2112, %v2110
        %v3199 = vpack.c.b16 %v2113, %v2111
        %v3200 = vpack.c.b16 %v2116, %v2114
        %v3201 = vpack.c.b16 %v2117, %v2115
        %v3202 = vpack.c.b16 %v2120, %v2118
        %v3203 = vpack.c.b16 %v2121, %v2119
        %v3204 = vpack.c.b16 %v2124, %v2122
        %v3205 = vpack.c.b16 %v2125, %v2123
        %v3206 = vpack.c.b16 %v2128, %v2126
        %v3207 = vpack.c.b16 %v2129, %v2127
        %v3208 = vpack.c.b16 %v2132, %v2130
        %v3209 = vpack.c.b16 %v2133, %v2131
        %v3210 = vpack.c.b16 %v2136, %v2134
        %v3211 = vpack.c.b16 %v2137, %v2135
        %v3212 = vpack.c.b16 %v2140, %v2138
        %v3213 = vpack.c.b16 %v2141, %v2139
        %v3214 = vpack.c.b16 %v2144, %v2142
        %v3215 = vpack.c.b16 %v2145, %v2143
        %v3216 = vpack.c.b16 %v2148, %v2146
        %v3217 = vpack.c.b16 %v2149, %v2147
        %v3218 = vpack.c.b16 %v2152, %v2150
        %v3219 = vpack.c.b16 %v2153, %v2151
        %v3220 = vpack.c.b16 %v2156, %v2154
        %v3221 = vpack.c.b16 %v2157, %v2155
        %v3222 = vpack.c.b16 %v2160, %v2158
        %v3223 = vpack.c.b16 %v2161, %v2159
        %v3224 = vpack.c.b16 %v2164, %v2162
        %v3225 = vpack.c.b16 %v2165, %v2163
        %v3226 = vpack.c.b16 %v2168, %v2166
        %v3227 = vpack.c.b16 %v2169, %v2167
        %v3228 = vpack.c.b16 %v2172, %v2170
        %v3229 = vpack.c.b16 %v2173, %v2171
        %v3230 = vpack.c.b16 %v2176, %v2174
        %v3231 = vpack.c.b16 %v2177, %v2175
        %v3232 = vpack.c.b16 %v2180, %v2178
        %v3233 = vpack.c.b16 %v2181, %v2179
        %v3234 = vpack.c.b16 %v2184, %v2182
        %v3235 = vpack.c.b16 %v2185, %v2183
        %v3236 = vpack.c.b16 %v2188, %v2186
        %v3237 = vpack.c.b16 %v2189, %v2187
        %v3238 = vpack.c.b16 %v2192, %v2190
        %v3239 = vpack.c.b16 %v2193, %v2191
        %v3240 = vpack.c.b16 %v2196, %v2194
        %v3241 = vpack.c.b16 %v2197, %v2195
        %v3242 = vpack.c.b16 %v2200, %v2198
        %v3243 = vpack.c.b16 %v2201, %v2199
        %v3244 = vpack.c.b16 %v2204, %v2202
        %v3245 = vpack.c.b16 %v2205, %v2203
        %v3246 = vpack.c.b16 %v2208, %v2206
        %v3247 = vpack.c.b16 %v2209, %v2207
        %v3248 = vpack.c.b16 %v2212, %v2210
        %v3249 = vpack.c.b16 %v2213, %v2211
        %v3250 = vpack.c.b16 %v2216, %v2214
        %v3251 = vpack.c.b16 %v2217, %v2215
        %v3252 = vpack.c.b16 %v2220, %v2218
        %v3253 = vpack.c.b16 %v2221, %v2219
        %v3254 = vpack.c.b16 %v2224, %v2222
        %v3255 = vpack.c.b16 %v2225, %v2223
        %v3256 = vpack.c.b16 %v2228, %v2226
        %v3257 = vpack.c.b16 %v2229, %v2227
        %v3258 = vpack.c.b16 %v2232, %v2230
        %v3259 = vpack.c.b16 %v2233, %v2231
        %v3260 = vpack.c.b16 %v2236, %v2234
        %v3261 = vpack.c.b16 %v2237, %v2235
        %v3262 = vpack.c.b16 %v2240, %v2238
        %v3263 = vpack.c.b16 %v2241, %v2239
        %v3264 = vpack.c.b16 %v2244, %v2242
        %v3265 = vpack.c.b16 %v2245, %v2243
        %v3266 = vpack.c.b16 %v2248, %v2246
        %v3267 = vpack.c.b16 %v2249, %v2247
        %v3268 = vpack.c.b16 %v2252, %v2250
        %v3269 = vpack.c.b16 %v2253, %v2251
        %v3270 = vpack.c.b16 %v2256, %v2254
        %v3271 = vpack.c.b16 %v2257, %v2255
        %v3272 = vpack.c.b16 %v2260, %v2258
        %v3273 = vpack.c.b16 %v2261, %v2259
        %v3274 = vpack.c.b16 %v2264, %v2262
        %v3275 = vpack.c.b16 %v2265, %v2263
        %v3276 = vpack.c.b16 %v2268, %v2266
        %v3277 = vpack.c.b16 %v2269, %v2267
        %v3278 = vpack.c.b16 %v2272, %v2270
        %v3279 = vpack.c.b16 %v2273, %v2271
        %v3280 = vpack.c.b16 %v2276, %v2274
        %v3281 = vpack.c.b16 %v2277, %v2275
        %v3282 = vpack.c.b16 %v2280, %v2278
        %v3283 = vpack.c.b16 %v2281, %v2279
        %v3284 = vpack.c.b16 %v2284, %v2282
        %v3285 = vpack.c.b16 %v2285, %v2283
        %v3286 = vpack.c.b16 %v2288, %v2286
        %v3287 = vpack.c.b16 %v2289, %v2287
        %v3288 = vpack.c.b16 %v2292, %v2290
        %v3289 = vpack.c.b16 %v2293, %v2291
        %v3290 = vpack.c.b16 %v2296, %v2294
        %v3291 = vpack.c.b16 %v2297, %v2295
        %v3292 = vpack.c.b16 %v2300, %v2298
        %v3293 = vpack.c.b16 %v2301, %v2299
        %v3294 = vpack.c.b16 %v2304, %v2302
        %v3295 = vpack.c.b16 %v2305, %v2303
        %v3296 = vpack.c.b16 %v2308, %v2306
        %v3297 = vpack.c.b16 %v2309, %v2307
        %v3298 = vpack.c.b16 %v2312, %v2310
        %v3299 = vpack.c.b16 %v2313, %v2311
        %v3300 = vpack.c.b16 %v2316, %v2314
        %v3301 = vpack.c.b16 %v2317, %v2315
        %v3302 = vpack.c.b16 %v2320, %v2318
        %v3303 = vpack.c.b16 %v2321, %v2319
        %v3304 = vpack.c.b16 %v2324, %v2322
        %v3305 = vpack.c.b16 %v2325, %v2323
        %v3306 = vpack.c.b16 %v2328, %v2326
        %v3307 = vpack.c.b16 %v2329, %v2327
        %v3308 = vpack.c.b16 %v2332, %v2330
        %v3309 = vpack.c.b16 %v2333, %v2331
        %v3310 = vpack.c.b16 %v2336, %v2334
        %v3311 = vpack.c.b16 %v2337, %v2335
        %v3312 = vpack.c.b16 %v2340, %v2338
        %v3313 = vpack.c.b16 %v2341, %v2339
        %v3314 = vpack.c.b16 %v2344, %v2342
        %v3315 = vpack.c.b16 %v2345, %v2343
        %v3316 = vpack.c.b16 %v2348, %v2346
        %v3317 = vpack.c.b16 %v2349, %v2347
        %v3318 = vpack.c.b16 %v2352, %v2350
        %v3319 = vpack.c.b16 %v2353, %v2351
        %v3320 = vpack.c.b16 %v2356, %v2354
        %v3321 = vpack.c.b16 %v2357, %v2355
        %v3322 = vpack.c.b16 %v2360, %v2358
        %v3323 = vpack.c.b16 %v2361, %v2359
        %v3324 = vpack.c.b16 %v2364, %v2362
        %v3325 = vpack.c.b16 %v2365, %v2363
        %v3326 = vpack.c.b16 %v2368, %v2366
        %v3327 = vpack.c.b16 %v2369, %v2367
        %v3328 = vpack.c.b16 %v2372, %v2370
        %v3329 = vpack.c.b16 %v2373, %v2371
        %v3330 = vpack.c.b16 %v2376, %v2374
        %v3331 = vpack.c.b16 %v2377, %v2375
        %v3332 = vpack.c.b16 %v2380, %v2378
        %v3333 = vpack.c.b16 %v2381, %v2379
        %v3334 = vpack.c.b16 %v2384, %v2382
        %v3335 = vpack.c.b16 %v2385, %v2383
        %v3336 = vpack.c.b16 %v2388, %v2386
        %v3337 = vpack.c.b16 %v2389, %v2387
        %v3338 = vpack.c.b16 %v2392, %v2390
        %v3339 = vpack.c.b16 %v2393, %v2391
        %v3340 = vpack.c.b16 %v2396, %v2394
        %v3341 = vpack.c.b16 %v2397, %v2395
        %v3342 = vpack.c.b16 %v2400, %v2398
        %v3343 = vpack.c.b16 %v2401, %v2399
        %v3344 = vpack.c.b16 %v2404, %v2402
        %v3345 = vpack.c.b16 %v2405, %v2403
        %v3346 = vpack.c.b16 %v2408, %v2406
        %v3347 = vpack.c.b16 %v2409, %v2407
        %v3348 = vpack.c.b16 %v2412, %v2410
        %v3349 = vpack.c.b16 %v2413, %v2411
        %v3350 = vpack.c.b16 %v2416, %v2414
        %v3351 = vpack.c.b16 %v2417, %v2415
        %v3352 = vpack.c.b16 %v2420, %v2418
        %v3353 = vpack.c.b16 %v2421, %v2419
        %v3354 = vpack.c.b16 %v2424, %v2422
        %v3355 = vpack.c.b16 %v2425, %v2423
        %v3356 = vpack.c.b16 %v2428, %v2426
        %v3357 = vpack.c.b16 %v2429, %v2427
        %v3358 = vpack.c.b16 %v2432, %v2430
        %v3359 = vpack.c.b16 %v2433, %v2431
        %v3360 = vpack.c.b16 %v2436, %v2434
        %v3361 = vpack.c.b16 %v2437, %v2435
        %v3362 = vpack.c.b16 %v2440, %v2438
        %v3363 = vpack.c.b16 %v2441, %v2439
        %v3364 = vpack.c.b16 %v2444, %v2442
        %v3365 = vpack.c.b16 %v2445, %v2443
        %v3366 = vpack.c.b16 %v2448, %v2446
        %v3367 = vpack.c.b16 %v2449, %v2447
        %v3368 = vpack.c.b16 %v2452, %v2450
        %v3369 = vpack.c.b16 %v2453, %v2451
        %v3370 = vpack.c.b16 %v2456, %v2454
        %v3371 = vpack.c.b16 %v2457, %v2455
        %v3372 = vpack.c.b16 %v2460, %v2458
        %v3373 = vpack.c.b16 %v2461, %v2459
        %v3374 = vpack.c.b16 %v2464, %v2462
        %v3375 = vpack.c.b16 %v2465, %v2463
        %v3376 = vpack.c.b16 %v2468, %v2466
        %v3377 = vpack.c.b16 %v2469, %v2467
        %v3378 = vpack.c.b16 %v2472, %v2470
        %v3379 = vpack.c.b16 %v2473, %v2471
        %v3380 = vpack.c.b16 %v2476, %v2474
        %v3381 = vpack.c.b16 %v2477, %v2475
        %v3382 = vpack.c.b16 %v2480, %v2478
        %v3383 = vpack.c.b16 %v2481, %v2479
        %v3384 = vpack.c.b16 %v2484, %v2482
        %v3385 = vpack.c.b16 %v2485, %v2483
        %v3386 = vpack.c.b16 %v2488, %v2486
        %v3387 = vpack.c.b16 %v2489, %v2487
        %v3388 = vpack.c.b16 %v2492, %v2490
        %v3389 = vpack.c.b16 %v2493, %v2491
        %v3390 = vpack.c.b16 %v2496, %v2494
        %v3391 = vpack.c.b16 %v2497, %v2495
        %v3392 = vpack.c.b16 %v2500, %v2498
        %v3393 = vpack.c.b16 %v2501, %v2499
        %v3394 = vpack.c.b16 %v2504, %v2502
        %v3395 = vpack.c.b16 %v2505, %v2503
        %v3396 = vpack.c.b16 %v2508, %v2506
        %v3397 = vpack.c.b16 %v2509, %v2507
        %v3398 = vpack.c.b16 %v2512, %v2510
        %v3399 = vpack.c.b16 %v2513, %v2511
        %v3400 = vpack.c.b16 %v2516, %v2514
        %v3401 = vpack.c.b16 %v2517, %v2515
        %v3402 = vpack.c.b16 %v2520, %v2518
        %v3403 = vpack.c.b16 %v2521, %v2519
        %v3404 = vpack.c.b16 %v2524, %v2522
        %v3405 = vpack.c.b16 %v2525, %v2523
        %v3406 = vpack.c.b16 %v2528, %v2526
        %v3407 = vpack.c.b16 %v2529, %v2527
        %v3408 = vpack.c.b16 %v2532, %v2530
        %v3409 = vpack.c.b16 %v2533, %v2531
        %v3410 = vpack.c.b16 %v2536, %v2534
        %v3411 = vpack.c.b16 %v2537, %v2535
        %v3412 = vpack.c.b16 %v2540, %v2538
        %v3413 = vpack.c.b16 %v2541, %v2539
        %v3414 = vpack.c.b16 %v2544, %v2542
        %v3415 = vpack.c.b16 %v2545, %v2543
        %v3416 = vpack.c.b16 %v2548, %v2546
        %v3417 = vpack.c.b16 %v2549, %v2547
        %v3418 = vpack.c.b16 %v2552, %v2550
        %v3419 = vpack.c.b16 %v2553, %v2551
        %v3420 = vpack.c.b16 %v2556, %v2554
        %v3421 = vpack.c.b16 %v2557, %v2555
        %v3422 = vpack.c.b16 %v2560, %v2558
        %v3423 = vpack.c.b16 %v2561, %v2559
        %v3424 = vpack.c.b16 %v2564, %v2562
        %v3425 = vpack.c.b16 %v2565, %v2563
        %v3426 = vpack.c.b16 %v2568, %v2566
        %v3427 = vpack.c.b16 %v2569, %v2567
        %v3428 = vpack.c.b16 %v2572, %v2570
        %v3429 = vpack.c.b16 %v2573, %v2571
        %v3430 = vpack.c.b16 %v2576, %v2574
        %v3431 = vpack.c.b16 %v2577, %v2575
        %v3432 = vpack.c.b16 %v2580, %v2578
        %v3433 = vpack.c.b16 %v2581, %v2579
        %v3434 = vpack.c.b16 %v2584, %v2582
        %v3435 = vpack.c.b16 %v2585, %v2583
        %v3436 = vpack.c.b16 %v2588, %v2586
        %v3437 = vpack.c.b16 %v2589, %v2587
        %v3438 = vpack.c.b16 %v2592, %v2590
        %v3439 = vpack.c.b16 %v2593, %v2591
        %v3440 = vpack.c.b16 %v2596, %v2594
        %v3441 = vpack.c.b16 %v2597, %v2595
        %v3442 = vpack.c.b16 %v2600, %v2598
        %v3443 = vpack.c.b16 %v2601, %v2599
        %v3444 = vpack.c.b16 %v2604, %v2602
        %v3445 = vpack.c.b16 %v2605, %v2603
        %v3446 = vpack.c.b16 %v2608, %v2606
        %v3447 = vpack.c.b16 %v2609, %v2607
        %v3448 = vpack.c.b16 %v2612, %v2610
        %v3449 = vpack.c.b16 %v2613, %v2611
        %v3450 = vpack.c.b16 %v2616, %v2614
        %v3451 = vpack.c.b16 %v2617, %v2615
        %v3452 = vpack.c.b16 %v2620, %v2618
        %v3453 = vpack.c.b16 %v2621, %v2619
        %v3454 = vpack.c.b16 %v2624, %v2622
        %v3455 = vpack.c.b16 %v2625, %v2623
        %v3456 = vpack.c.b16 %v2628, %v2626
        %v3457 = vpack.c.b16 %v2629, %v2627
        %v3458 = vpack.c.b16 %v2632, %v2630
        %v3459 = vpack.c.b16 %v2633, %v2631
        %v3460 = vpack.c.b16 %v2636, %v2634
        %v3461 = vpack.c.b16 %v2637, %v2635
        %v3462 = vpack.c.b16 %v2640, %v2638
        %v3463 = vpack.c.b16 %v2641, %v2639
        %v3464 = vpack.c.b16 %v2644, %v2642
        %v3465 = vpack.c.b16 %v2645, %v2643
        %v3466 = vpack.c.b16 %v2648, %v2646
        %v3467 = vpack.c.b16 %v2649, %v2647
        %v3468 = vpack.c.b16 %v2652, %v2650
        %v3469 = vpack.c.b16 %v2653, %v2651
        %v3470 = vpack.c.b16 %v2656, %v2654
        %v3471 = vpack.c.b16 %v2657, %v2655
        %v3472 = vpack.c.b16 %v2660, %v2658
        %v3473 = vpack.c.b16 %v2661, %v2659
        %v3474 = vpack.c.b16 %v2664, %v2662
        %v3475 = vpack.c.b16 %v2665, %v2663
        %v3476 = vpack.c.b16 %v2668, %v2666
        %v3477 = vpack.c.b16 %v2669, %v2667
        %v3478 = vpack.c.b16 %v2672, %v2670
        %v3479 = vpack.c.b16 %v2673, %v2671
        %v3480 = vpack.c.b16 %v2676, %v2674
        %v3481 = vpack.c.b16 %v2677, %v2675
        %v3482 = vpack.c.b16 %v2680, %v2678
        %v3483 = vpack.c.b16 %v2681, %v2679
        %v3484 = vpack.c.b16 %v2684, %v2682
        %v3485 = vpack.c.b16 %v2685, %v2683
        %v3486 = vpack.c.b16 %v2688, %v2686
        %v3487 = vpack.c.b16 %v2689, %v2687
        %v3488 = vpack.c.b16 %v2692, %v2690
        %v3489 = vpack.c.b16 %v2693, %v2691
        %v3490 = vpack.c.b16 %v2696, %v2694
        %v3491 = vpack.c.b16 %v2697, %v2695
        %v3492 = vpack.c.b16 %v2700, %v2698
        %v3493 = vpack.c.b16 %v2701, %v2699
        %v3494 = vpack.c.b16 %v2704, %v2702
        %v3495 = vpack.c.b16 %v2705, %v2703
        %v3496 = vpack.c.b16 %v2708, %v2706
        %v3497 = vpack.c.b16 %v2709, %v2707
        %v3498 = vpack.c.b16 %v2712, %v2710
        %v3499 = vpack.c.b16 %v2713, %v2711
        %v3500 = vpack.c.b16 %v2716, %v2714
        %v3501 = vpack.c.b16 %v2717, %v2715
        %v3502 = vpack.c.b16 %v2720, %v2718
        %v3503 = vpack.c.b16 %v2721, %v2719
        %v3504 = vpack.c.b16 %v2724, %v2722
        %v3505 = vpack.c.b16 %v2725, %v2723
        %v3506 = vpack.c.b16 %v2728, %v2726
        %v3507 = vpack.c.b16 %v2729, %v2727
        %v3508 = vpack.c.b16 %v2732, %v2730
        %v3509 = vpack.c.b16 %v2733, %v2731
        %v3510 = vpack.c.b16 %v2736, %v2734
        %v3511 = vpack.c.b16 %v2737, %v2735
        %v3512 = vpack.c.b16 %v2740, %v2738
        %v3513 = vpack.c.b16 %v2741, %v2739
        %v3514 = vpack.c.b16 %v2744, %v2742
        %v3515 = vpack.c.b16 %v2745, %v2743
        %v3516 = vpack.c.b16 %v2748, %v2746
        %v3517 = vpack.c.b16 %v2749, %v2747
        %v3518 = vpack.c.b16 %v2752, %v2750
        %v3519 = vpack.c.b16 %v2753, %v2751
        %v3520 = vpack.c.b16 %v2756, %v2754
        %v3521 = vpack.c.b16 %v2757, %v2755
        %v3522 = vpack.c.b16 %v2760, %v2758
        %v3523 = vpack.c.b16 %v2761, %v2759
        %v3524 = vpack.c.b16 %v2764, %v2762
        %v3525 = vpack.c.b16 %v2765, %v2763
        %v3526 = vpack.c.b16 %v2768, %v2766
        %v3527 = vpack.c.b16 %v2769, %v2767
        %v3528 = vpack.c.b16 %v2772, %v2770
        %v3529 = vpack.c.b16 %v2773, %v2771
        %v3530 = vpack.c.b16 %v2776, %v2774
        %v3531 = vpack.c.b16 %v2777, %v2775
        %v3532 = vpack.c.b16 %v2780, %v2778
        %v3533 = vpack.c.b16 %v2781, %v2779
        %v3534 = vpack.c.b16 %v2784, %v2782
        %v3535 = vpack.c.b16 %v2785, %v2783
        %v3536 = vpack.c.b16 %v2788, %v2786
        %v3537 = vpack.c.b16 %v2789, %v2787
        %v3538 = vpack.c.b16 %v2792, %v2790
        %v3539 = vpack.c.b16 %v2793, %v2791
        %v3540 = vpack.c.b16 %v2796, %v2794
        %v3541 = vpack.c.b16 %v2797, %v2795
        %v3542 = vpack.c.b16 %v2800, %v2798
        %v3543 = vpack.c.b16 %v2801, %v2799
        %v3544 = vpack.c.b16 %v2804, %v2802
        %v3545 = vpack.c.b16 %v2805, %v2803
        %v3546 = vpack.c.b16 %v2808, %v2806
        %v3547 = vpack.c.b16 %v2809, %v2807
        %v3548 = vpack.c.b16 %v2812, %v2810
        %v3549 = vpack.c.b16 %v2813, %v2811
        %v3550 = vpack.c.b16 %v2816, %v2814
        %v3551 = vpack.c.b16 %v2817, %v2815
        %v3552 = vpack.c.b16 %v2820, %v2818
        %v3553 = vpack.c.b16 %v2821, %v2819
        %v3554 = vpack.c.b16 %v2824, %v2822
        %v3555 = vpack.c.b16 %v2825, %v2823
        %v3556 = vpack.c.b16 %v2828, %v2826
        %v3557 = vpack.c.b16 %v2829, %v2827
        %v3558 = vpack.c.b16 %v2832, %v2830
        %v3559 = vpack.c.b16 %v2833, %v2831
        %v3560 = vpack.c.b16 %v2836, %v2834
        %v3561 = vpack.c.b16 %v2837, %v2835
        %v3562 = vpack.c.b16 %v2840, %v2838
        %v3563 = vpack.c.b16 %v2841, %v2839
        %v3564 = vpack.c.b16 %v2844, %v2842
        %v3565 = vpack.c.b16 %v2845, %v2843
        %v3566 = vpack.c.b16 %v2848, %v2846
        %v3567 = vpack.c.b16 %v2849, %v2847
        %v3568 = vpack.c.b16 %v2852, %v2850
        %v3569 = vpack.c.b16 %v2853, %v2851
        %v3570 = vpack.c.b16 %v2856, %v2854
        %v3571 = vpack.c.b16 %v2857, %v2855
        %v3572 = vpack.c.b16 %v2860, %v2858
        %v3573 = vpack.c.b16 %v2861, %v2859
        %v3574 = vpack.c.b16 %v2864, %v2862
        %v3575 = vpack.c.b16 %v2865, %v2863
        %v3576 = vpack.c.b16 %v2868, %v2866
        %v3577 = vpack.c.b16 %v2869, %v2867
        %v3578 = vpack.c.b16 %v2872, %v2870
        %v3579 = vpack.c.b16 %v2873, %v2871
        %v3580 = vpack.c.b16 %v2876, %v2874
        %v3581 = vpack.c.b16 %v2877, %v2875
        %v3582 = vpack.c.b16 %v2880, %v2878
        %v3583 = vpack.c.b16 %v2881, %v2879
        %v3584 = vpack.c.b16 %v2884, %v2882
        %v3585 = vpack.c.b16 %v2885, %v2883
        %v3586 = vpack.c.b16 %v2888, %v2886
        %v3587 = vpack.c.b16 %v2889, %v2887
        %v3588 = vpack.c.b16 %v2892, %v2890
        %v3589 = vpack.c.b16 %v2893, %v2891
        %v3590 = vpack.c.b16 %v2896, %v2894
        %v3591 = vpack.c.b16 %v2897, %v2895
        %v3592 = vpack.c.b16 %v2900, %v2898
        %v3593 = vpack.c.b16 %v2901, %v2899
        %v3594 = vpack.c.b16 %v2904, %v2902
        %v3595 = vpack.c.b16 %v2905, %v2903
        %v3596 = vpack.c.b16 %v2908, %v2906
        %v3597 = vpack.c.b16 %v2909, %v2907
        %v3598 = vpack.c.b16 %v2912, %v2910
        %v3599 = vpack.c.b16 %v2913, %v2911
        %v3600 = vpack.c.b16 %v2916, %v2914
        %v3601 = vpack.c.b16 %v2917, %v2915
        %v3602 = vpack.c.b16 %v2920, %v2918
        %v3603 = vpack.c.b16 %v2921, %v2919
        %v3604 = vpack.c.b16 %v2924, %v2922
        %v3605 = vpack.c.b16 %v2925, %v2923
        %v3606 = vpack.c.b16 %v2928, %v2926
        %v3607 = vpack.c.b16 %v2929, %v2927
        %v3608 = vpack.c.b16 %v2932, %v2930
        %v3609 = vpack.c.b16 %v2933, %v2931
        %v3610 = vpack.c.b16 %v2936, %v2934
        %v3611 = vpack.c.b16 %v2937, %v2935
        %v3612 = vpack.c.b16 %v2940, %v2938
        %v3613 = vpack.c.b16 %v2941, %v2939
        %v3614 = vpack.c.b16 %v2944, %v2942
        %v3615 = vpack.c.b16 %v2945, %v2943
        %v3616 = vpack.c.b16 %v2948, %v2946
        %v3617 = vpack.c.b16 %v2949, %v2947
        %v3618 = vpack.c.b16 %v2952, %v2950
        %v3619 = vpack.c.b16 %v2953, %v2951
        %v3620 = vpack.c.b16 %v2956, %v2954
        %v3621 = vpack.c.b16 %v2957, %v2955
        %v3622 = vpack.c.b16 %v2960, %v2958
        %v3623 = vpack.c.b16 %v2961, %v2959
        %v3624 = vpack.c.b16 %v2964, %v2962
        %v3625 = vpack.c.b16 %v2965, %v2963
        %v3626 = vpack.c.b16 %v2968, %v2966
        %v3627 = vpack.c.b16 %v2969, %v2967
        %v3628 = vpack.c.b16 %v2972, %v2970
        %v3629 = vpack.c.b16 %v2973, %v2971
        %v3630 = vpack.c.b16 %v2976, %v2974
        %v3631 = vpack.c.b16 %v2977, %v2975
        %v3632 = vpack.c.b16 %v2980, %v2978
        %v3633 = vpack.c.b16 %v2981, %v2979
        %v3634 = vpack.c.b16 %v2984, %v2982
        %v3635 = vpack.c.b16 %v2985, %v2983
        %v3636 = vpack.c.b16 %v2988, %v2986
        %v3637 = vpack.c.b16 %v2989, %v2987
        %v3638 = vpack.c.b16 %v2992, %v2990
        %v3639 = vpack.c.b16 %v2993, %v2991
        %v3640 = vpack.c.b16 %v2996, %v2994
        %v3641 = vpack.c.b16 %v2997, %v2995
        %v3642 = vpack.c.b16 %v3000, %v2998
        %v3643 = vpack.c.b16 %v3001, %v2999
        %v3644 = vpack.c.b16 %v3004, %v3002
        %v3645 = vpack.c.b16 %v3005, %v3003
        %v3646 = vpack.c.b16 %v3008, %v3006
        %v3647 = vpack.c.b16 %v3009, %v3007
        %v3648 = vpack.c.b16 %v3012, %v3010
        %v3649 = vpack.c.b16 %v3013, %v3011
        %v3650 = vpack.c.b16 %v3016, %v3014
        %v3651 = vpack.c.b16 %v3017, %v3015
        %v3652 = vpack.c.b16 %v3020, %v3018
        %v3653 = vpack.c.b16 %v3021, %v3019
        %v3654 = vpack.c.b16 %v3024, %v3022
        %v3655 = vpack.c.b16 %v3025, %v3023
        %v3656 = vpack.c.b16 %v3028, %v3026
        %v3657 = vpack.c.b16 %v3029, %v3027
        %v3658 = vpack.c.b16 %v3032, %v3030
        %v3659 = vpack.c.b16 %v3033, %v3031
        %v3660 = vpack.c.b16 %v3036, %v3034
        %v3661 = vpack.c.b16 %v3037, %v3035
        %v3662 = vpack.c.b16 %v3040, %v3038
        %v3663 = vpack.c.b16 %v3041, %v3039
        %v3664 = vpack.c.b16 %v3044, %v3042
        %v3665 = vpack.c.b16 %v3045, %v3043
        %v3666 = vpack.c.b16 %v3048, %v3046
        %v3667 = vpack.c.b16 %v3049, %v3047
        %v3668 = vpack.c.b16 %v3052, %v3050
        %v3669 = vpack.c.b16 %v3053, %v3051
        %v3670 = vpack.c.b16 %v3056, %v3054
        %v3671 = vpack.c.b16 %v3057, %v3055
        %v3672 = vpack.c.b16 %v3060, %v3058
        %v3673 = vpack.c.b16 %v3061, %v3059
        %v3674 = vpack.c.b16 %v3064, %v3062
        %v3675 = vpack.c.b16 %v3065, %v3063
        %v3676 = vpack.c.b16 %v3068, %v3066
        %v3677 = vpack.c.b16 %v3069, %v3067
        %v3678 = vpack.c.b16 %v3072, %v3070
        %v3679 = vpack.c.b16 %v3073, %v3071
        %v3680 = vpack.c.b16 %v3076, %v3074
        %v3681 = vpack.c.b16 %v3077, %v3075
        %v3682 = vpack.c.b16 %v3080, %v3078
        %v3683 = vpack.c.b16 %v3081, %v3079
        %v3684 = vpack.c.b16 %v3084, %v3082
        %v3685 = vpack.c.b16 %v3085, %v3083
        %v3686 = vpack.c.b16 %v3088, %v3086
        %v3687 = vpack.c.b16 %v3089, %v3087
        %v3688 = vpack.c.b16 %v3092, %v3090
        %v3689 = vpack.c.b16 %v3093, %v3091
        %v3690 = vpack.c.b16 %v3096, %v3094
        %v3691 = vpack.c.b16 %v3097, %v3095
        %v3692 = vpack.c.b16 %v3100, %v3098
        %v3693 = vpack.c.b16 %v3101, %v3099
        %v3694 = vpack.c.b16 %v3104, %v3102
        %v3695 = vpack.c.b16 %v3105, %v3103
        %v3696 = vpack.c.b16 %v3108, %v3106
        %v3697 = vpack.c.b16 %v3109, %v3107
        %v3698 = vpack.c.b16 %v3112, %v3110
        %v3699 = vpack.c.b16 %v3113, %v3111
        %v3700 = vpack.c.b16 %v3116, %v3114
        %v3701 = vpack.c.b16 %v3117, %v3115
        %v3702 = vpack.c.b16 %v3120, %v3118
        %v3703 = vpack.c.b16 %v3121, %v3119
        %v3704 = vpack.c.b16 %v3124, %v3122
        %v3705 = vpack.c.b16 %v3125, %v3123
        %v3706 = vpack.c.b16 %v3128, %v3126
        %v3707 = vpack.c.b16 %v3129, %v3127
        %v3708 = vpack.c.b16 %v3132, %v3130
        %v3709 = vpack.c.b16 %v3133, %v3131
        %4286 = vmatprep.subr.bf16.mxu0 %v3135
        %4287 = vmatpush1.bf16.msra.mxu0 %v3134
        %4288 = vmatprep.subr.bf16.mxu0 %v3137
        %4289 = vmatpush1.bf16.msra.mxu0 %v3136
        %4290 = vmatprep.subr.bf16.mxu0 %v3139
        %4291 = vmatpush1.bf16.msra.mxu0 %v3138
        %4292 = vmatprep.subr.bf16.mxu0 %v3141
        %4293 = vmatpush1.bf16.msra.mxu0 %v3140
        %4294 = vmatprep.subr.bf16.mxu0 %v3143
        %4295 = vmatpush1.bf16.msra.mxu0 %v3142
        %4296 = vmatprep.subr.bf16.mxu0 %v3145
        %4297 = vmatpush1.bf16.msra.mxu0 %v3144
        %4298 = vmatprep.subr.bf16.mxu0 %v3147
        %4299 = vmatpush1.bf16.msra.mxu0 %v3146
        %4300 = vmatprep.subr.bf16.mxu0 %v3149
        %4301 = vmatpush1.bf16.msra.mxu0 %v3148
        %4302 = vmatprep.subr.bf16.mxu0 %v3151
        %4303 = vmatpush1.bf16.msra.mxu0 %v3150
        %4304 = vmatprep.subr.bf16.mxu0 %v3153
        %4305 = vmatpush1.bf16.msra.mxu0 %v3152
        %4306 = vmatprep.subr.bf16.mxu0 %v3155
        %4307 = vmatpush1.bf16.msra.mxu0 %v3154
        %4308 = vmatprep.subr.bf16.mxu0 %v3157
        %4309 = vmatpush1.bf16.msra.mxu0 %v3156
        %4310 = vmatprep.subr.bf16.mxu0 %v3159
        %4311 = vmatpush1.bf16.msra.mxu0 %v3158
        %4312 = vmatprep.subr.bf16.mxu0 %v3161
        %4313 = vmatpush1.bf16.msra.mxu0 %v3160
        %4314 = vmatprep.subr.bf16.mxu0 %v3163
        %4315 = vmatpush1.bf16.msra.mxu0 %v3162
        %4316 = vmatprep.subr.bf16.mxu0 %v3165
        %4317 = vmatpush1.bf16.msra.mxu0 %v3164
        %4318 = vmatprep.mubr.bf16.mxu0 %v1263
        %4319 = vmatmul.mubr.bf16.gmra.mrb[0].mxu0 %v1262
        %v4320 = vpop.f32.mrb[0].mxu0
        %v4321 = vadd.f32 0.0, %v4320
        %v4322 = vpop.f32.mrb[0].mxu0
        %v4323 = vadd.f32 0.0, %v4322
        %v4324 = vpop.f32.mrb[0].mxu0
        %v4325 = vadd.f32 0.0, %v4324
        %v4326 = vpop.f32.mrb[0].mxu0
        %v4327 = vadd.f32 0.0, %v4326
        %4328 = vmatprep.mubr.bf16.mxu0 %v1299
        %4329 = vmatmul.mubr.bf16.gmra.mrb[0].mxu0 %v1298
        %v4330 = vpop.f32.mrb[0].mxu0
        %v4331 = vadd.f32 0.0, %v4330
        %v4332 = vpop.f32.mrb[0].mxu0
        %v4333 = vadd.f32 0.0, %v4332
        %v4334 = vpop.f32.mrb[0].mxu0
        %v4335 = vadd.f32 0.0, %v4334
        %v4336 = vpop.f32.mrb[0].mxu0
        %v4337 = vadd.f32 0.0, %v4336
        %4338 = vdwg.mxu0
        %4339 = vmatprep.subr.bf16.mxu0 %v3167
        %4340 = vmatpush1.bf16.msra.mxu0 %v3166
        %4341 = vmatprep.subr.bf16.mxu0 %v3169
        %4342 = vmatpush1.bf16.msra.mxu0 %v3168
        %4343 = vmatprep.subr.bf16.mxu0 %v3171
        %4344 = vmatpush1.bf16.msra.mxu0 %v3170
        %4345 = vmatprep.subr.bf16.mxu0 %v3173
        %4346 = vmatpush1.bf16.msra.mxu0 %v3172
        %4347 = vmatprep.subr.bf16.mxu0 %v3175
        %4348 = vmatpush1.bf16.msra.mxu0 %v3174
        %4349 = vmatprep.subr.bf16.mxu0 %v3177
        %4350 = vmatpush1.bf16.msra.mxu0 %v3176
        %4351 = vmatprep.subr.bf16.mxu0 %v3179
        %4352 = vmatpush1.bf16.msra.mxu0 %v3178
        %4353 = vmatprep.subr.bf16.mxu0 %v3181
        %4354 = vmatpush1.bf16.msra.mxu0 %v3180
        %4355 = vmatprep.subr.bf16.mxu0 %v3183
        %4356 = vmatpush1.bf16.msra.mxu0 %v3182
        %4357 = vmatprep.subr.bf16.mxu0 %v3185
        %4358 = vmatpush1.bf16.msra.mxu0 %v3184
        %4359 = vmatprep.subr.bf16.mxu0 %v3187
        %4360 = vmatpush1.bf16.msra.mxu0 %v3186
        %4361 = vmatprep.subr.bf16.mxu0 %v3189
        %4362 = vmatpush1.bf16.msra.mxu0 %v3188
        %4363 = vmatprep.subr.bf16.mxu0 %v3191
        %4364 = vmatpush1.bf16.msra.mxu0 %v3190
        %4365 = vmatprep.subr.bf16.mxu0 %v3193
        %4366 = vmatpush1.bf16.msra.mxu0 %v3192
        %4367 = vmatprep.subr.bf16.mxu0 %v3195
        %4368 = vmatpush1.bf16.msra.mxu0 %v3194
        %4369 = vmatprep.subr.bf16.mxu0 %v3197
        %4370 = vmatpush1.bf16.msra.mxu0 %v3196
        %4371 = vmatprep.mubr.bf16.mxu0 %v1265
        %4372 = vmatmul.mubr.bf16.gmra.mrb[0].mxu0 %v1264
        %v4373 = vpop.f32.mrb[0].mxu0
        %v4374 = vadd.f32 %v4321, %v4373
        %v4375 = vpop.f32.mrb[0].mxu0
        %v4376 = vadd.f32 %v4323, %v4375
        %v4377 = vpop.f32.mrb[0].mxu0
        %v4378 = vadd.f32 %v4325, %v4377
        %v4379 = vpop.f32.mrb[0].mxu0
        %v4380 = vadd.f32 %v4327, %v4379
        %4381 = vmatprep.mubr.bf16.mxu0 %v1301
        %4382 = vmatmul.mubr.bf16.gmra.mrb[0].mxu0 %v1300
        %v4383 = vpop.f32.mrb[0].mxu0
        %v4384 = vadd.f32 %v4331, %v4383
        %v4385 = vpop.f32.mrb[0].mxu0
        %v4386 = vadd.f32 %v4333, %v4385
        %v4387 = vpop.f32.mrb[0].mxu0
        %v4388 = vadd.f32 %v4335, %v4387
        %v4389 = vpop.f32.mrb[0].mxu0
        %v4390 = vadd.f32 %v4337, %v4389
        %4391 = vdwg.mxu0
        %4392 = vmatprep.subr.bf16.mxu0 %v3199
        %4393 = vmatpush1.bf16.msra.mxu0 %v3198
        %4394 = vmatprep.subr.bf16.mxu0 %v3201
        %4395 = vmatpush1.bf16.msra.mxu0 %v3200
        %4396 = vmatprep.subr.bf16.mxu0 %v3203
        %4397 = vmatpush1.bf16.msra.mxu0 %v3202
        %4398 = vmatprep.subr.bf16.mxu0 %v3205
        %4399 = vmatpush1.bf16.msra.mxu0 %v3204
        %4400 = vmatprep.subr.bf16.mxu0 %v3207
        %4401 = vmatpush1.bf16.msra.mxu0 %v3206
        %4402 = vmatprep.subr.bf16.mxu0 %v3209
        %4403 = vmatpush1.bf16.msra.mxu0 %v3208
        %4404 = vmatprep.subr.bf16.mxu0 %v3211
        %4405 = vmatpush1.bf16.msra.mxu0 %v3210
        %4406 = vmatprep.subr.bf16.mxu0 %v3213
        %4407 = vmatpush1.bf16.msra.mxu0 %v3212
        %4408 = vmatprep.subr.bf16.mxu0 %v3215
        %4409 = vmatpush1.bf16.msra.mxu0 %v3214
        %4410 = vmatprep.subr.bf16.mxu0 %v3217
        %4411 = vmatpush1.bf16.msra.mxu0 %v3216
        %4412 = vmatprep.subr.bf16.mxu0 %v3219
        %4413 = vmatpush1.bf16.msra.mxu0 %v3218
        %4414 = vmatprep.subr.bf16.mxu0 %v3221
        %4415 = vmatpush1.bf16.msra.mxu0 %v3220
        %4416 = vmatprep.subr.bf16.mxu0 %v3223
        %4417 = vmatpush1.bf16.msra.mxu0 %v3222
        %4418 = vmatprep.subr.bf16.mxu0 %v3225
        %4419 = vmatpush1.bf16.msra.mxu0 %v3224
        %4420 = vmatprep.subr.bf16.mxu0 %v3227
        %4421 = vmatpush1.bf16.msra.mxu0 %v3226
        %4422 = vmatprep.subr.bf16.mxu0 %v3229
        %4423 = vmatpush1.bf16.msra.mxu0 %v3228
        %4424 = vmatprep.mubr.bf16.mxu0 %v1267
        %4425 = vmatmul.mubr.bf16.gmra.mrb[0].mxu0 %v1266
        %v4426 = vpop.f32.mrb[0].mxu0
        %v4427 = vadd.f32 %v4374, %v4426
        %v4428 = vpop.f32.mrb[0].mxu0
        %v4429 = vadd.f32 %v4376, %v4428
        %v4430 = vpop.f32.mrb[0].mxu0
        %v4431 = vadd.f32 %v4378, %v4430
        %v4432 = vpop.f32.mrb[0].mxu0
        %v4433 = vadd.f32 %v4380, %v4432
        %4434 = vmatprep.mubr.bf16.mxu0 %v1303
        %4435 = vmatmul.mubr.bf16.gmra.mrb[0].mxu0 %v1302
        %v4436 = vpop.f32.mrb[0].mxu0
        %v4437 = vadd.f32 %v4384, %v4436
        %v4438 = vpop.f32.mrb[0].mxu0
        %v4439 = vadd.f32 %v4386, %v4438
        %v4440 = vpop.f32.mrb[0].mxu0
        %v4441 = vadd.f32 %v4388, %v4440
        %v4442 = vpop.f32.mrb[0].mxu0
        %v4443 = vadd.f32 %v4390, %v4442
        %4444 = vdwg.mxu0
        %4445 = vmatprep.subr.bf16.mxu0 %v3231
        %4446 = vmatpush1.bf16.msra.mxu0 %v3230
        %4447 = vmatprep.subr.bf16.mxu0 %v3233
        %4448 = vmatpush1.bf16.msra.mxu0 %v3232
        %4449 = vmatprep.subr.bf16.mxu0 %v3235
        %4450 = vmatpush1.bf16.msra.mxu0 %v3234
        %4451 = vmatprep.subr.bf16.mxu0 %v3237
        %4452 = vmatpush1.bf16.msra.mxu0 %v3236
        %4453 = vmatprep.subr.bf16.mxu0 %v3239
        %4454 = vmatpush1.bf16.msra.mxu0 %v3238
        %4455 = vmatprep.subr.bf16.mxu0 %v3241
        %4456 = vmatpush1.bf16.msra.mxu0 %v3240
        %4457 = vmatprep.subr.bf16.mxu0 %v3243
        %4458 = vmatpush1.bf16.msra.mxu0 %v3242
        %4459 = vmatprep.subr.bf16.mxu0 %v3245
        %4460 = vmatpush1.bf16.msra.mxu0 %v3244
        %4461 = vmatprep.subr.bf16.mxu0 %v3247
        %4462 = vmatpush1.bf16.msra.mxu0 %v3246
        %4463 = vmatprep.subr.bf16.mxu0 %v3249
        %4464 = vmatpush1.bf16.msra.mxu0 %v3248
        %4465 = vmatprep.subr.bf16.mxu0 %v3251
        %4466 = vmatpush1.bf16.msra.mxu0 %v3250
        %4467 = vmatprep.subr.bf16.mxu0 %v3253
        %4468 = vmatpush1.bf16.msra.mxu0 %v3252
        %4469 = vmatprep.subr.bf16.mxu0 %v3255
        %4470 = vmatpush1.bf16.msra.mxu0 %v3254
        %4471 = vmatprep.subr.bf16.mxu0 %v3257
        %4472 = vmatpush1.bf16.msra.mxu0 %v3256
        %4473 = vmatprep.subr.bf16.mxu0 %v3259
        %4474 = vmatpush1.bf16.msra.mxu0 %v3258
        %4475 = vmatprep.subr.bf16.mxu0 %v3261
        %4476 = vmatpush1.bf16.msra.mxu0 %v3260
        %4477 = vmatprep.mubr.bf16.mxu0 %v1269
        %4478 = vmatmul.mubr.bf16.gmra.mrb[0].mxu0 %v1268
        %v4479 = vpop.f32.mrb[0].mxu0
        %v4480 = vadd.f32 %v4427, %v4479
        %v4481 = vpop.f32.mrb[0].mxu0
        %v4482 = vadd.f32 %v4429, %v4481
        %v4483 = vpop.f32.mrb[0].mxu0
        %v4484 = vadd.f32 %v4431, %v4483
        %v4485 = vpop.f32.mrb[0].mxu0
        %v4486 = vadd.f32 %v4433, %v4485
        %4487 = vmatprep.mubr.bf16.mxu0 %v1305
        %4488 = vmatmul.mubr.bf16.gmra.mrb[0].mxu0 %v1304
        %v4489 = vpop.f32.mrb[0].mxu0
        %v4490 = vadd.f32 %v4437, %v4489
        %v4491 = vpop.f32.mrb[0].mxu0
        %v4492 = vadd.f32 %v4439, %v4491
        %v4493 = vpop.f32.mrb[0].mxu0
        %v4494 = vadd.f32 %v4441, %v4493
        %v4495 = vpop.f32.mrb[0].mxu0
        %v4496 = vadd.f32 %v4443, %v4495
        %4497 = vdwg.mxu0
        %4498 = vmatprep.subr.bf16.mxu0 %v3263
        %4499 = vmatpush1.bf16.msra.mxu0 %v3262
        %4500 = vmatprep.subr.bf16.mxu0 %v3265
        %4501 = vmatpush1.bf16.msra.mxu0 %v3264
        %4502 = vmatprep.subr.bf16.mxu0 %v3267
        %4503 = vmatpush1.bf16.msra.mxu0 %v3266
        %4504 = vmatprep.subr.bf16.mxu0 %v3269
        %4505 = vmatpush1.bf16.msra.mxu0 %v3268
        %4506 = vmatprep.subr.bf16.mxu0 %v3271
        %4507 = vmatpush1.bf16.msra.mxu0 %v3270
        %4508 = vmatprep.subr.bf16.mxu0 %v3273
        %4509 = vmatpush1.bf16.msra.mxu0 %v3272
        %4510 = vmatprep.subr.bf16.mxu0 %v3275
        %4511 = vmatpush1.bf16.msra.mxu0 %v3274
        %4512 = vmatprep.subr.bf16.mxu0 %v3277
        %4513 = vmatpush1.bf16.msra.mxu0 %v3276
        %4514 = vmatprep.subr.bf16.mxu0 %v3279
        %4515 = vmatpush1.bf16.msra.mxu0 %v3278
        %4516 = vmatprep.subr.bf16.mxu0 %v3281
        %4517 = vmatpush1.bf16.msra.mxu0 %v3280
        %4518 = vmatprep.subr.bf16.mxu0 %v3283
        %4519 = vmatpush1.bf16.msra.mxu0 %v3282
        %4520 = vmatprep.subr.bf16.mxu0 %v3285
        %4521 = vmatpush1.bf16.msra.mxu0 %v3284
        %4522 = vmatprep.subr.bf16.mxu0 %v3287
        %4523 = vmatpush1.bf16.msra.mxu0 %v3286
        %4524 = vmatprep.subr.bf16.mxu0 %v3289
        %4525 = vmatpush1.bf16.msra.mxu0 %v3288
        %4526 = vmatprep.subr.bf16.mxu0 %v3291
        %4527 = vmatpush1.bf16.msra.mxu0 %v3290
        %4528 = vmatprep.subr.bf16.mxu0 %v3293
        %4529 = vmatpush1.bf16.msra.mxu0 %v3292
        %4530 = vmatprep.mubr.bf16.mxu0 %v1271
        %4531 = vmatmul.mubr.bf16.gmra.mrb[0].mxu0 %v1270
        %v4532 = vpop.f32.mrb[0].mxu0
        %v4533 = vadd.f32 %v4480, %v4532
        %v4534 = vpop.f32.mrb[0].mxu0
        %v4535 = vadd.f32 %v4482, %v4534
        %v4536 = vpop.f32.mrb[0].mxu0
        %v4537 = vadd.f32 %v4484, %v4536
        %v4538 = vpop.f32.mrb[0].mxu0
        %v4539 = vadd.f32 %v4486, %v4538
        %4540 = vmatprep.mubr.bf16.mxu0 %v1307
        %4541 = vmatmul.mubr.bf16.gmra.mrb[0].mxu0 %v1306
        %v4542 = vpop.f32.mrb[0].mxu0
        %v4543 = vadd.f32 %v4490, %v4542
        %v4544 = vpop.f32.mrb[0].mxu0
        %v4545 = vadd.f32 %v4492, %v4544
        %v4546 = vpop.f32.mrb[0].mxu0
        %v4547 = vadd.f32 %v4494, %v4546
        %v4548 = vpop.f32.mrb[0].mxu0
        %v4549 = vadd.f32 %v4496, %v4548
        %4550 = vdwg.mxu0
        %4551 = vmatprep.subr.bf16.mxu0 %v3295
        %4552 = vmatpush1.bf16.msra.mxu0 %v3294
        %4553 = vmatprep.subr.bf16.mxu0 %v3297
        %4554 = vmatpush1.bf16.msra.mxu0 %v3296
        %4555 = vmatprep.subr.bf16.mxu0 %v3299
        %4556 = vmatpush1.bf16.msra.mxu0 %v3298
        %4557 = vmatprep.subr.bf16.mxu0 %v3301
        %4558 = vmatpush1.bf16.msra.mxu0 %v3300
        %4559 = vmatprep.subr.bf16.mxu0 %v3303
        %4560 = vmatpush1.bf16.msra.mxu0 %v3302
        %4561 = vmatprep.subr.bf16.mxu0 %v3305
        %4562 = vmatpush1.bf16.msra.mxu0 %v3304
        %4563 = vmatprep.subr.bf16.mxu0 %v3307
        %4564 = vmatpush1.bf16.msra.mxu0 %v3306
        %4565 = vmatprep.subr.bf16.mxu0 %v3309
        %4566 = vmatpush1.bf16.msra.mxu0 %v3308
        %4567 = vmatprep.subr.bf16.mxu0 %v3311
        %4568 = vmatpush1.bf16.msra.mxu0 %v3310
        %4569 = vmatprep.subr.bf16.mxu0 %v3313
        %4570 = vmatpush1.bf16.msra.mxu0 %v3312
        %4571 = vmatprep.subr.bf16.mxu0 %v3315
        %4572 = vmatpush1.bf16.msra.mxu0 %v3314
        %4573 = vmatprep.subr.bf16.mxu0 %v3317
        %4574 = vmatpush1.bf16.msra.mxu0 %v3316
        %4575 = vmatprep.subr.bf16.mxu0 %v3319
        %4576 = vmatpush1.bf16.msra.mxu0 %v3318
        %4577 = vmatprep.subr.bf16.mxu0 %v3321
        %4578 = vmatpush1.bf16.msra.mxu0 %v3320
        %4579 = vmatprep.subr.bf16.mxu0 %v3323
        %4580 = vmatpush1.bf16.msra.mxu0 %v3322
        %4581 = vmatprep.subr.bf16.mxu0 %v3325
        %4582 = vmatpush1.bf16.msra.mxu0 %v3324
        %4583 = vmatprep.mubr.bf16.mxu0 %v1273
        %4584 = vmatmul.mubr.bf16.gmra.mrb[0].mxu0 %v1272
        %v4585 = vpop.f32.mrb[0].mxu0
        %v4586 = vadd.f32 %v4533, %v4585
        %v4587 = vpop.f32.mrb[0].mxu0
        %v4588 = vadd.f32 %v4535, %v4587
        %v4589 = vpop.f32.mrb[0].mxu0
        %v4590 = vadd.f32 %v4537, %v4589
        %v4591 = vpop.f32.mrb[0].mxu0
        %v4592 = vadd.f32 %v4539, %v4591
        %4593 = vmatprep.mubr.bf16.mxu0 %v1309
        %4594 = vmatmul.mubr.bf16.gmra.mrb[0].mxu0 %v1308
        %v4595 = vpop.f32.mrb[0].mxu0
        %v4596 = vadd.f32 %v4543, %v4595
        %v4597 = vpop.f32.mrb[0].mxu0
        %v4598 = vadd.f32 %v4545, %v4597
        %v4599 = vpop.f32.mrb[0].mxu0
        %v4600 = vadd.f32 %v4547, %v4599
        %v4601 = vpop.f32.mrb[0].mxu0
        %v4602 = vadd.f32 %v4549, %v4601
        %4603 = vdwg.mxu0
        %4604 = vmatprep.subr.bf16.mxu0 %v3327
        %4605 = vmatpush1.bf16.msra.mxu0 %v3326
        %4606 = vmatprep.subr.bf16.mxu0 %v3329
        %4607 = vmatpush1.bf16.msra.mxu0 %v3328
        %4608 = vmatprep.subr.bf16.mxu0 %v3331
        %4609 = vmatpush1.bf16.msra.mxu0 %v3330
        %4610 = vmatprep.subr.bf16.mxu0 %v3333
        %4611 = vmatpush1.bf16.msra.mxu0 %v3332
        %4612 = vmatprep.subr.bf16.mxu0 %v3335
        %4613 = vmatpush1.bf16.msra.mxu0 %v3334
        %4614 = vmatprep.subr.bf16.mxu0 %v3337
        %4615 = vmatpush1.bf16.msra.mxu0 %v3336
        %4616 = vmatprep.subr.bf16.mxu0 %v3339
        %4617 = vmatpush1.bf16.msra.mxu0 %v3338
        %4618 = vmatprep.subr.bf16.mxu0 %v3341
        %4619 = vmatpush1.bf16.msra.mxu0 %v3340
        %4620 = vmatprep.subr.bf16.mxu0 %v3343
        %4621 = vmatpush1.bf16.msra.mxu0 %v3342
        %4622 = vmatprep.subr.bf16.mxu0 %v3345
        %4623 = vmatpush1.bf16.msra.mxu0 %v3344
        %4624 = vmatprep.subr.bf16.mxu0 %v3347
        %4625 = vmatpush1.bf16.msra.mxu0 %v3346
        %4626 = vmatprep.subr.bf16.mxu0 %v3349
        %4627 = vmatpush1.bf16.msra.mxu0 %v3348
        %4628 = vmatprep.subr.bf16.mxu0 %v3351
        %4629 = vmatpush1.bf16.msra.mxu0 %v3350
        %4630 = vmatprep.subr.bf16.mxu0 %v3353
        %4631 = vmatpush1.bf16.msra.mxu0 %v3352
        %4632 = vmatprep.subr.bf16.mxu0 %v3355
        %4633 = vmatpush1.bf16.msra.mxu0 %v3354
        %4634 = vmatprep.subr.bf16.mxu0 %v3357
        %4635 = vmatpush1.bf16.msra.mxu0 %v3356
        %4636 = vmatprep.mubr.bf16.mxu0 %v1275
        %4637 = vmatmul.mubr.bf16.gmra.mrb[0].mxu0 %v1274
        %v4638 = vpop.f32.mrb[0].mxu0
        %v4639 = vadd.f32 %v4586, %v4638
        %v4640 = vpop.f32.mrb[0].mxu0
        %v4641 = vadd.f32 %v4588, %v4640
        %v4642 = vpop.f32.mrb[0].mxu0
        %v4643 = vadd.f32 %v4590, %v4642
        %v4644 = vpop.f32.mrb[0].mxu0
        %v4645 = vadd.f32 %v4592, %v4644
        %4646 = vmatprep.mubr.bf16.mxu0 %v1311
        %4647 = vmatmul.mubr.bf16.gmra.mrb[0].mxu0 %v1310
        %v4648 = vpop.f32.mrb[0].mxu0
        %v4649 = vadd.f32 %v4596, %v4648
        %v4650 = vpop.f32.mrb[0].mxu0
        %v4651 = vadd.f32 %v4598, %v4650
        %v4652 = vpop.f32.mrb[0].mxu0
        %v4653 = vadd.f32 %v4600, %v4652
        %v4654 = vpop.f32.mrb[0].mxu0
        %v4655 = vadd.f32 %v4602, %v4654
        %4656 = vdwg.mxu0
        %4657 = vmatprep.subr.bf16.mxu0 %v3359
        %4658 = vmatpush1.bf16.msra.mxu0 %v3358
        %4659 = vmatprep.subr.bf16.mxu0 %v3361
        %4660 = vmatpush1.bf16.msra.mxu0 %v3360
        %4661 = vmatprep.subr.bf16.mxu0 %v3363
        %4662 = vmatpush1.bf16.msra.mxu0 %v3362
        %4663 = vmatprep.subr.bf16.mxu0 %v3365
        %4664 = vmatpush1.bf16.msra.mxu0 %v3364
        %4665 = vmatprep.subr.bf16.mxu0 %v3367
        %4666 = vmatpush1.bf16.msra.mxu0 %v3366
        %4667 = vmatprep.subr.bf16.mxu0 %v3369
        %4668 = vmatpush1.bf16.msra.mxu0 %v3368
        %4669 = vmatprep.subr.bf16.mxu0 %v3371
        %4670 = vmatpush1.bf16.msra.mxu0 %v3370
        %4671 = vmatprep.subr.bf16.mxu0 %v3373
        %4672 = vmatpush1.bf16.msra.mxu0 %v3372
        %4673 = vmatprep.subr.bf16.mxu0 %v3375
        %4674 = vmatpush1.bf16.msra.mxu0 %v3374
        %4675 = vmatprep.subr.bf16.mxu0 %v3377
        %4676 = vmatpush1.bf16.msra.mxu0 %v3376
        %4677 = vmatprep.subr.bf16.mxu0 %v3379
        %4678 = vmatpush1.bf16.msra.mxu0 %v3378
        %4679 = vmatprep.subr.bf16.mxu0 %v3381
        %4680 = vmatpush1.bf16.msra.mxu0 %v3380
        %4681 = vmatprep.subr.bf16.mxu0 %v3383
        %4682 = vmatpush1.bf16.msra.mxu0 %v3382
        %4683 = vmatprep.subr.bf16.mxu0 %v3385
        %4684 = vmatpush1.bf16.msra.mxu0 %v3384
        %4685 = vmatprep.subr.bf16.mxu0 %v3387
        %4686 = vmatpush1.bf16.msra.mxu0 %v3386
        %4687 = vmatprep.subr.bf16.mxu0 %v3389
        %4688 = vmatpush1.bf16.msra.mxu0 %v3388
        %4689 = vmatprep.mubr.bf16.mxu0 %v1277
        %4690 = vmatmul.mubr.bf16.gmra.mrb[0].mxu0 %v1276
        %v4691 = vpop.f32.mrb[0].mxu0
        %v4692 = vadd.f32 %v4639, %v4691
        %v4693 = vpop.f32.mrb[0].mxu0
        %v4694 = vadd.f32 %v4641, %v4693
        %v4695 = vpop.f32.mrb[0].mxu0
        %v4696 = vadd.f32 %v4643, %v4695
        %v4697 = vpop.f32.mrb[0].mxu0
        %v4698 = vadd.f32 %v4645, %v4697
        %4699 = vmatprep.mubr.bf16.mxu0 %v1313
        %4700 = vmatmul.mubr.bf16.gmra.mrb[0].mxu0 %v1312
        %v4701 = vpop.f32.mrb[0].mxu0
        %v4702 = vadd.f32 %v4649, %v4701
        %v4703 = vpop.f32.mrb[0].mxu0
        %v4704 = vadd.f32 %v4651, %v4703
        %v4705 = vpop.f32.mrb[0].mxu0
        %v4706 = vadd.f32 %v4653, %v4705
        %v4707 = vpop.f32.mrb[0].mxu0
        %v4708 = vadd.f32 %v4655, %v4707
        %4709 = vdwg.mxu0
        %4710 = vmatprep.subr.bf16.mxu0 %v3391
        %4711 = vmatpush1.bf16.msra.mxu0 %v3390
        %4712 = vmatprep.subr.bf16.mxu0 %v3393
        %4713 = vmatpush1.bf16.msra.mxu0 %v3392
        %4714 = vmatprep.subr.bf16.mxu0 %v3395
        %4715 = vmatpush1.bf16.msra.mxu0 %v3394
        %4716 = vmatprep.subr.bf16.mxu0 %v3397
        %4717 = vmatpush1.bf16.msra.mxu0 %v3396
        %4718 = vmatprep.subr.bf16.mxu0 %v3399
        %4719 = vmatpush1.bf16.msra.mxu0 %v3398
        %4720 = vmatprep.subr.bf16.mxu0 %v3401
        %4721 = vmatpush1.bf16.msra.mxu0 %v3400
        %4722 = vmatprep.subr.bf16.mxu0 %v3403
        %4723 = vmatpush1.bf16.msra.mxu0 %v3402
        %4724 = vmatprep.subr.bf16.mxu0 %v3405
        %4725 = vmatpush1.bf16.msra.mxu0 %v3404
        %4726 = vmatprep.subr.bf16.mxu0 %v3407
        %4727 = vmatpush1.bf16.msra.mxu0 %v3406
        %4728 = vmatprep.subr.bf16.mxu0 %v3409
        %4729 = vmatpush1.bf16.msra.mxu0 %v3408
        %4730 = vmatprep.subr.bf16.mxu0 %v3411
        %4731 = vmatpush1.bf16.msra.mxu0 %v3410
        %4732 = vmatprep.subr.bf16.mxu0 %v3413
        %4733 = vmatpush1.bf16.msra.mxu0 %v3412
        %4734 = vmatprep.subr.bf16.mxu0 %v3415
        %4735 = vmatpush1.bf16.msra.mxu0 %v3414
        %4736 = vmatprep.subr.bf16.mxu0 %v3417
        %4737 = vmatpush1.bf16.msra.mxu0 %v3416
        %4738 = vmatprep.subr.bf16.mxu0 %v3419
        %4739 = vmatpush1.bf16.msra.mxu0 %v3418
        %4740 = vmatprep.subr.bf16.mxu0 %v3421
        %4741 = vmatpush1.bf16.msra.mxu0 %v3420
        %4742 = vmatprep.mubr.bf16.mxu0 %v1279
        %4743 = vmatmul.mubr.bf16.gmra.mrb[0].mxu0 %v1278
        %v4744 = vpop.f32.mrb[0].mxu0
        %v4745 = vadd.f32 %v4692, %v4744
        %v4746 = vpop.f32.mrb[0].mxu0
        %v4747 = vadd.f32 %v4694, %v4746
        %v4748 = vpop.f32.mrb[0].mxu0
        %v4749 = vadd.f32 %v4696, %v4748
        %v4750 = vpop.f32.mrb[0].mxu0
        %v4751 = vadd.f32 %v4698, %v4750
        %4752 = vmatprep.mubr.bf16.mxu0 %v1315
        %4753 = vmatmul.mubr.bf16.gmra.mrb[0].mxu0 %v1314
        %v4754 = vpop.f32.mrb[0].mxu0
        %v4755 = vadd.f32 %v4702, %v4754
        %v4756 = vpop.f32.mrb[0].mxu0
        %v4757 = vadd.f32 %v4704, %v4756
        %v4758 = vpop.f32.mrb[0].mxu0
        %v4759 = vadd.f32 %v4706, %v4758
        %v4760 = vpop.f32.mrb[0].mxu0
        %v4761 = vadd.f32 %v4708, %v4760
        %4762 = vdwg.mxu0
        %4763 = vmatprep.subr.bf16.mxu0 %v3423
        %4764 = vmatpush1.bf16.msra.mxu0 %v3422
        %4765 = vmatprep.subr.bf16.mxu0 %v3425
        %4766 = vmatpush1.bf16.msra.mxu0 %v3424
        %4767 = vmatprep.subr.bf16.mxu0 %v3427
        %4768 = vmatpush1.bf16.msra.mxu0 %v3426
        %4769 = vmatprep.subr.bf16.mxu0 %v3429
        %4770 = vmatpush1.bf16.msra.mxu0 %v3428
        %4771 = vmatprep.subr.bf16.mxu0 %v3431
        %4772 = vmatpush1.bf16.msra.mxu0 %v3430
        %4773 = vmatprep.subr.bf16.mxu0 %v3433
        %4774 = vmatpush1.bf16.msra.mxu0 %v3432
        %4775 = vmatprep.subr.bf16.mxu0 %v3435
        %4776 = vmatpush1.bf16.msra.mxu0 %v3434
        %4777 = vmatprep.subr.bf16.mxu0 %v3437
        %4778 = vmatpush1.bf16.msra.mxu0 %v3436
        %4779 = vmatprep.subr.bf16.mxu0 %v3439
        %4780 = vmatpush1.bf16.msra.mxu0 %v3438
        %4781 = vmatprep.subr.bf16.mxu0 %v3441
        %4782 = vmatpush1.bf16.msra.mxu0 %v3440
        %4783 = vmatprep.subr.bf16.mxu0 %v3443
        %4784 = vmatpush1.bf16.msra.mxu0 %v3442
        %4785 = vmatprep.subr.bf16.mxu0 %v3445
        %4786 = vmatpush1.bf16.msra.mxu0 %v3444
        %4787 = vmatprep.subr.bf16.mxu0 %v3447
        %4788 = vmatpush1.bf16.msra.mxu0 %v3446
        %4789 = vmatprep.subr.bf16.mxu0 %v3449
        %4790 = vmatpush1.bf16.msra.mxu0 %v3448
        %4791 = vmatprep.subr.bf16.mxu0 %v3451
        %4792 = vmatpush1.bf16.msra.mxu0 %v3450
        %4793 = vmatprep.subr.bf16.mxu0 %v3453
        %4794 = vmatpush1.bf16.msra.mxu0 %v3452
        %4795 = vmatprep.mubr.bf16.mxu0 %v1281
        %4796 = vmatmul.mubr.bf16.gmra.mrb[0].mxu0 %v1280
        %v4797 = vpop.f32.mrb[0].mxu0
        %v4798 = vadd.f32 %v4745, %v4797
        %v4799 = vpop.f32.mrb[0].mxu0
        %v4800 = vadd.f32 %v4747, %v4799
        %v4801 = vpop.f32.mrb[0].mxu0
        %v4802 = vadd.f32 %v4749, %v4801
        %v4803 = vpop.f32.mrb[0].mxu0
        %v4804 = vadd.f32 %v4751, %v4803
        %4805 = vmatprep.mubr.bf16.mxu0 %v1317
        %4806 = vmatmul.mubr.bf16.gmra.mrb[0].mxu0 %v1316
        %v4807 = vpop.f32.mrb[0].mxu0
        %v4808 = vadd.f32 %v4755, %v4807
        %v4809 = vpop.f32.mrb[0].mxu0
        %v4810 = vadd.f32 %v4757, %v4809
        %v4811 = vpop.f32.mrb[0].mxu0
        %v4812 = vadd.f32 %v4759, %v4811
        %v4813 = vpop.f32.mrb[0].mxu0
        %v4814 = vadd.f32 %v4761, %v4813
        %4815 = vdwg.mxu0
        %4816 = vmatprep.subr.bf16.mxu0 %v3455
        %4817 = vmatpush1.bf16.msra.mxu0 %v3454
        %4818 = vmatprep.subr.bf16.mxu0 %v3457
        %4819 = vmatpush1.bf16.msra.mxu0 %v3456
        %4820 = vmatprep.subr.bf16.mxu0 %v3459
        %4821 = vmatpush1.bf16.msra.mxu0 %v3458
        %4822 = vmatprep.subr.bf16.mxu0 %v3461
        %4823 = vmatpush1.bf16.msra.mxu0 %v3460
        %4824 = vmatprep.subr.bf16.mxu0 %v3463
        %4825 = vmatpush1.bf16.msra.mxu0 %v3462
        %4826 = vmatprep.subr.bf16.mxu0 %v3465
        %4827 = vmatpush1.bf16.msra.mxu0 %v3464
        %4828 = vmatprep.subr.bf16.mxu0 %v3467
        %4829 = vmatpush1.bf16.msra.mxu0 %v3466
        %4830 = vmatprep.subr.bf16.mxu0 %v3469
        %4831 = vmatpush1.bf16.msra.mxu0 %v3468
        %4832 = vmatprep.subr.bf16.mxu0 %v3471
        %4833 = vmatpush1.bf16.msra.mxu0 %v3470
        %4834 = vmatprep.subr.bf16.mxu0 %v3473
        %4835 = vmatpush1.bf16.msra.mxu0 %v3472
        %4836 = vmatprep.subr.bf16.mxu0 %v3475
        %4837 = vmatpush1.bf16.msra.mxu0 %v3474
        %4838 = vmatprep.subr.bf16.mxu0 %v3477
        %4839 = vmatpush1.bf16.msra.mxu0 %v3476
        %4840 = vmatprep.subr.bf16.mxu0 %v3479
        %4841 = vmatpush1.bf16.msra.mxu0 %v3478
        %4842 = vmatprep.subr.bf16.mxu0 %v3481
        %4843 = vmatpush1.bf16.msra.mxu0 %v3480
        %4844 = vmatprep.subr.bf16.mxu0 %v3483
        %4845 = vmatpush1.bf16.msra.mxu0 %v3482
        %4846 = vmatprep.subr.bf16.mxu0 %v3485
        %4847 = vmatpush1.bf16.msra.mxu0 %v3484
        %4848 = vmatprep.mubr.bf16.mxu0 %v1283
        %4849 = vmatmul.mubr.bf16.gmra.mrb[0].mxu0 %v1282
        %v4850 = vpop.f32.mrb[0].mxu0
        %v4851 = vadd.f32 %v4798, %v4850
        %v4852 = vpop.f32.mrb[0].mxu0
        %v4853 = vadd.f32 %v4800, %v4852
        %v4854 = vpop.f32.mrb[0].mxu0
        %v4855 = vadd.f32 %v4802, %v4854
        %v4856 = vpop.f32.mrb[0].mxu0
        %v4857 = vadd.f32 %v4804, %v4856
        %4858 = vmatprep.mubr.bf16.mxu0 %v1319
        %4859 = vmatmul.mubr.bf16.gmra.mrb[0].mxu0 %v1318
        %v4860 = vpop.f32.mrb[0].mxu0
        %v4861 = vadd.f32 %v4808, %v4860
        %v4862 = vpop.f32.mrb[0].mxu0
        %v4863 = vadd.f32 %v4810, %v4862
        %v4864 = vpop.f32.mrb[0].mxu0
        %v4865 = vadd.f32 %v4812, %v4864
        %v4866 = vpop.f32.mrb[0].mxu0
        %v4867 = vadd.f32 %v4814, %v4866
        %4868 = vdwg.mxu0
        %4869 = vmatprep.subr.bf16.mxu0 %v3487
        %4870 = vmatpush1.bf16.msra.mxu0 %v3486
        %4871 = vmatprep.subr.bf16.mxu0 %v3489
        %4872 = vmatpush1.bf16.msra.mxu0 %v3488
        %4873 = vmatprep.subr.bf16.mxu0 %v3491
        %4874 = vmatpush1.bf16.msra.mxu0 %v3490
        %4875 = vmatprep.subr.bf16.mxu0 %v3493
        %4876 = vmatpush1.bf16.msra.mxu0 %v3492
        %4877 = vmatprep.subr.bf16.mxu0 %v3495
        %4878 = vmatpush1.bf16.msra.mxu0 %v3494
        %4879 = vmatprep.subr.bf16.mxu0 %v3497
        %4880 = vmatpush1.bf16.msra.mxu0 %v3496
        %4881 = vmatprep.subr.bf16.mxu0 %v3499
        %4882 = vmatpush1.bf16.msra.mxu0 %v3498
        %4883 = vmatprep.subr.bf16.mxu0 %v3501
        %4884 = vmatpush1.bf16.msra.mxu0 %v3500
        %4885 = vmatprep.subr.bf16.mxu0 %v3503
        %4886 = vmatpush1.bf16.msra.mxu0 %v3502
        %4887 = vmatprep.subr.bf16.mxu0 %v3505
        %4888 = vmatpush1.bf16.msra.mxu0 %v3504
        %4889 = vmatprep.subr.bf16.mxu0 %v3507
        %4890 = vmatpush1.bf16.msra.mxu0 %v3506
        %4891 = vmatprep.subr.bf16.mxu0 %v3509
        %4892 = vmatpush1.bf16.msra.mxu0 %v3508
        %4893 = vmatprep.subr.bf16.mxu0 %v3511
        %4894 = vmatpush1.bf16.msra.mxu0 %v3510
        %4895 = vmatprep.subr.bf16.mxu0 %v3513
        %4896 = vmatpush1.bf16.msra.mxu0 %v3512
        %4897 = vmatprep.subr.bf16.mxu0 %v3515
        %4898 = vmatpush1.bf16.msra.mxu0 %v3514
        %4899 = vmatprep.subr.bf16.mxu0 %v3517
        %4900 = vmatpush1.bf16.msra.mxu0 %v3516
        %4901 = vmatprep.mubr.bf16.mxu0 %v1285
        %4902 = vmatmul.mubr.bf16.gmra.mrb[0].mxu0 %v1284
        %v4903 = vpop.f32.mrb[0].mxu0
        %v4904 = vadd.f32 %v4851, %v4903
        %v4905 = vpop.f32.mrb[0].mxu0
        %v4906 = vadd.f32 %v4853, %v4905
        %v4907 = vpop.f32.mrb[0].mxu0
        %v4908 = vadd.f32 %v4855, %v4907
        %v4909 = vpop.f32.mrb[0].mxu0
        %v4910 = vadd.f32 %v4857, %v4909
        %4911 = vmatprep.mubr.bf16.mxu0 %v1321
        %4912 = vmatmul.mubr.bf16.gmra.mrb[0].mxu0 %v1320
        %v4913 = vpop.f32.mrb[0].mxu0
        %v4914 = vadd.f32 %v4861, %v4913
        %v4915 = vpop.f32.mrb[0].mxu0
        %v4916 = vadd.f32 %v4863, %v4915
        %v4917 = vpop.f32.mrb[0].mxu0
        %v4918 = vadd.f32 %v4865, %v4917
        %v4919 = vpop.f32.mrb[0].mxu0
        %v4920 = vadd.f32 %v4867, %v4919
        %4921 = vdwg.mxu0
        %4922 = vmatprep.subr.bf16.mxu0 %v3519
        %4923 = vmatpush1.bf16.msra.mxu0 %v3518
        %4924 = vmatprep.subr.bf16.mxu0 %v3521
        %4925 = vmatpush1.bf16.msra.mxu0 %v3520
        %4926 = vmatprep.subr.bf16.mxu0 %v3523
        %4927 = vmatpush1.bf16.msra.mxu0 %v3522
        %4928 = vmatprep.subr.bf16.mxu0 %v3525
        %4929 = vmatpush1.bf16.msra.mxu0 %v3524
        %4930 = vmatprep.subr.bf16.mxu0 %v3527
        %4931 = vmatpush1.bf16.msra.mxu0 %v3526
        %4932 = vmatprep.subr.bf16.mxu0 %v3529
        %4933 = vmatpush1.bf16.msra.mxu0 %v3528
        %4934 = vmatprep.subr.bf16.mxu0 %v3531
        %4935 = vmatpush1.bf16.msra.mxu0 %v3530
        %4936 = vmatprep.subr.bf16.mxu0 %v3533
        %4937 = vmatpush1.bf16.msra.mxu0 %v3532
        %4938 = vmatprep.subr.bf16.mxu0 %v3535
        %4939 = vmatpush1.bf16.msra.mxu0 %v3534
        %4940 = vmatprep.subr.bf16.mxu0 %v3537
        %4941 = vmatpush1.bf16.msra.mxu0 %v3536
        %4942 = vmatprep.subr.bf16.mxu0 %v3539
        %4943 = vmatpush1.bf16.msra.mxu0 %v3538
        %4944 = vmatprep.subr.bf16.mxu0 %v3541
        %4945 = vmatpush1.bf16.msra.mxu0 %v3540
        %4946 = vmatprep.subr.bf16.mxu0 %v3543
        %4947 = vmatpush1.bf16.msra.mxu0 %v3542
        %4948 = vmatprep.subr.bf16.mxu0 %v3545
        %4949 = vmatpush1.bf16.msra.mxu0 %v3544
        %4950 = vmatprep.subr.bf16.mxu0 %v3547
        %4951 = vmatpush1.bf16.msra.mxu0 %v3546
        %4952 = vmatprep.subr.bf16.mxu0 %v3549
        %4953 = vmatpush1.bf16.msra.mxu0 %v3548
        %4954 = vmatprep.mubr.bf16.mxu0 %v1287
        %4955 = vmatmul.mubr.bf16.gmra.mrb[0].mxu0 %v1286
        %v4956 = vpop.f32.mrb[0].mxu0
        %v4957 = vadd.f32 %v4904, %v4956
        %v4958 = vpop.f32.mrb[0].mxu0
        %v4959 = vadd.f32 %v4906, %v4958
        %v4960 = vpop.f32.mrb[0].mxu0
        %v4961 = vadd.f32 %v4908, %v4960
        %v4962 = vpop.f32.mrb[0].mxu0
        %v4963 = vadd.f32 %v4910, %v4962
        %4964 = vmatprep.mubr.bf16.mxu0 %v1323
        %4965 = vmatmul.mubr.bf16.gmra.mrb[0].mxu0 %v1322
        %v4966 = vpop.f32.mrb[0].mxu0
        %v4967 = vadd.f32 %v4914, %v4966
        %v4968 = vpop.f32.mrb[0].mxu0
        %v4969 = vadd.f32 %v4916, %v4968
        %v4970 = vpop.f32.mrb[0].mxu0
        %v4971 = vadd.f32 %v4918, %v4970
        %v4972 = vpop.f32.mrb[0].mxu0
        %v4973 = vadd.f32 %v4920, %v4972
        %4974 = vdwg.mxu0
        %4975 = vmatprep.subr.bf16.mxu0 %v3551
        %4976 = vmatpush1.bf16.msra.mxu0 %v3550
        %4977 = vmatprep.subr.bf16.mxu0 %v3553
        %4978 = vmatpush1.bf16.msra.mxu0 %v3552
        %4979 = vmatprep.subr.bf16.mxu0 %v3555
        %4980 = vmatpush1.bf16.msra.mxu0 %v3554
        %4981 = vmatprep.subr.bf16.mxu0 %v3557
        %4982 = vmatpush1.bf16.msra.mxu0 %v3556
        %4983 = vmatprep.subr.bf16.mxu0 %v3559
        %4984 = vmatpush1.bf16.msra.mxu0 %v3558
        %4985 = vmatprep.subr.bf16.mxu0 %v3561
        %4986 = vmatpush1.bf16.msra.mxu0 %v3560
        %4987 = vmatprep.subr.bf16.mxu0 %v3563
        %4988 = vmatpush1.bf16.msra.mxu0 %v3562
        %4989 = vmatprep.subr.bf16.mxu0 %v3565
        %4990 = vmatpush1.bf16.msra.mxu0 %v3564
        %4991 = vmatprep.subr.bf16.mxu0 %v3567
        %4992 = vmatpush1.bf16.msra.mxu0 %v3566
        %4993 = vmatprep.subr.bf16.mxu0 %v3569
        %4994 = vmatpush1.bf16.msra.mxu0 %v3568
        %4995 = vmatprep.subr.bf16.mxu0 %v3571
        %4996 = vmatpush1.bf16.msra.mxu0 %v3570
        %4997 = vmatprep.subr.bf16.mxu0 %v3573
        %4998 = vmatpush1.bf16.msra.mxu0 %v3572
        %4999 = vmatprep.subr.bf16.mxu0 %v3575
        %5000 = vmatpush1.bf16.msra.mxu0 %v3574
        %5001 = vmatprep.subr.bf16.mxu0 %v3577
        %5002 = vmatpush1.bf16.msra.mxu0 %v3576
        %5003 = vmatprep.subr.bf16.mxu0 %v3579
        %5004 = vmatpush1.bf16.msra.mxu0 %v3578
        %5005 = vmatprep.subr.bf16.mxu0 %v3581
        %5006 = vmatpush1.bf16.msra.mxu0 %v3580
        %5007 = vmatprep.mubr.bf16.mxu0 %v1289
        %5008 = vmatmul.mubr.bf16.gmra.mrb[0].mxu0 %v1288
        %v5009 = vpop.f32.mrb[0].mxu0
        %v5010 = vadd.f32 %v4957, %v5009
        %v5011 = vpop.f32.mrb[0].mxu0
        %v5012 = vadd.f32 %v4959, %v5011
        %v5013 = vpop.f32.mrb[0].mxu0
        %v5014 = vadd.f32 %v4961, %v5013
        %v5015 = vpop.f32.mrb[0].mxu0
        %v5016 = vadd.f32 %v4963, %v5015
        %5017 = vmatprep.mubr.bf16.mxu0 %v1325
        %5018 = vmatmul.mubr.bf16.gmra.mrb[0].mxu0 %v1324
        %v5019 = vpop.f32.mrb[0].mxu0
        %v5020 = vadd.f32 %v4967, %v5019
        %v5021 = vpop.f32.mrb[0].mxu0
        %v5022 = vadd.f32 %v4969, %v5021
        %v5023 = vpop.f32.mrb[0].mxu0
        %v5024 = vadd.f32 %v4971, %v5023
        %v5025 = vpop.f32.mrb[0].mxu0
        %v5026 = vadd.f32 %v4973, %v5025
        %5027 = vdwg.mxu0
        %5028 = vmatprep.subr.bf16.mxu0 %v3583
        %5029 = vmatpush1.bf16.msra.mxu0 %v3582
        %5030 = vmatprep.subr.bf16.mxu0 %v3585
        %5031 = vmatpush1.bf16.msra.mxu0 %v3584
        %5032 = vmatprep.subr.bf16.mxu0 %v3587
        %5033 = vmatpush1.bf16.msra.mxu0 %v3586
        %5034 = vmatprep.subr.bf16.mxu0 %v3589
        %5035 = vmatpush1.bf16.msra.mxu0 %v3588
        %5036 = vmatprep.subr.bf16.mxu0 %v3591
        %5037 = vmatpush1.bf16.msra.mxu0 %v3590
        %5038 = vmatprep.subr.bf16.mxu0 %v3593
        %5039 = vmatpush1.bf16.msra.mxu0 %v3592
        %5040 = vmatprep.subr.bf16.mxu0 %v3595
        %5041 = vmatpush1.bf16.msra.mxu0 %v3594
        %5042 = vmatprep.subr.bf16.mxu0 %v3597
        %5043 = vmatpush1.bf16.msra.mxu0 %v3596
        %5044 = vmatprep.subr.bf16.mxu0 %v3599
        %5045 = vmatpush1.bf16.msra.mxu0 %v3598
        %5046 = vmatprep.subr.bf16.mxu0 %v3601
        %5047 = vmatpush1.bf16.msra.mxu0 %v3600
        %5048 = vmatprep.subr.bf16.mxu0 %v3603
        %5049 = vmatpush1.bf16.msra.mxu0 %v3602
        %5050 = vmatprep.subr.bf16.mxu0 %v3605
        %5051 = vmatpush1.bf16.msra.mxu0 %v3604
        %5052 = vmatprep.subr.bf16.mxu0 %v3607
        %5053 = vmatpush1.bf16.msra.mxu0 %v3606
        %5054 = vmatprep.subr.bf16.mxu0 %v3609
        %5055 = vmatpush1.bf16.msra.mxu0 %v3608
        %5056 = vmatprep.subr.bf16.mxu0 %v3611
        %5057 = vmatpush1.bf16.msra.mxu0 %v3610
        %5058 = vmatprep.subr.bf16.mxu0 %v3613
        %5059 = vmatpush1.bf16.msra.mxu0 %v3612
        %5060 = vmatprep.mubr.bf16.mxu0 %v1291
        %5061 = vmatmul.mubr.bf16.gmra.mrb[0].mxu0 %v1290
        %v5062 = vpop.f32.mrb[0].mxu0
        %v5063 = vadd.f32 %v5010, %v5062
        %v5064 = vpop.f32.mrb[0].mxu0
        %v5065 = vadd.f32 %v5012, %v5064
        %v5066 = vpop.f32.mrb[0].mxu0
        %v5067 = vadd.f32 %v5014, %v5066
        %v5068 = vpop.f32.mrb[0].mxu0
        %v5069 = vadd.f32 %v5016, %v5068
        %5070 = vmatprep.mubr.bf16.mxu0 %v1327
        %5071 = vmatmul.mubr.bf16.gmra.mrb[0].mxu0 %v1326
        %v5072 = vpop.f32.mrb[0].mxu0
        %v5073 = vadd.f32 %v5020, %v5072
        %v5074 = vpop.f32.mrb[0].mxu0
        %v5075 = vadd.f32 %v5022, %v5074
        %v5076 = vpop.f32.mrb[0].mxu0
        %v5077 = vadd.f32 %v5024, %v5076
        %v5078 = vpop.f32.mrb[0].mxu0
        %v5079 = vadd.f32 %v5026, %v5078
        %5080 = vdwg.mxu0
        %5081 = vmatprep.subr.bf16.mxu0 %v3615
        %5082 = vmatpush1.bf16.msra.mxu0 %v3614
        %5083 = vmatprep.subr.bf16.mxu0 %v3617
        %5084 = vmatpush1.bf16.msra.mxu0 %v3616
        %5085 = vmatprep.subr.bf16.mxu0 %v3619
        %5086 = vmatpush1.bf16.msra.mxu0 %v3618
        %5087 = vmatprep.subr.bf16.mxu0 %v3621
        %5088 = vmatpush1.bf16.msra.mxu0 %v3620
        %5089 = vmatprep.subr.bf16.mxu0 %v3623
        %5090 = vmatpush1.bf16.msra.mxu0 %v3622
        %5091 = vmatprep.subr.bf16.mxu0 %v3625
        %5092 = vmatpush1.bf16.msra.mxu0 %v3624
        %5093 = vmatprep.subr.bf16.mxu0 %v3627
        %5094 = vmatpush1.bf16.msra.mxu0 %v3626
        %5095 = vmatprep.subr.bf16.mxu0 %v3629
        %5096 = vmatpush1.bf16.msra.mxu0 %v3628
        %5097 = vmatprep.subr.bf16.mxu0 %v3631
        %5098 = vmatpush1.bf16.msra.mxu0 %v3630
        %5099 = vmatprep.subr.bf16.mxu0 %v3633
        %5100 = vmatpush1.bf16.msra.mxu0 %v3632
        %5101 = vmatprep.subr.bf16.mxu0 %v3635
        %5102 = vmatpush1.bf16.msra.mxu0 %v3634
        %5103 = vmatprep.subr.bf16.mxu0 %v3637
        %5104 = vmatpush1.bf16.msra.mxu0 %v3636
        %5105 = vmatprep.subr.bf16.mxu0 %v3639
        %5106 = vmatpush1.bf16.msra.mxu0 %v3638
        %5107 = vmatprep.subr.bf16.mxu0 %v3641
        %5108 = vmatpush1.bf16.msra.mxu0 %v3640
        %5109 = vmatprep.subr.bf16.mxu0 %v3643
        %5110 = vmatpush1.bf16.msra.mxu0 %v3642
        %5111 = vmatprep.subr.bf16.mxu0 %v3645
        %5112 = vmatpush1.bf16.msra.mxu0 %v3644
        %5113 = vmatprep.mubr.bf16.mxu0 %v1293
        %5114 = vmatmul.mubr.bf16.gmra.mrb[0].mxu0 %v1292
        %v5115 = vpop.f32.mrb[0].mxu0
        %v5116 = vadd.f32 %v5063, %v5115
        %v5117 = vpop.f32.mrb[0].mxu0
        %v5118 = vadd.f32 %v5065, %v5117
        %v5119 = vpop.f32.mrb[0].mxu0
        %v5120 = vadd.f32 %v5067, %v5119
        %v5121 = vpop.f32.mrb[0].mxu0
        %v5122 = vadd.f32 %v5069, %v5121
        %5123 = vmatprep.mubr.bf16.mxu0 %v1329
        %5124 = vmatmul.mubr.bf16.gmra.mrb[0].mxu0 %v1328
        %v5125 = vpop.f32.mrb[0].mxu0
        %v5126 = vadd.f32 %v5073, %v5125
        %v5127 = vpop.f32.mrb[0].mxu0
        %v5128 = vadd.f32 %v5075, %v5127
        %v5129 = vpop.f32.mrb[0].mxu0
        %v5130 = vadd.f32 %v5077, %v5129
        %v5131 = vpop.f32.mrb[0].mxu0
        %v5132 = vadd.f32 %v5079, %v5131
        %5133 = vdwg.mxu0
        %5134 = vmatprep.subr.bf16.mxu0 %v3647
        %5135 = vmatpush1.bf16.msra.mxu0 %v3646
        %5136 = vmatprep.subr.bf16.mxu0 %v3649
        %5137 = vmatpush1.bf16.msra.mxu0 %v3648
        %5138 = vmatprep.subr.bf16.mxu0 %v3651
        %5139 = vmatpush1.bf16.msra.mxu0 %v3650
        %5140 = vmatprep.subr.bf16.mxu0 %v3653
        %5141 = vmatpush1.bf16.msra.mxu0 %v3652
        %5142 = vmatprep.subr.bf16.mxu0 %v3655
        %5143 = vmatpush1.bf16.msra.mxu0 %v3654
        %5144 = vmatprep.subr.bf16.mxu0 %v3657
        %5145 = vmatpush1.bf16.msra.mxu0 %v3656
        %5146 = vmatprep.subr.bf16.mxu0 %v3659
        %5147 = vmatpush1.bf16.msra.mxu0 %v3658
        %5148 = vmatprep.subr.bf16.mxu0 %v3661
        %5149 = vmatpush1.bf16.msra.mxu0 %v3660
        %5150 = vmatprep.subr.bf16.mxu0 %v3663
        %5151 = vmatpush1.bf16.msra.mxu0 %v3662
        %5152 = vmatprep.subr.bf16.mxu0 %v3665
        %5153 = vmatpush1.bf16.msra.mxu0 %v3664
        %5154 = vmatprep.subr.bf16.mxu0 %v3667
        %5155 = vmatpush1.bf16.msra.mxu0 %v3666
        %5156 = vmatprep.subr.bf16.mxu0 %v3669
        %5157 = vmatpush1.bf16.msra.mxu0 %v3668
        %5158 = vmatprep.subr.bf16.mxu0 %v3671
        %5159 = vmatpush1.bf16.msra.mxu0 %v3670
        %5160 = vmatprep.subr.bf16.mxu0 %v3673
        %5161 = vmatpush1.bf16.msra.mxu0 %v3672
        %5162 = vmatprep.subr.bf16.mxu0 %v3675
        %5163 = vmatpush1.bf16.msra.mxu0 %v3674
        %5164 = vmatprep.subr.bf16.mxu0 %v3677
        %5165 = vmatpush1.bf16.msra.mxu0 %v3676
        %5166 = vmatprep.mubr.bf16.mxu0 %v1295
        %5167 = vmatmul.mubr.bf16.gmra.mrb[0].mxu0 %v1294
        %v5168 = vpop.f32.mrb[0].mxu0
        %v5169 = vadd.f32 %v5116, %v5168
        %v5170 = vpop.f32.mrb[0].mxu0
        %v5171 = vadd.f32 %v5118, %v5170
        %v5172 = vpop.f32.mrb[0].mxu0
        %v5173 = vadd.f32 %v5120, %v5172
        %v5174 = vpop.f32.mrb[0].mxu0
        %v5175 = vadd.f32 %v5122, %v5174
        %5176 = vmatprep.mubr.bf16.mxu0 %v1331
        %5177 = vmatmul.mubr.bf16.gmra.mrb[0].mxu0 %v1330
        %v5178 = vpop.f32.mrb[0].mxu0
        %v5179 = vadd.f32 %v5126, %v5178
        %v5180 = vpop.f32.mrb[0].mxu0
        %v5181 = vadd.f32 %v5128, %v5180
        %v5182 = vpop.f32.mrb[0].mxu0
        %v5183 = vadd.f32 %v5130, %v5182
        %v5184 = vpop.f32.mrb[0].mxu0
        %v5185 = vadd.f32 %v5132, %v5184
        %5186 = vdwg.mxu0
        %5187 = vmatprep.subr.bf16.mxu0 %v3679
        %5188 = vmatpush1.bf16.msra.mxu0 %v3678
        %5189 = vmatprep.subr.bf16.mxu0 %v3681
        %5190 = vmatpush1.bf16.msra.mxu0 %v3680
        %5191 = vmatprep.subr.bf16.mxu0 %v3683
        %5192 = vmatpush1.bf16.msra.mxu0 %v3682
        %5193 = vmatprep.subr.bf16.mxu0 %v3685
        %5194 = vmatpush1.bf16.msra.mxu0 %v3684
        %5195 = vmatprep.subr.bf16.mxu0 %v3687
        %5196 = vmatpush1.bf16.msra.mxu0 %v3686
        %5197 = vmatprep.subr.bf16.mxu0 %v3689
        %5198 = vmatpush1.bf16.msra.mxu0 %v3688
        %5199 = vmatprep.subr.bf16.mxu0 %v3691
        %5200 = vmatpush1.bf16.msra.mxu0 %v3690
        %5201 = vmatprep.subr.bf16.mxu0 %v3693
        %5202 = vmatpush1.bf16.msra.mxu0 %v3692
        %5203 = vmatprep.subr.bf16.mxu0 %v3695
        %5204 = vmatpush1.bf16.msra.mxu0 %v3694
        %5205 = vmatprep.subr.bf16.mxu0 %v3697
        %5206 = vmatpush1.bf16.msra.mxu0 %v3696
        %5207 = vmatprep.subr.bf16.mxu0 %v3699
        %5208 = vmatpush1.bf16.msra.mxu0 %v3698
        %5209 = vmatprep.subr.bf16.mxu0 %v3701
        %5210 = vmatpush1.bf16.msra.mxu0 %v3700
        %5211 = vmatprep.subr.bf16.mxu0 %v3703
        %5212 = vmatpush1.bf16.msra.mxu0 %v3702
        %5213 = vmatprep.subr.bf16.mxu0 %v3705
        %5214 = vmatpush1.bf16.msra.mxu0 %v3704
        %5215 = vmatprep.subr.bf16.mxu0 %v3707
        %5216 = vmatpush1.bf16.msra.mxu0 %v3706
        %5217 = vmatprep.subr.bf16.mxu0 %v3709
        %5218 = vmatpush1.bf16.msra.mxu0 %v3708
        %5219 = vmatprep.mubr.bf16.mxu0 %v1297
        %5220 = vmatmul.mubr.bf16.gmra.mrb[0].mxu0 %v1296
        %v5221 = vpop.f32.mrb[0].mxu0
        %v5222 = vadd.f32 %v5169, %v5221
        %v5223 = vpop.f32.mrb[0].mxu0
        %v5224 = vadd.f32 %v5171, %v5223
        %v5225 = vpop.f32.mrb[0].mxu0
        %v5226 = vadd.f32 %v5173, %v5225
        %v5227 = vpop.f32.mrb[0].mxu0
        %v5228 = vadd.f32 %v5175, %v5227
        %5229 = vmatprep.mubr.bf16.mxu0 %v1333
        %5230 = vmatmul.mubr.bf16.gmra.mrb[0].mxu0 %v1332
        %v5231 = vpop.f32.mrb[0].mxu0
        %v5232 = vadd.f32 %v5179, %v5231
        %v5233 = vpop.f32.mrb[0].mxu0
        %v5234 = vadd.f32 %v5181, %v5233
        %v5235 = vpop.f32.mrb[0].mxu0
        %v5236 = vadd.f32 %v5183, %v5235
        %v5237 = vpop.f32.mrb[0].mxu0
        %v5238 = vadd.f32 %v5185, %v5237
        %5239 = vdwg.mxu0
        %v5240 = vadd.f32 %v390, %v5222
        %v5241 = vadd.f32 %v391, %v5224
        %v5242 = vadd.f32 %v392, %v5226
        %v5243 = vadd.f32 %v393, %v5228
        %v5244 = vadd.f32 %v394, %v5232
        %v5245 = vadd.f32 %v395, %v5234
        %v5246 = vadd.f32 %v396, %v5236
        %v5247 = vadd.f32 %v397, %v5238
        %5248 = vst [vmem:[#allocation2] sm:$0xff] %v5240
        %5249 = vst [vmem:[#allocation2 + $0x8] sm:$0xff] %v5241
        %5250 = vst [vmem:[#allocation2 + $0x10] sm:$0xff] %v5242
        %5251 = vst [vmem:[#allocation2 + $0x18] sm:$0xff] %v5243
        %5252 = vst [vmem:[#allocation2 + $0x20] sm:$0xff] %v5244
        %5253 = vst [vmem:[#allocation2 + $0x28] sm:$0xff] %v5245
        %5254 = vst [vmem:[#allocation2 + $0x30] sm:$0xff] %v5246
        %5255 = vst [vmem:[#allocation2 + $0x38] sm:$0xff] %v5247
        %p5256 = scmp.eq.s32.totalorder %s31, 3
        // Predicated region
        $region73: #{tpu_custom_call.1} parent=43 // pred_check
          %p5257 = pneg %p5256
        $region74: #{tpu_custom_call.1} parent=43 // pred_check_branch
          %5259 = sbr.rel (%p5257) target = $region76
        $region75: #{tpu_custom_call.1} parent=43 // pred_region
          %v5260 = vld [vmem:[#allocation2] sm:$0xff]
          %v5261 = vld [vmem:[#allocation2 + $0x8] sm:$0xff]
          %v5262 = vld [vmem:[#allocation2 + $0x10] sm:$0xff]
          %v5263 = vld [vmem:[#allocation2 + $0x18] sm:$0xff]
          %v5264 = vld [vmem:[#allocation2 + $0x20] sm:$0xff]
          %v5265 = vld [vmem:[#allocation2 + $0x28] sm:$0xff]
          %v5266 = vld [vmem:[#allocation2 + $0x30] sm:$0xff]
          %v5267 = vld [vmem:[#allocation2 + $0x38] sm:$0xff]
          %v5268 = vld [vmem:[#allocation8] sm:$0x3]
          %v5270 = vlaneseq
          %v5271 = vshrl.u32 %v5270, 7
          %v5272 = vsub.s32 0, %v5271
          %v5273 = vrot.slane %v5268, %v5272
          %v5274 = vlaneseq
          %v5275 = vshrl.u32 %v5274, 7
          %v5276 = vsub.s32 1, %v5275
          %v5277 = vrot.slane %v5268, %v5276
          %v5280 = vmul.f32 %v5260, %v5273
          %v5281 = vmul.f32 %v5261, %v5277
          %v5282 = vmul.f32 %v5262, %v5273
          %v5283 = vmul.f32 %v5263, %v5277
          %v5284 = vmul.f32 %v5264, %v5273
          %v5285 = vmul.f32 %v5265, %v5277
          %v5286 = vmul.f32 %v5266, %v5273
          %v5287 = vmul.f32 %v5267, %v5277
          %v5288 = vld [vmem:[#allocation9] sm:$0x3]
          %v5290 = vlaneseq
          %v5291 = vshrl.u32 %v5290, 7
          %v5292 = vsub.s32 0, %v5291
          %v5293 = vrot.slane %v5288, %v5292
          %v5294 = vlaneseq
          %v5295 = vshrl.u32 %v5294, 7
          %v5296 = vsub.s32 1, %v5295
          %v5297 = vrot.slane %v5288, %v5296
          %v5300 = vadd.f32 %v5280, %v5293
          %v5301 = vadd.f32 %v5281, %v5297
          %v5302 = vadd.f32 %v5282, %v5293
          %v5303 = vadd.f32 %v5283, %v5297
          %v5304 = vadd.f32 %v5284, %v5293
          %v5305 = vadd.f32 %v5285, %v5297
          %v5306 = vadd.f32 %v5286, %v5293
          %v5307 = vadd.f32 %v5287, %v5297
          %v5308 = vmax.f32 %v5300, 0.0
          %v5309 = vmax.f32 %v5301, 0.0
          %v5310 = vmax.f32 %v5302, 0.0
          %v5311 = vmax.f32 %v5303, 0.0
          %v5312 = vmax.f32 %v5304, 0.0
          %v5313 = vmax.f32 %v5305, 0.0
          %v5314 = vmax.f32 %v5306, 0.0
          %v5315 = vmax.f32 %v5307, 0.0
          %v5316 = vpack.c.bf16 %v5310, %v5308
          %v5317 = vpack.c.bf16 %v5311, %v5309
          %v5318 = vpack.c.bf16 %v5314, %v5312
          %v5319 = vpack.c.bf16 %v5315, %v5313
          %v5320 = vld [vmem:[#allocation11] sm:$0xf]
          %v5321 = vld [vmem:[#allocation11 + $0x4] sm:$0xf]
          %v5322 = vld [vmem:[#allocation11 + $0x8] sm:$0xf]
          %v5323 = vld [vmem:[#allocation11 + $0xc] sm:$0xf]
          %v5324 = vld [vmem:[#allocation11 + $0x10] sm:$0xf]
          %v5325 = vld [vmem:[#allocation11 + $0x14] sm:$0xf]
          %v5326 = vld [vmem:[#allocation11 + $0x18] sm:$0xf]
          %v5327 = vld [vmem:[#allocation11 + $0x1c] sm:$0xf]
          %v5328 = vld [vmem:[#allocation11 + $0x20] sm:$0xf]
          %v5329 = vld [vmem:[#allocation11 + $0x24] sm:$0xf]
          %v5330 = vld [vmem:[#allocation11 + $0x28] sm:$0xf]
          %v5331 = vld [vmem:[#allocation11 + $0x2c] sm:$0xf]
          %v5332 = vld [vmem:[#allocation11 + $0x30] sm:$0xf]
          %v5333 = vld [vmem:[#allocation11 + $0x34] sm:$0xf]
          %v5334 = vld [vmem:[#allocation11 + $0x38] sm:$0xf]
          %v5335 = vld [vmem:[#allocation11 + $0x3c] sm:$0xf]
          %v5336 = vld [vmem:[#allocation11 + $0x40] sm:$0xf]
          %v5337 = vld [vmem:[#allocation11 + $0x44] sm:$0xf]
          %v5338 = vld [vmem:[#allocation11 + $0x48] sm:$0xf]
          %v5339 = vld [vmem:[#allocation11 + $0x4c] sm:$0xf]
          %v5340 = vld [vmem:[#allocation11 + $0x50] sm:$0xf]
          %v5341 = vld [vmem:[#allocation11 + $0x54] sm:$0xf]
          %v5342 = vld [vmem:[#allocation11 + $0x58] sm:$0xf]
          %v5343 = vld [vmem:[#allocation11 + $0x5c] sm:$0xf]
          %v5344 = vld [vmem:[#allocation11 + $0x60] sm:$0xf]
          %v5345 = vld [vmem:[#allocation11 + $0x64] sm:$0xf]
          %v5346 = vld [vmem:[#allocation11 + $0x68] sm:$0xf]
          %v5347 = vld [vmem:[#allocation11 + $0x6c] sm:$0xf]
          %v5348 = vld [vmem:[#allocation11 + $0x70] sm:$0xf]
          %v5349 = vld [vmem:[#allocation11 + $0x74] sm:$0xf]
          %v5350 = vld [vmem:[#allocation11 + $0x78] sm:$0xf]
          %v5351 = vld [vmem:[#allocation11 + $0x7c] sm:$0xf]
          %v5352 = vld [vmem:[#allocation12] sm:$0x1]
          %v5354 = vlaneseq
          %v5355 = vshrl.u32 %v5354, 7
          %v5356 = vsub.s32 0, %v5355
          %v5357 = vrot.slane %v5352, %v5356
          %v5391 = vunpack.c.l.b16 %v5320
          %v5392 = vunpack.c.l.b16 %v5321
          %v5393 = vunpack.c.l.b16 %v5322
          %v5394 = vunpack.c.l.b16 %v5323
          %v5395 = vunpack.c.l.b16 %v5324
          %v5396 = vunpack.c.l.b16 %v5325
          %v5397 = vunpack.c.l.b16 %v5326
          %v5398 = vunpack.c.l.b16 %v5327
          %v5399 = vunpack.c.l.b16 %v5328
          %v5400 = vunpack.c.l.b16 %v5329
          %v5401 = vunpack.c.l.b16 %v5330
          %v5402 = vunpack.c.l.b16 %v5331
          %v5403 = vunpack.c.l.b16 %v5332
          %v5404 = vunpack.c.l.b16 %v5333
          %v5405 = vunpack.c.l.b16 %v5334
          %v5406 = vunpack.c.l.b16 %v5335
          %v5407 = vunpack.c.l.b16 %v5336
          %v5408 = vunpack.c.l.b16 %v5337
          %v5409 = vunpack.c.l.b16 %v5338
          %v5410 = vunpack.c.l.b16 %v5339
          %v5411 = vunpack.c.l.b16 %v5340
          %v5412 = vunpack.c.l.b16 %v5341
          %v5413 = vunpack.c.l.b16 %v5342
          %v5414 = vunpack.c.l.b16 %v5343
          %v5415 = vunpack.c.l.b16 %v5344
          %v5416 = vunpack.c.l.b16 %v5345
          %v5417 = vunpack.c.l.b16 %v5346
          %v5418 = vunpack.c.l.b16 %v5347
          %v5419 = vunpack.c.l.b16 %v5348
          %v5420 = vunpack.c.l.b16 %v5349
          %v5421 = vunpack.c.l.b16 %v5350
          %v5422 = vunpack.c.l.b16 %v5351
          %v5423 = vpack.c.b16 %v5392, %v5391
          %v5424 = vpack.c.b16 %v5394, %v5393
          %v5425 = vpack.c.b16 %v5396, %v5395
          %v5426 = vpack.c.b16 %v5398, %v5397
          %v5427 = vpack.c.b16 %v5400, %v5399
          %v5428 = vpack.c.b16 %v5402, %v5401
          %v5429 = vpack.c.b16 %v5404, %v5403
          %v5430 = vpack.c.b16 %v5406, %v5405
          %v5431 = vpack.c.b16 %v5408, %v5407
          %v5432 = vpack.c.b16 %v5410, %v5409
          %v5433 = vpack.c.b16 %v5412, %v5411
          %v5434 = vpack.c.b16 %v5414, %v5413
          %v5435 = vpack.c.b16 %v5416, %v5415
          %v5436 = vpack.c.b16 %v5418, %v5417
          %v5437 = vpack.c.b16 %v5420, %v5419
          %v5438 = vpack.c.b16 %v5422, %v5421
          %5455 = vmatprep.subr.bf16.mxu0 0
          %5456 = vmatpush1.bf16.msra.mxu0 %v5423
          %5457 = vmatprep.subr.bf16.mxu0 0
          %5458 = vmatpush1.bf16.msra.mxu0 %v5424
          %5459 = vmatprep.subr.bf16.mxu0 0
          %5460 = vmatpush1.bf16.msra.mxu0 %v5425
          %5461 = vmatprep.subr.bf16.mxu0 0
          %5462 = vmatpush1.bf16.msra.mxu0 %v5426
          %5463 = vmatprep.subr.bf16.mxu0 0
          %5464 = vmatpush1.bf16.msra.mxu0 %v5427
          %5465 = vmatprep.subr.bf16.mxu0 0
          %5466 = vmatpush1.bf16.msra.mxu0 %v5428
          %5467 = vmatprep.subr.bf16.mxu0 0
          %5468 = vmatpush1.bf16.msra.mxu0 %v5429
          %5469 = vmatprep.subr.bf16.mxu0 0
          %5470 = vmatpush1.bf16.msra.mxu0 %v5430
          %5471 = vmatprep.subr.bf16.mxu0 0
          %5472 = vmatpush1.bf16.msra.mxu0 %v5431
          %5473 = vmatprep.subr.bf16.mxu0 0
          %5474 = vmatpush1.bf16.msra.mxu0 %v5432
          %5475 = vmatprep.subr.bf16.mxu0 0
          %5476 = vmatpush1.bf16.msra.mxu0 %v5433
          %5477 = vmatprep.subr.bf16.mxu0 0
          %5478 = vmatpush1.bf16.msra.mxu0 %v5434
          %5479 = vmatprep.subr.bf16.mxu0 0
          %5480 = vmatpush1.bf16.msra.mxu0 %v5435
          %5481 = vmatprep.subr.bf16.mxu0 0
          %5482 = vmatpush1.bf16.msra.mxu0 %v5436
          %5483 = vmatprep.subr.bf16.mxu0 0
          %5484 = vmatpush1.bf16.msra.mxu0 %v5437
          %5485 = vmatprep.subr.bf16.mxu0 0
          %5486 = vmatpush1.bf16.msra.mxu0 %v5438
          %5487 = vmatprep.mubr.bf16.mxu0 %v5317
          %5488 = vmatmul.mubr.bf16.gmra.mrb[0].mxu0 %v5316
          %v5489 = vpop.f32.mrb[0].mxu0
          %v5490 = vadd.f32 %v5357, %v5489
          %v5491 = vpop.f32.mrb[0].mxu0
          %v5492 = vpop.f32.mrb[0].mxu0
          %v5493 = vadd.f32 %v5357, %v5492
          %v5494 = vpop.f32.mrb[0].mxu0
          %5495 = vmatprep.mubr.bf16.mxu0 %v5319
          %5496 = vmatmul.mubr.bf16.gmra.mrb[0].mxu0 %v5318
          %v5497 = vpop.f32.mrb[0].mxu0
          %v5498 = vadd.f32 %v5357, %v5497
          %v5499 = vpop.f32.mrb[0].mxu0
          %v5500 = vpop.f32.mrb[0].mxu0
          %v5501 = vadd.f32 %v5357, %v5500
          %v5502 = vpop.f32.mrb[0].mxu0
          %5503 = vdwg.mxu0
          %5504 = vst [vmem:[#allocation14] sm:$0xff] %v5490
          %5505 = vst [vmem:[#allocation14 + $0x8] sm:$0xff] %v5493
          %5506 = vst [vmem:[#allocation14 + $0x10] sm:$0xff] %v5498
          %5507 = vst [vmem:[#allocation14 + $0x18] sm:$0xff] %v5501
        $region76: #{tpu_custom_call.1} parent=43 // pred_fallthru
          _
        // Predicated region
        $region77: #{tpu_custom_call.1} parent=43 // pred_check
          %p5508 = pneg %p194
        $region78: #{tpu_custom_call.1} parent=43 // pred_check_branch
          %5510 = sbr.rel (%p5508) target = $region80
        $region79: #{tpu_custom_call.1} parent=43 // pred_region
          %s5511 = smul.u32 4, %s30
          %s5513 = ssub.s32 512, 512
          %5514 = vsyncadd [#allocation5], %s5513
          %s5515 = smul.addr %s5511, 128
          %s5516 = scalar_lea.hbm %s6, %s5515
          %s5517 = sshll.u32 [#allocation14], 4
          %s5518 = int_to_ptr.vmem [resolvable:$true] %s5517
          %5523 = dma.vmem_to_hbm [thread:$0]  %s5518, 512, %s5516, [#allocation5], 128, 128, 8
        $region80: #{tpu_custom_call.1} parent=43 // pred_fallthru
          _
        // Predicated region
        $region81: #{tpu_custom_call.1} parent=43 // pred_check
          %p5524 = pneg %p194
        $region82: #{tpu_custom_call.1} parent=43 // pred_check_branch
          %5526 = sbr.rel (%p5524) target = $region84
        $region83: #{tpu_custom_call.1} parent=43 // pred_region
          %5527 = dma.done [#allocation5], 512
        $region84: #{tpu_custom_call.1} parent=43 // pred_fallthru
          _
      $region44: #{tpu_custom_call.1} parent=5 // pred_fallthru
        _
      %p5528 = scmp.le.s32.totalorder 2, %s21
      // Predicated region
      $region85: #{tpu_custom_call.1} parent=5 // pred_check
        %p5529 = pneg %p5528
      $region86: #{tpu_custom_call.1} parent=5 // pred_check_branch
        %5531 = sbr.rel (%p5529) target = $region88
      $region87: #{tpu_custom_call.1} parent=5 // pred_region
        %s5532 = ssub.s32 %s21, 2
      $region88: #{tpu_custom_call.1} parent=5 // pred_fallthru
        _
    $region6: #{tpu_custom_call.1} parent=1 // loop_footer
      %s25 = sadd.s32 1, %s21
    $region7: #{tpu_custom_call.1} parent=1 // loop_footer_branch
      %20 = sbr.rel target = $region3
    $region8: #{tpu_custom_call.1} parent=1 // loop_exit
      _
    %5533 = vsyncpa [#allocation4], 1
    %s5534 = scalar_lea.sflag [#allocation4], 1
    %5535 = vsyncpa %s5534, 1
    %5536 = vsyncpa [#allocation7], 1
    %s5537 = scalar_lea.sflag [#allocation7], 1
    %5538 = vsyncpa %s5537, 1
    %5539 = vsyncpa [#allocation10], 1
    %5540 = vsyncpa [#allocation13], 1
    %5541 = vsyncpa [#allocation5], 1
    %s5542 = scalar_lea.sflag [#allocation5], 1
    %5543 = vsyncpa %s5542, 1

</llo_original>
